<compile_context>
chip_gen: v6e
topology: v6e:2x2x1
jax: 0.10.0
libtpu: 0.0.40
codegen_flags: <defaults>
</compile_context>

<pallas_src>
import functools
import math

import numpy as np

import jax
import jax.numpy as jnp
from jax.experimental import pallas as pl
from jax.experimental.pallas import tpu as pltpu

_LANE = 128


def _round_up(x, m):
    return ((x + m - 1) // m) * m


def attention_v1_kernel(
    x_ref, e_ref, mrow_ref, mcol_ref, wn_ref, bn_ref, we_ref, be_ref,
    x_out_ref, e_out_ref,
    q_sc, k_sc, v_sc, ni_sc, nj_sc, acc_sc,
    *, tj, head_dim, inv_sqrt_d, dense_e_out,
):
    j = pl.program_id(1)
    nj = pl.num_programs(1)
    D = head_dim

    xm = mrow_ref[0]                 # (N, 1)  f32 row (i) mask
    xm_c = mcol_ref[0]               # (tj, 1) f32 column (j) mask for this tile

    # ---- per-batch node-side work: one fused (H, 5D) matmul, done at j == 0 ----
    @pl.when(j == 0)
    def _():
        xb = x_ref[0]                # (N, H) bf16
        node = jnp.dot(xb, wn_ref[...],
                       preferred_element_type=jnp.float32) + bn_ref[...]   # (N, 5D) f32
        # node_mask is assumed to be {0, 1}; redundant mask multiplies of the
        # PyTorch reference are dropped (exact for a 0/1 mask).
        q_sc[...] = node[:, 0 * D:1 * D] * (xm * inv_sqrt_d)   # Q * mask / sqrt(D)
        k_sc[...] = node[:, 1 * D:2 * D]                       # pair mask covers K
        v_sc[...] = node[:, 2 * D:3 * D] * xm                  # V * mask
        ni_sc[...] = node[:, 3 * D:4 * D]
        nj_sc[...] = node[:, 4 * D:5 * D]
        acc_sc[...] = jnp.zeros_like(acc_sc)

    j0 = pl.multiple_of(j * tj, tj)
    nj_cols = nj_sc[pl.ds(j0, tj), :]     # (tj, D)
    k_cols = k_sc[pl.ds(j0, tj), :]       # (tj, D)
    v_cols = v_sc[pl.ds(j0, tj), :]       # (tj, D)

    # ---- edge linear for this column tile ----
    eb = e_ref[0]                         # (N, tj, H) bf16
    n_rows = eb.shape[0]
    hid = eb.shape[2]
    ee = jnp.dot(eb.reshape(n_rows * tj, hid), we_ref[...],
                 preferred_element_type=jnp.float32) + be_ref[...]
    ee = ee.reshape(n_rows, tj, D)        # f32

    # pair mask applied exactly once (exact because mask is {0, 1})
    pair3 = xm[:, None, :] * xm_c[None, :, :]                          # (N, tj, 1)
    e_new = (ni_sc[...][:, None, :] + nj_cols[None, :, :] + ee) * pair3

    # ---- attention logits: sum_d Q[i,d] * e_new[i,jj,d] * K[jj,d]  (1/sqrt(D) in Q)
    att = jnp.sum(q_sc[...][:, None, :] * e_new * k_cols[None, :, :], axis=2)  # (N, tj)
    # Note: reusing pair3 here would need an (N, tj, 1)->(N, tj) relayout that
    # costs about as much as this tiny outer product, so keep the 2-D form.
    pm2d = xm * jnp.transpose(xm_c)                                    # (N, tj)
    att = jnp.where(pm2d != 0.0, att, jnp.float32(-1e9))

    # softmax over torch dim=1 == rows i (axis 0); full i extent lives in every tile
    att = att - jnp.max(att, axis=0, keepdims=True)
    p = jnp.exp(att)
    denom = jnp.sum(p, axis=0, keepdims=True)
    att = p * pl.reciprocal(denom, approx=False)   # exact to keep tight tolerances

    # accumulate x_new = Att @ V across column tiles
    acc_sc[...] += jnp.dot(att, v_cols, preferred_element_type=jnp.float32)

    # x_out block is resident across j: only the last write matters.
    @pl.when(j == nj - 1)
    def _():
        x_out_ref[0] = (acc_sc[...] * xm).astype(x_out_ref.dtype)

    e_cast = e_new.astype(e_out_ref.dtype)
    if dense_e_out:
        # Lane-dense store: (N, tj, D) -> (N, tj*D), tj*D a multiple of 128.
        e_out_ref[0] = e_cast.reshape(n_rows, tj * D)
    else:
        e_out_ref[0] = e_cast


def _vmem_bytes(n, h, d, tj, in_bytes, e_out_bytes, x_out_bytes, dense_e_out):
    """Conservative VMEM footprint model with padded (sublane, 128-lane) tiles,
    double-buffered pipeline blocks, resident scratches/weights and f32
    in-kernel temporaries (which live at the padded-D lane layout)."""
    sub_in = 8 * 4 // in_bytes
    sub_eo = 8 * 4 // e_out_bytes
    pad = _round_up
    # per-grid-step, double-buffered blocks
    e_in = 2 * n * pad(tj, sub_in) * pad(h, _LANE) * in_bytes
    if dense_e_out:
        e_out = 2 * pad(n, sub_eo) * tj * d * e_out_bytes
    else:
        e_out = 2 * n * pad(tj, sub_eo) * pad(d, _LANE) * e_out_bytes
    temps = 3 * n * tj * pad(d, _LANE) * 4
    # residents (x/x_out/masks/weights/scratch)
    x_in = 2 * pad(n, sub_in) * pad(h, _LANE) * in_bytes
    x_out = 2 * pad(n, 8) * pad(d, _LANE) * x_out_bytes
    masks = 2 * 2 * (pad(n, 8) * _LANE) * 4
    weights = (2 * (pad(h, sub_in) * pad(5 * d, _LANE) + pad(h, sub_in) * pad(d, _LANE)) * in_bytes
               + 2 * 8 * (pad(5 * d, _LANE) + pad(d, _LANE)) * 4)
    scratch = 6 * pad(n, 8) * pad(d, _LANE) * 4
    return e_in + e_out + temps + x_in + x_out + masks + weights + scratch


def _pick_tj(n, h, d, in_bytes, e_out_bytes, x_out_bytes, budget, dense_e_out):
    """Largest column tile TJ that (a) divides N, (b) satisfies the (8,128) block
    rule (TJ % 8 == 0 or TJ == N), (c) if dense: TJ*D % 128 == 0, (d) fits the
    VMEM budget.  Prefers multiples of 16 (bf16 sublane tile) so the in-kernel
    (N, TJ, H) -> (N*TJ, H) reshape stays a free view."""
    cands = [t for t in range(1, n + 1) if n % t == 0 and (t % 8 == 0 or t == n)]
    if dense_e_out:
        cands = [t for t in cands if (t * d) % _LANE == 0]
    if not cands:
        return None
    fits = [t for t in cands
            if _vmem_bytes(n, h, d, t, in_bytes, e_out_bytes, x_out_bytes, dense_e_out) <= budget]
    if not fits:
        return min(cands)
    m16 = [t for t in fits if t % 16 == 0]
    return max(m16) if m16 else max(fits)


def _default_vmem_limit():
    try:
        cap = int(pltpu.get_tpu_info().vmem_capacity_bytes)
    except Exception:
        cap = 64 * 1024 * 1024          # conservative: fits every generation
    # ~108 MiB on v5e/v6e (128 MiB physical), ~54 MiB on v7x (64 MiB per TC).
    return min(cap - 10 * 1024 * 1024, int(cap * 0.85))


def attention_v1_forward(x, e, node_mask, W, Bias, *,
                         compute_dtype=jnp.bfloat16,
                         x_out_dtype=jnp.float32,
                         e_out_dtype=jnp.bfloat16,
                         tj=None,
                         vmem_limit_bytes=None,
                         lane_dense_e_out=None):
    """x: (B, N, H), e: (B, N, N, H), node_mask: (B, N) in {0, 1}.
    W: (6, H, D) stacked [Q, K, E, V, Ni, Nj] (already (in, out)); Bias: (6, 1, D)."""
    B, N, H = x.shape
    D = W.shape[-1]

    # Fuse the five node-side linears [Q, K, V, Ni, Nj] into one (H, 5D) matmul.
    node_idx = (0, 1, 3, 4, 5)
    w_node = jnp.concatenate([W[i] for i in node_idx], axis=1).astype(compute_dtype)  # (H, 5D)
    b_node = jnp.concatenate([Bias[i] for i in node_idx], axis=1).astype(jnp.float32) # (1, 5D)
    w_e = W[2].astype(compute_dtype)                                                  # (H, D)
    b_e = Bias[2].astype(jnp.float32)                                                 # (1, D)

    xc = x.astype(compute_dtype)
    ec = e.astype(compute_dtype)
    mask3 = node_mask.reshape(B, N, 1).astype(jnp.float32)

    in_bytes = np.dtype(compute_dtype).itemsize
    e_out_bytes = np.dtype(e_out_dtype).itemsize
    x_out_bytes = np.dtype(x_out_dtype).itemsize

    if vmem_limit_bytes is None:
        vmem_limit_bytes = _default_vmem_limit()
    budget = int(vmem_limit_bytes * 0.9)

    want_dense = lane_dense_e_out
    if want_dense is None:
        want_dense = (D % _LANE) != 0        # already lane-dense if D is a 128-multiple

    def run(dense, tj_sel):
        nj_tiles = N // tj_sel
        if dense:
            e_out_shape = jax.ShapeDtypeStruct((B, N, N * D), e_out_dtype)
            e_out_spec = pl.BlockSpec((1, N, tj_sel * D), lambda b, j: (b, 0, j))
        else:
            e_out_shape = jax.ShapeDtypeStruct((B, N, N, D), e_out_dtype)
            e_out_spec = pl.BlockSpec((1, N, tj_sel, D), lambda b, j: (b, 0, j, 0))

        cost = pl.CostEstimate(
            flops=int(2 * B * N * N * H * D      # edge linear (dominant)
                      + 2 * B * N * H * 5 * D    # fused node linears
                      + 7 * B * N * N * D),      # elementwise combine + logits + Att@V
            transcendentals=int(B * N * N),      # exp in the softmax
            bytes_accessed=int(ec.size * in_bytes + xc.size * in_bytes + 2 * mask3.size * 4
                               + B * N * N * D * e_out_bytes + B * N * D * x_out_bytes
                               + (w_node.size + w_e.size) * in_bytes
                               + (b_node.size + b_e.size) * 4),
        )

        kernel = functools.partial(attention_v1_kernel, tj=tj_sel, head_dim=D,
                                   inv_sqrt_d=float(1.0 / math.sqrt(D)),
                                   dense_e_out=dense)

        x_new, e_new = pl.pallas_call(
            kernel,
            out_shape=(jax.ShapeDtypeStruct((B, N, D), x_out_dtype), e_out_shape),
            grid_spec=pltpu.PrefetchScalarGridSpec(
                num_scalar_prefetch=0,
                grid=(B, nj_tiles),
                in_specs=[
                    pl.BlockSpec((1, N, H), lambda b, j: (b, 0, 0)),             # x (resident over j)
                    pl.BlockSpec((1, N, tj_sel, H), lambda b, j: (b, 0, j, 0)),  # e column tile
                    pl.BlockSpec((1, N, 1), lambda b, j: (b, 0, 0)),             # row mask
                    pl.BlockSpec((1, tj_sel, 1), lambda b, j: (b, j, 0)),        # column mask tile
                    pl.BlockSpec((H, 5 * D), lambda b, j: (0, 0)),               # fused node weights
                    pl.BlockSpec((1, 5 * D), lambda b, j: (0, 0)),
                    pl.BlockSpec((H, D), lambda b, j: (0, 0)),                   # edge weights
                    pl.BlockSpec((1, D), lambda b, j: (0, 0)),
                ],
                out_specs=[
                    pl.BlockSpec((1, N, D), lambda b, j: (b, 0, 0)),             # x_new (acc over j)
                    e_out_spec,                                                  # e_new column tile
                ],
                scratch_shapes=[pltpu.VMEM((N, D), jnp.float32) for _ in range(6)],
            ),
            compiler_params=pltpu.CompilerParams(
                dimension_semantics=("parallel", "arbitrary"),
                vmem_limit_bytes=int(vmem_limit_bytes),
            ),
            cost_estimate=cost,
        )(xc, ec, mask3, mask3, w_node, b_node, w_e, b_e)

        if dense:
            e_new = e_new.reshape(B, N, N, D)    # free (row-major identical layout)
        return x_new, e_new

    # Build the ordered list of attempts: lane-dense first (biggest lever), then
    # the proven 4-D-output path as a guaranteed fallback.
    attempts = []
    if want_dense:
        tj_d = tj if tj is not None else _pick_tj(N, H, D, in_bytes, e_out_bytes,
                                                  x_out_bytes, budget, True)
        if (tj_d is not None and N % tj_d == 0 and (tj_d % 8 == 0 or tj_d == N)
                and (tj_d * D) % _LANE == 0):
            attempts.append((True, int(tj_d)))
    tj_s = tj if tj is not None else _pick_tj(N, H, D, in_bytes, e_out_bytes,
                                              x_out_bytes, budget, False)
    if tj_s is not None and N % tj_s == 0 and (tj_s % 8 == 0 or tj_s == N):
        attempts.append((False, int(tj_s)))
    if not attempts:
        raise ValueError(f"no valid column tile for N={N}, D={D}")

    last_err = None
    for dense, tj_sel in attempts:
        try:
            return run(dense, tj_sel)
        except Exception as err:   # e.g. Mosaic rejects the lane-dense shape cast
            last_err = err
            continue
    raise last_err


def attention_v1_reference(x, e, node_mask, W, Bias):
    # Faithful pure-JAX mirror of the PyTorch forward (including the redundant masks).
    D = W.shape[-1]
    xm = node_mask[..., None]                     # (B, N, 1)
    em1 = xm[:, :, None, :]                       # (B, N, 1, 1)
    em2 = xm[:, None, :, :]                       # (B, 1, N, 1)

    def lin(t, i):
        return jnp.dot(t, W[i]) + Bias[i, 0]

    Q = lin(x, 0) * xm
    K = lin(x, 1) * xm
    V = lin(x, 3) * xm
    E = lin(e, 2) * em1 * em2
    Ni = lin(x, 4)[:, :, None, :] * em1
    Nj = lin(x, 5)[:, None, :, :] * em2
    e_new = (Ni + Nj + E) * em1 * em2
    att = (Q[:, :, None, :] * e_new * K[:, None, :, :]).sum(-1) / jnp.float32(math.sqrt(D))
    am = (node_mask[:, None, :] * node_mask[:, :, None]) != 0
    att = jnp.where(am, att, jnp.float32(-1e9))
    att = jax.nn.softmax(att, axis=1)
    x_new = jnp.einsum("bij,bjd->bid", att, V) * xm
    return x_new, e_new


if __name__ == "__main__":
    B, N, H, D = 2, 8, 32, 16

    key = jax.random.PRNGKey(0)
    kx, ke, kw, kb = jax.random.split(key, 4)

    x = jax.random.normal(kx, (B, N, H), dtype=jnp.float32)
    e = jax.random.normal(ke, (B, N, N, H), dtype=jnp.float32)

    # masks: batch 0 fully valid, batch 1 has last 3 nodes masked out.
    lengths = jnp.array([8, 5])
    node_mask = (jnp.arange(N)[None, :] < lengths[:, None]).astype(jnp.float32)  # (B, N)

    # Stacked parameters [Q, K, E, V, Ni, Nj]; W is (in, out).
    W = 0.1 * jax.random.normal(kw, (6, H, D), dtype=jnp.float32)
    Bias = 0.1 * jax.random.normal(kb, (6, 1, D), dtype=jnp.float32)

    # Feed bf16 activations so the kernel's HBM streams are genuinely half-width.
    x_bf = x.astype(jnp.bfloat16)
    e_bf = e.astype(jnp.bfloat16)

    x_out, e_out = attention_v1_forward(x_bf, e_bf, node_mask, W, Bias)
    jax.block_until_ready((x_out, e_out))

    # Reference on the same bf16-rounded operands (kernel matmuls run in bf16 with
    # f32 accumulation), computed in f32.
    x_r = x_bf.astype(jnp.float32)
    e_r = e_bf.astype(jnp.float32)
    W_r = W.astype(jnp.bfloat16).astype(jnp.float32)
    x_ref, e_ref = attention_v1_reference(x_r, e_r, node_mask, W_r, Bias)

    x_err = float(jnp.max(jnp.abs(x_out.astype(jnp.float32) - x_ref)))
    e_err = float(jnp.max(jnp.abs(e_out.astype(jnp.float32) - e_ref)))
    assert x_err < 2e-3, ("x mismatch", x_err)
    # e_new is stored in bf16 (perf review), so compare at bf16 tolerance.
    assert e_err < 2.5e-2, ("e mismatch", e_err)

    print("KERNEL_OK")
</pallas_src>

<mosaic_0001>
module attributes {stable_mosaic.version = 11 : i64} {
  func.func @attention_v1_kernel(%arg0: i32, %arg1: i32, %arg2: memref<1x8x32xbf16, #tpu.memory_space<vmem>>, %arg3: memref<1x8x8x32xbf16, #tpu.memory_space<vmem>>, %arg4: memref<1x8x1xf32, #tpu.memory_space<vmem>>, %arg5: memref<1x8x1xf32, #tpu.memory_space<vmem>>, %arg6: memref<32x80xbf16, #tpu.memory_space<vmem>>, %arg7: memref<1x80xf32, #tpu.memory_space<vmem>>, %arg8: memref<32x16xbf16, #tpu.memory_space<vmem>>, %arg9: memref<1x16xf32, #tpu.memory_space<vmem>>, %arg10: memref<1x8x16xf32, #tpu.memory_space<vmem>>, %arg11: memref<1x8x128xbf16, #tpu.memory_space<vmem>>, %arg12: memref<8x16xf32, #tpu.memory_space<vmem>>, %arg13: memref<8x16xf32, #tpu.memory_space<vmem>>, %arg14: memref<8x16xf32, #tpu.memory_space<vmem>>, %arg15: memref<8x16xf32, #tpu.memory_space<vmem>>, %arg16: memref<8x16xf32, #tpu.memory_space<vmem>>, %arg17: memref<8x16xf32, #tpu.memory_space<vmem>>) attributes {dimension_semantics = [#tpu.dimension_semantics<parallel>, #tpu.dimension_semantics<arbitrary>], iteration_bounds = array<i64: 2, 1>, scalar_prefetch = 0 : i64, scratch_operands = 6 : i64, tpu.core_type = #tpu.core_type<tc>, window_params = [{transform_indices = @transform_0, window_bounds = array<i64: 1, 8, 32>}, {transform_indices = @transform_1, window_bounds = array<i64: 1, 8, 8, 32>}, {transform_indices = @transform_2, window_bounds = array<i64: 1, 8, 1>}, {transform_indices = @transform_3, window_bounds = array<i64: 1, 8, 1>}, {pipeline_mode = #tpu.pipeline_mode<synchronous>, transform_indices = @transform_4, window_bounds = array<i64: 32, 80>}, {pipeline_mode = #tpu.pipeline_mode<synchronous>, transform_indices = @transform_5, window_bounds = array<i64: 1, 80>}, {pipeline_mode = #tpu.pipeline_mode<synchronous>, transform_indices = @transform_6, window_bounds = array<i64: 32, 16>}, {pipeline_mode = #tpu.pipeline_mode<synchronous>, transform_indices = @transform_7, window_bounds = array<i64: 1, 16>}, {transform_indices = @transform_8, window_bounds = array<i64: 1, 8, 16>}, {transform_indices = @transform_9, window_bounds = array<i64: 1, 8, 128>}]} {
    %c0 = arith.constant 0 : index
    %c0_0 = arith.constant 0 : index
    %c0_1 = arith.constant 0 : index
    %0 = vector.load %arg4[%c0, %c0_0, %c0_1] : memref<1x8x1xf32, #tpu.memory_space<vmem>>, vector<1x8x1xf32>
    %1 = vector.shape_cast %0 : vector<1x8x1xf32> to vector<8x1xf32>
    %c0_2 = arith.constant 0 : index
    %c0_3 = arith.constant 0 : index
    %c0_4 = arith.constant 0 : index
    %2 = vector.load %arg5[%c0_2, %c0_3, %c0_4] : memref<1x8x1xf32, #tpu.memory_space<vmem>>, vector<1x8x1xf32>
    %3 = vector.shape_cast %2 : vector<1x8x1xf32> to vector<8x1xf32>
    %c0_i32 = arith.constant 0 : i32
    %4 = arith.cmpi eq, %arg1, %c0_i32 : i32
    %5 = arith.extui %4 : i1 to i32
    %c0_i32_5 = arith.constant 0 : i32
    %6 = arith.cmpi ne, %5, %c0_i32_5 : i32
    scf.if %6 {
      %c0_36 = arith.constant 0 : index
      %c0_37 = arith.constant 0 : index
      %c0_38 = arith.constant 0 : index
      %76 = vector.load %arg2[%c0_36, %c0_37, %c0_38] : memref<1x8x32xbf16, #tpu.memory_space<vmem>>, vector<1x8x32xbf16>
      %77 = vector.shape_cast %76 : vector<1x8x32xbf16> to vector<8x32xbf16>
      %c0_39 = arith.constant 0 : index
      %c0_40 = arith.constant 0 : index
      %78 = vector.load %arg6[%c0_39, %c0_40] : memref<32x80xbf16, #tpu.memory_space<vmem>>, vector<32x80xbf16>
      %cst_41 = arith.constant dense<0.000000e+00> : vector<8x80xf32>
      %79 = tpu.matmul %77, %78, %cst_41 {dimension_numbers = #tpu.dot_dimension_numbers<[1], [0], [0], [1], [0, 0, 1, 1], [], []>} : vector<8x32xbf16>, vector<32x80xbf16>, vector<8x80xf32> -> vector<8x80xf32>
      %c0_42 = arith.constant 0 : index
      %c0_43 = arith.constant 0 : index
      %80 = vector.load %arg7[%c0_42, %c0_43] : memref<1x80xf32, #tpu.memory_space<vmem>>, vector<1x80xf32>
      %81 = vector.broadcast %80 : vector<1x80xf32> to vector<8x80xf32>
      %82 = arith.addf %79, %81 : vector<8x80xf32>
      %83 = vector.extract_strided_slice %82 {offsets = [0, 0], sizes = [8, 16], strides = [1, 1]} : vector<8x80xf32> to vector<8x16xf32>
      %cst_44 = arith.constant 2.500000e-01 : f32
      %84 = vector.broadcast %cst_44 : f32 to vector<8x1xf32>
      %85 = arith.mulf %1, %84 : vector<8x1xf32>
      %86 = vector.broadcast %85 : vector<8x1xf32> to vector<8x16xf32>
      %87 = arith.mulf %83, %86 : vector<8x16xf32>
      %c0_45 = arith.constant 0 : index
      %c0_46 = arith.constant 0 : index
      %88 = vector.load %arg12[%c0_45, %c0_46] : memref<8x16xf32, #tpu.memory_space<vmem>>, vector<8x16xf32>
      tpu.vector_store %arg12[%c0_45, %c0_46], %87 {strides = array<i32>} : memref<8x16xf32, #tpu.memory_space<vmem>>, vector<8x16xf32>,
      %89 = vector.extract_strided_slice %82 {offsets = [0, 16], sizes = [8, 16], strides = [1, 1]} : vector<8x80xf32> to vector<8x16xf32>
      %c0_47 = arith.constant 0 : index
      %c0_48 = arith.constant 0 : index
      %90 = vector.load %arg13[%c0_47, %c0_48] : memref<8x16xf32, #tpu.memory_space<vmem>>, vector<8x16xf32>
      tpu.vector_store %arg13[%c0_47, %c0_48], %89 {strides = array<i32>} : memref<8x16xf32, #tpu.memory_space<vmem>>, vector<8x16xf32>,
      %91 = vector.extract_strided_slice %82 {offsets = [0, 32], sizes = [8, 16], strides = [1, 1]} : vector<8x80xf32> to vector<8x16xf32>
      %92 = vector.broadcast %1 : vector<8x1xf32> to vector<8x16xf32>
      %93 = arith.mulf %91, %92 : vector<8x16xf32>
      %c0_49 = arith.constant 0 : index
      %c0_50 = arith.constant 0 : index
      %94 = vector.load %arg14[%c0_49, %c0_50] : memref<8x16xf32, #tpu.memory_space<vmem>>, vector<8x16xf32>
      tpu.vector_store %arg14[%c0_49, %c0_50], %93 {strides = array<i32>} : memref<8x16xf32, #tpu.memory_space<vmem>>, vector<8x16xf32>,
      %95 = vector.extract_strided_slice %82 {offsets = [0, 48], sizes = [8, 16], strides = [1, 1]} : vector<8x80xf32> to vector<8x16xf32>
      %c0_51 = arith.constant 0 : index
      %c0_52 = arith.constant 0 : index
      %96 = vector.load %arg15[%c0_51, %c0_52] : memref<8x16xf32, #tpu.memory_space<vmem>>, vector<8x16xf32>
      tpu.vector_store %arg15[%c0_51, %c0_52], %95 {strides = array<i32>} : memref<8x16xf32, #tpu.memory_space<vmem>>, vector<8x16xf32>,
      %97 = vector.extract_strided_slice %82 {offsets = [0, 64], sizes = [8, 16], strides = [1, 1]} : vector<8x80xf32> to vector<8x16xf32>
      %c0_53 = arith.constant 0 : index
      %c0_54 = arith.constant 0 : index
      %98 = vector.load %arg16[%c0_53, %c0_54] : memref<8x16xf32, #tpu.memory_space<vmem>>, vector<8x16xf32>
      tpu.vector_store %arg16[%c0_53, %c0_54], %97 {strides = array<i32>} : memref<8x16xf32, #tpu.memory_space<vmem>>, vector<8x16xf32>,
      %cst_55 = arith.constant 0.000000e+00 : f32
      %99 = vector.broadcast %cst_55 : f32 to vector<8x16xf32>
      %c0_56 = arith.constant 0 : index
      %c0_57 = arith.constant 0 : index
      %100 = vector.load %arg17[%c0_56, %c0_57] : memref<8x16xf32, #tpu.memory_space<vmem>>, vector<8x16xf32>
      tpu.vector_store %arg17[%c0_56, %c0_57], %99 {strides = array<i32>} : memref<8x16xf32, #tpu.memory_space<vmem>>, vector<8x16xf32>,
    } else {
    }
    %c8_i32 = arith.constant 8 : i32
    %7 = arith.muli %arg1, %c8_i32 : i32
    %8 = tpu.assume_multiple %7, 8 : i32
    %9 = arith.index_cast %8 : i32 to index
    %c0_6 = arith.constant 0 : index
    %10 = vector.load %arg16[%9, %c0_6] : memref<8x16xf32, #tpu.memory_space<vmem>>, vector<8x16xf32>
    %11 = arith.index_cast %8 : i32 to index
    %c0_7 = arith.constant 0 : index
    %12 = vector.load %arg13[%11, %c0_7] : memref<8x16xf32, #tpu.memory_space<vmem>>, vector<8x16xf32>
    %13 = arith.index_cast %8 : i32 to index
    %c0_8 = arith.constant 0 : index
    %14 = vector.load %arg14[%13, %c0_8] : memref<8x16xf32, #tpu.memory_space<vmem>>, vector<8x16xf32>
    %c0_9 = arith.constant 0 : index
    %c0_10 = arith.constant 0 : index
    %c0_11 = arith.constant 0 : index
    %c0_12 = arith.constant 0 : index
    %15 = vector.load %arg3[%c0_9, %c0_10, %c0_11, %c0_12] : memref<1x8x8x32xbf16, #tpu.memory_space<vmem>>, vector<1x8x8x32xbf16>
    %16 = vector.shape_cast %15 : vector<1x8x8x32xbf16> to vector<8x8x32xbf16>
    %17 = vector.shape_cast %16 : vector<8x8x32xbf16> to vector<64x32xbf16>
    %c0_13 = arith.constant 0 : index
    %c0_14 = arith.constant 0 : index
    %18 = vector.load %arg8[%c0_13, %c0_14] : memref<32x16xbf16, #tpu.memory_space<vmem>>, vector<32x16xbf16>
    %cst = arith.constant dense<0.000000e+00> : vector<64x16xf32>
    %19 = tpu.matmul %17, %18, %cst {dimension_numbers = #tpu.dot_dimension_numbers<[1], [0], [0], [1], [0, 0, 1, 1], [], []>} : vector<64x32xbf16>, vector<32x16xbf16>, vector<64x16xf32> -> vector<64x16xf32>
    %c0_15 = arith.constant 0 : index
    %c0_16 = arith.constant 0 : index
    %20 = vector.load %arg9[%c0_15, %c0_16] : memref<1x16xf32, #tpu.memory_space<vmem>>, vector<1x16xf32>
    %21 = vector.broadcast %20 : vector<1x16xf32> to vector<64x16xf32>
    %22 = arith.addf %19, %21 : vector<64x16xf32>
    %23 = vector.shape_cast %22 : vector<64x16xf32> to vector<8x8x16xf32>
    %24 = vector.shape_cast %1 : vector<8x1xf32> to vector<8x1x1xf32>
    %25 = vector.shape_cast %3 : vector<8x1xf32> to vector<1x8x1xf32>
    %26 = vector.broadcast %24 : vector<8x1x1xf32> to vector<8x8x1xf32>
    %27 = vector.broadcast %25 : vector<1x8x1xf32> to vector<8x8x1xf32>
    %28 = arith.mulf %26, %27 : vector<8x8x1xf32>
    %c0_17 = arith.constant 0 : index
    %c0_18 = arith.constant 0 : index
    %29 = vector.load %arg15[%c0_17, %c0_18] : memref<8x16xf32, #tpu.memory_space<vmem>>, vector<8x16xf32>
    %30 = vector.shape_cast %29 : vector<8x16xf32> to vector<8x1x16xf32>
    %31 = vector.shape_cast %10 : vector<8x16xf32> to vector<1x8x16xf32>
    %32 = vector.broadcast %30 : vector<8x1x16xf32> to vector<8x8x16xf32>
    %33 = vector.broadcast %31 : vector<1x8x16xf32> to vector<8x8x16xf32>
    %34 = arith.addf %32, %33 : vector<8x8x16xf32>
    %35 = arith.addf %34, %23 : vector<8x8x16xf32>
    %36 = vector.broadcast %28 : vector<8x8x1xf32> to vector<8x8x16xf32>
    %37 = arith.mulf %35, %36 : vector<8x8x16xf32>
    %c0_19 = arith.constant 0 : index
    %c0_20 = arith.constant 0 : index
    %38 = vector.load %arg12[%c0_19, %c0_20] : memref<8x16xf32, #tpu.memory_space<vmem>>, vector<8x16xf32>
    %39 = vector.shape_cast %38 : vector<8x16xf32> to vector<8x1x16xf32>
    %40 = vector.broadcast %39 : vector<8x1x16xf32> to vector<8x8x16xf32>
    %41 = arith.mulf %40, %37 : vector<8x8x16xf32>
    %42 = vector.shape_cast %12 : vector<8x16xf32> to vector<1x8x16xf32>
    %43 = vector.broadcast %42 : vector<1x8x16xf32> to vector<8x8x16xf32>
    %44 = arith.mulf %41, %43 : vector<8x8x16xf32>
    %cst_21 = arith.constant dense<0.000000e+00> : vector<8x8xf32>
    %45 = vector.multi_reduction <add>, %44, %cst_21 [2] : vector<8x8x16xf32> to vector<8x8xf32>
    %46 = tpu.transpose %3, [1, 0] : vector<8x1xf32> -> vector<1x8xf32>
    %47 = vector.broadcast %1 : vector<8x1xf32> to vector<8x8xf32>
    %48 = vector.broadcast %46 : vector<1x8xf32> to vector<8x8xf32>
    %49 = arith.mulf %47, %48 : vector<8x8xf32>
    %cst_22 = arith.constant 0.000000e+00 : f32
    %50 = vector.broadcast %cst_22 : f32 to vector<8x8xf32>
    %51 = arith.cmpf one, %49, %50 : vector<8x8xf32>
    %cst_23 = arith.constant -1.000000e+09 : f32
    %52 = vector.broadcast %cst_23 : f32 to vector<8x8xf32>
    %53 = arith.select %51, %45, %52 : vector<8x8xi1>, vector<8x8xf32>
    %cst_24 = arith.constant dense<0xFF800000> : vector<8xf32>
    %54 = vector.multi_reduction <maximumf>, %53, %cst_24 [0] : vector<8x8xf32> to vector<8xf32>
    %55 = vector.shape_cast %54 : vector<8xf32> to vector<1x8xf32>
    %56 = vector.broadcast %55 : vector<1x8xf32> to vector<8x8xf32>
    %57 = arith.subf %53, %56 : vector<8x8xf32>
    %58 = math.exp %57 : vector<8x8xf32>
    %cst_25 = arith.constant dense<0.000000e+00> : vector<8xf32>
    %59 = vector.multi_reduction <add>, %58, %cst_25 [0] : vector<8x8xf32> to vector<8xf32>
    %60 = vector.shape_cast %59 : vector<8xf32> to vector<1x8xf32>
    %61 = tpu.reciprocal %60 : vector<1x8xf32> -> vector<1x8xf32>
    %62 = vector.broadcast %61 : vector<1x8xf32> to vector<8x8xf32>
    %63 = arith.mulf %58, %62 : vector<8x8xf32>
    %c0_26 = arith.constant 0 : index
    %c0_27 = arith.constant 0 : index
    %64 = vector.load %arg17[%c0_26, %c0_27] : memref<8x16xf32, #tpu.memory_space<vmem>>, vector<8x16xf32>
    %cst_28 = arith.constant dense<0.000000e+00> : vector<8x16xf32>
    %65 = tpu.matmul %63, %14, %cst_28 {dimension_numbers = #tpu.dot_dimension_numbers<[1], [0], [0], [1], [0, 0, 1, 1], [], []>} : vector<8x8xf32>, vector<8x16xf32>, vector<8x16xf32> -> vector<8x16xf32>
    %66 = arith.addf %64, %65 : vector<8x16xf32>
    %c0_29 = arith.constant 0 : index
    %c0_30 = arith.constant 0 : index
    %67 = vector.load %arg17[%c0_29, %c0_30] : memref<8x16xf32, #tpu.memory_space<vmem>>, vector<8x16xf32>
    tpu.vector_store %arg17[%c0_29, %c0_30], %66 {strides = array<i32>} : memref<8x16xf32, #tpu.memory_space<vmem>>, vector<8x16xf32>,
    %c0_i32_31 = arith.constant 0 : i32
    %68 = arith.cmpi eq, %arg1, %c0_i32_31 : i32
    %69 = arith.extui %68 : i1 to i32
    %c0_i32_32 = arith.constant 0 : i32
    %70 = arith.cmpi ne, %69, %c0_i32_32 : i32
    scf.if %70 {
      %c0_36 = arith.constant 0 : index
      %c0_37 = arith.constant 0 : index
      %76 = vector.load %arg17[%c0_36, %c0_37] : memref<8x16xf32, #tpu.memory_space<vmem>>, vector<8x16xf32>
      %77 = vector.broadcast %1 : vector<8x1xf32> to vector<8x16xf32>
      %78 = arith.mulf %76, %77 : vector<8x16xf32>
      %c0_38 = arith.constant 0 : index
      %c0_39 = arith.constant 0 : index
      %c0_40 = arith.constant 0 : index
      %79 = vector.load %arg10[%c0_38, %c0_39, %c0_40] : memref<1x8x16xf32, #tpu.memory_space<vmem>>, vector<1x8x16xf32>
      %80 = vector.shape_cast %79 : vector<1x8x16xf32> to vector<8x16xf32>
      %81 = vector.shape_cast %78 : vector<8x16xf32> to vector<1x8x16xf32>
      tpu.vector_store %arg10[%c0_38, %c0_39, %c0_40], %81 {strides = array<i32>} : memref<1x8x16xf32, #tpu.memory_space<vmem>>, vector<1x8x16xf32>,
    } else {
    }
    %71 = arith.truncf %37 : vector<8x8x16xf32> to vector<8x8x16xbf16>
    %72 = vector.shape_cast %71 : vector<8x8x16xbf16> to vector<8x128xbf16>
    %c0_33 = arith.constant 0 : index
    %c0_34 = arith.constant 0 : index
    %c0_35 = arith.constant 0 : index
    %73 = vector.load %arg11[%c0_33, %c0_34, %c0_35] : memref<1x8x128xbf16, #tpu.memory_space<vmem>>, vector<1x8x128xbf16>
    %74 = vector.shape_cast %73 : vector<1x8x128xbf16> to vector<8x128xbf16>
    %75 = vector.shape_cast %72 : vector<8x128xbf16> to vector<1x8x128xbf16>
    tpu.vector_store %arg11[%c0_33, %c0_34, %c0_35], %75 {strides = array<i32>} : memref<1x8x128xbf16, #tpu.memory_space<vmem>>, vector<1x8x128xbf16>,
    return
  }
  func.func @transform_0(%arg0: i32, %arg1: i32) -> (i32, i32, i32) {
    %c0_i32 = arith.constant 0 : i32
    %c0_i32_0 = arith.constant 0 : i32
    %c0_i32_1 = arith.constant 0 : i32
    return %arg0, %c0_i32, %c0_i32_0 : i32, i32, i32
  }
  func.func @transform_1(%arg0: i32, %arg1: i32) -> (i32, i32, i32, i32) {
    %c0_i32 = arith.constant 0 : i32
    %c0_i32_0 = arith.constant 0 : i32
    %c0_i32_1 = arith.constant 0 : i32
    return %arg0, %c0_i32, %arg1, %c0_i32_0 : i32, i32, i32, i32
  }
  func.func @transform_2(%arg0: i32, %arg1: i32) -> (i32, i32, i32) {
    %c0_i32 = arith.constant 0 : i32
    %c0_i32_0 = arith.constant 0 : i32
    %c0_i32_1 = arith.constant 0 : i32
    return %arg0, %c0_i32, %c0_i32_0 : i32, i32, i32
  }
  func.func @transform_3(%arg0: i32, %arg1: i32) -> (i32, i32, i32) {
    %c0_i32 = arith.constant 0 : i32
    %c0_i32_0 = arith.constant 0 : i32
    return %arg0, %arg1, %c0_i32 : i32, i32, i32
  }
  func.func @transform_4(%arg0: i32, %arg1: i32) -> (i32, i32) {
    %c0_i32 = arith.constant 0 : i32
    %c0_i32_0 = arith.constant 0 : i32
    %c0_i32_1 = arith.constant 0 : i32
    return %c0_i32, %c0_i32_0 : i32, i32
  }
  func.func @transform_5(%arg0: i32, %arg1: i32) -> (i32, i32) {
    %c0_i32 = arith.constant 0 : i32
    %c0_i32_0 = arith.constant 0 : i32
    %c0_i32_1 = arith.constant 0 : i32
    return %c0_i32, %c0_i32_0 : i32, i32
  }
  func.func @transform_6(%arg0: i32, %arg1: i32) -> (i32, i32) {
    %c0_i32 = arith.constant 0 : i32
    %c0_i32_0 = arith.constant 0 : i32
    %c0_i32_1 = arith.constant 0 : i32
    return %c0_i32, %c0_i32_0 : i32, i32
  }
  func.func @transform_7(%arg0: i32, %arg1: i32) -> (i32, i32) {
    %c0_i32 = arith.constant 0 : i32
    %c0_i32_0 = arith.constant 0 : i32
    %c0_i32_1 = arith.constant 0 : i32
    return %c0_i32, %c0_i32_0 : i32, i32
  }
  func.func @transform_8(%arg0: i32, %arg1: i32) -> (i32, i32, i32) {
    %c0_i32 = arith.constant 0 : i32
    %c0_i32_0 = arith.constant 0 : i32
    %c0_i32_1 = arith.constant 0 : i32
    return %arg0, %c0_i32, %c0_i32_0 : i32, i32, i32
  }
  func.func @transform_9(%arg0: i32, %arg1: i32) -> (i32, i32, i32) {
    %c0_i32 = arith.constant 0 : i32
    %c0_i32_0 = arith.constant 0 : i32
    return %arg0, %c0_i32, %arg1 : i32, i32, i32
  }
}

module attributes {stable_mosaic.version = 11 : i64} {
  func.func @attention_v1_kernel(%arg0: i32, %arg1: i32, %arg2: memref<1x8x32xbf16, #tpu.memory_space<vmem>>, %arg3: memref<1x8x8x32xbf16, #tpu.memory_space<vmem>>, %arg4: memref<1x8x1xf32, #tpu.memory_space<vmem>>, %arg5: memref<1x8x1xf32, #tpu.memory_space<vmem>>, %arg6: memref<32x80xbf16, #tpu.memory_space<vmem>>, %arg7: memref<1x80xf32, #tpu.memory_space<vmem>>, %arg8: memref<32x16xbf16, #tpu.memory_space<vmem>>, %arg9: memref<1x16xf32, #tpu.memory_space<vmem>>, %arg10: memref<1x8x16xf32, #tpu.memory_space<vmem>>, %arg11: memref<1x8x8x16xbf16, #tpu.memory_space<vmem>>, %arg12: memref<8x16xf32, #tpu.memory_space<vmem>>, %arg13: memref<8x16xf32, #tpu.memory_space<vmem>>, %arg14: memref<8x16xf32, #tpu.memory_space<vmem>>, %arg15: memref<8x16xf32, #tpu.memory_space<vmem>>, %arg16: memref<8x16xf32, #tpu.memory_space<vmem>>, %arg17: memref<8x16xf32, #tpu.memory_space<vmem>>) attributes {dimension_semantics = [#tpu.dimension_semantics<parallel>, #tpu.dimension_semantics<arbitrary>], iteration_bounds = array<i64: 2, 1>, scalar_prefetch = 0 : i64, scratch_operands = 6 : i64, tpu.core_type = #tpu.core_type<tc>, window_params = [{transform_indices = @transform_0, window_bounds = array<i64: 1, 8, 32>}, {transform_indices = @transform_1, window_bounds = array<i64: 1, 8, 8, 32>}, {transform_indices = @transform_2, window_bounds = array<i64: 1, 8, 1>}, {transform_indices = @transform_3, window_bounds = array<i64: 1, 8, 1>}, {pipeline_mode = #tpu.pipeline_mode<synchronous>, transform_indices = @transform_4, window_bounds = array<i64: 32, 80>}, {pipeline_mode = #tpu.pipeline_mode<synchronous>, transform_indices = @transform_5, window_bounds = array<i64: 1, 80>}, {pipeline_mode = #tpu.pipeline_mode<synchronous>, transform_indices = @transform_6, window_bounds = array<i64: 32, 16>}, {pipeline_mode = #tpu.pipeline_mode<synchronous>, transform_indices = @transform_7, window_bounds = array<i64: 1, 16>}, {transform_indices = @transform_8, window_bounds = array<i64: 1, 8, 16>}, {transform_indices = @transform_9, window_bounds = array<i64: 1, 8, 8, 16>}]} {
    %c0 = arith.constant 0 : index
    %c0_0 = arith.constant 0 : index
    %c0_1 = arith.constant 0 : index
    %0 = vector.load %arg4[%c0, %c0_0, %c0_1] : memref<1x8x1xf32, #tpu.memory_space<vmem>>, vector<1x8x1xf32>
    %1 = vector.shape_cast %0 : vector<1x8x1xf32> to vector<8x1xf32>
    %c0_2 = arith.constant 0 : index
    %c0_3 = arith.constant 0 : index
    %c0_4 = arith.constant 0 : index
    %2 = vector.load %arg5[%c0_2, %c0_3, %c0_4] : memref<1x8x1xf32, #tpu.memory_space<vmem>>, vector<1x8x1xf32>
    %3 = vector.shape_cast %2 : vector<1x8x1xf32> to vector<8x1xf32>
    %c0_i32 = arith.constant 0 : i32
    %4 = arith.cmpi eq, %arg1, %c0_i32 : i32
    %5 = arith.extui %4 : i1 to i32
    %c0_i32_5 = arith.constant 0 : i32
    %6 = arith.cmpi ne, %5, %c0_i32_5 : i32
    scf.if %6 {
      %c0_37 = arith.constant 0 : index
      %c0_38 = arith.constant 0 : index
      %c0_39 = arith.constant 0 : index
      %75 = vector.load %arg2[%c0_37, %c0_38, %c0_39] : memref<1x8x32xbf16, #tpu.memory_space<vmem>>, vector<1x8x32xbf16>
      %76 = vector.shape_cast %75 : vector<1x8x32xbf16> to vector<8x32xbf16>
      %c0_40 = arith.constant 0 : index
      %c0_41 = arith.constant 0 : index
      %77 = vector.load %arg6[%c0_40, %c0_41] : memref<32x80xbf16, #tpu.memory_space<vmem>>, vector<32x80xbf16>
      %cst_42 = arith.constant dense<0.000000e+00> : vector<8x80xf32>
      %78 = tpu.matmul %76, %77, %cst_42 {dimension_numbers = #tpu.dot_dimension_numbers<[1], [0], [0], [1], [0, 0, 1, 1], [], []>} : vector<8x32xbf16>, vector<32x80xbf16>, vector<8x80xf32> -> vector<8x80xf32>
      %c0_43 = arith.constant 0 : index
      %c0_44 = arith.constant 0 : index
      %79 = vector.load %arg7[%c0_43, %c0_44] : memref<1x80xf32, #tpu.memory_space<vmem>>, vector<1x80xf32>
      %80 = vector.broadcast %79 : vector<1x80xf32> to vector<8x80xf32>
      %81 = arith.addf %78, %80 : vector<8x80xf32>
      %82 = vector.extract_strided_slice %81 {offsets = [0, 0], sizes = [8, 16], strides = [1, 1]} : vector<8x80xf32> to vector<8x16xf32>
      %cst_45 = arith.constant 2.500000e-01 : f32
      %83 = vector.broadcast %cst_45 : f32 to vector<8x1xf32>
      %84 = arith.mulf %1, %83 : vector<8x1xf32>
      %85 = vector.broadcast %84 : vector<8x1xf32> to vector<8x16xf32>
      %86 = arith.mulf %82, %85 : vector<8x16xf32>
      %c0_46 = arith.constant 0 : index
      %c0_47 = arith.constant 0 : index
      %87 = vector.load %arg12[%c0_46, %c0_47] : memref<8x16xf32, #tpu.memory_space<vmem>>, vector<8x16xf32>
      tpu.vector_store %arg12[%c0_46, %c0_47], %86 {strides = array<i32>} : memref<8x16xf32, #tpu.memory_space<vmem>>, vector<8x16xf32>,
      %88 = vector.extract_strided_slice %81 {offsets = [0, 16], sizes = [8, 16], strides = [1, 1]} : vector<8x80xf32> to vector<8x16xf32>
      %c0_48 = arith.constant 0 : index
      %c0_49 = arith.constant 0 : index
      %89 = vector.load %arg13[%c0_48, %c0_49] : memref<8x16xf32, #tpu.memory_space<vmem>>, vector<8x16xf32>
      tpu.vector_store %arg13[%c0_48, %c0_49], %88 {strides = array<i32>} : memref<8x16xf32, #tpu.memory_space<vmem>>, vector<8x16xf32>,
      %90 = vector.extract_strided_slice %81 {offsets = [0, 32], sizes = [8, 16], strides = [1, 1]} : vector<8x80xf32> to vector<8x16xf32>
      %91 = vector.broadcast %1 : vector<8x1xf32> to vector<8x16xf32>
      %92 = arith.mulf %90, %91 : vector<8x16xf32>
      %c0_50 = arith.constant 0 : index
      %c0_51 = arith.constant 0 : index
      %93 = vector.load %arg14[%c0_50, %c0_51] : memref<8x16xf32, #tpu.memory_space<vmem>>, vector<8x16xf32>
      tpu.vector_store %arg14[%c0_50, %c0_51], %92 {strides = array<i32>} : memref<8x16xf32, #tpu.memory_space<vmem>>, vector<8x16xf32>,
      %94 = vector.extract_strided_slice %81 {offsets = [0, 48], sizes = [8, 16], strides = [1, 1]} : vector<8x80xf32> to vector<8x16xf32>
      %c0_52 = arith.constant 0 : index
      %c0_53 = arith.constant 0 : index
      %95 = vector.load %arg15[%c0_52, %c0_53] : memref<8x16xf32, #tpu.memory_space<vmem>>, vector<8x16xf32>
      tpu.vector_store %arg15[%c0_52, %c0_53], %94 {strides = array<i32>} : memref<8x16xf32, #tpu.memory_space<vmem>>, vector<8x16xf32>,
      %96 = vector.extract_strided_slice %81 {offsets = [0, 64], sizes = [8, 16], strides = [1, 1]} : vector<8x80xf32> to vector<8x16xf32>
      %c0_54 = arith.constant 0 : index
      %c0_55 = arith.constant 0 : index
      %97 = vector.load %arg16[%c0_54, %c0_55] : memref<8x16xf32, #tpu.memory_space<vmem>>, vector<8x16xf32>
      tpu.vector_store %arg16[%c0_54, %c0_55], %96 {strides = array<i32>} : memref<8x16xf32, #tpu.memory_space<vmem>>, vector<8x16xf32>,
      %cst_56 = arith.constant 0.000000e+00 : f32
      %98 = vector.broadcast %cst_56 : f32 to vector<8x16xf32>
      %c0_57 = arith.constant 0 : index
      %c0_58 = arith.constant 0 : index
      %99 = vector.load %arg17[%c0_57, %c0_58] : memref<8x16xf32, #tpu.memory_space<vmem>>, vector<8x16xf32>
      tpu.vector_store %arg17[%c0_57, %c0_58], %98 {strides = array<i32>} : memref<8x16xf32, #tpu.memory_space<vmem>>, vector<8x16xf32>,
    } else {
    }
    %c8_i32 = arith.constant 8 : i32
    %7 = arith.muli %arg1, %c8_i32 : i32
    %8 = tpu.assume_multiple %7, 8 : i32
    %9 = arith.index_cast %8 : i32 to index
    %c0_6 = arith.constant 0 : index
    %10 = vector.load %arg16[%9, %c0_6] : memref<8x16xf32, #tpu.memory_space<vmem>>, vector<8x16xf32>
    %11 = arith.index_cast %8 : i32 to index
    %c0_7 = arith.constant 0 : index
    %12 = vector.load %arg13[%11, %c0_7] : memref<8x16xf32, #tpu.memory_space<vmem>>, vector<8x16xf32>
    %13 = arith.index_cast %8 : i32 to index
    %c0_8 = arith.constant 0 : index
    %14 = vector.load %arg14[%13, %c0_8] : memref<8x16xf32, #tpu.memory_space<vmem>>, vector<8x16xf32>
    %c0_9 = arith.constant 0 : index
    %c0_10 = arith.constant 0 : index
    %c0_11 = arith.constant 0 : index
    %c0_12 = arith.constant 0 : index
    %15 = vector.load %arg3[%c0_9, %c0_10, %c0_11, %c0_12] : memref<1x8x8x32xbf16, #tpu.memory_space<vmem>>, vector<1x8x8x32xbf16>
    %16 = vector.shape_cast %15 : vector<1x8x8x32xbf16> to vector<8x8x32xbf16>
    %17 = vector.shape_cast %16 : vector<8x8x32xbf16> to vector<64x32xbf16>
    %c0_13 = arith.constant 0 : index
    %c0_14 = arith.constant 0 : index
    %18 = vector.load %arg8[%c0_13, %c0_14] : memref<32x16xbf16, #tpu.memory_space<vmem>>, vector<32x16xbf16>
    %cst = arith.constant dense<0.000000e+00> : vector<64x16xf32>
    %19 = tpu.matmul %17, %18, %cst {dimension_numbers = #tpu.dot_dimension_numbers<[1], [0], [0], [1], [0, 0, 1, 1], [], []>} : vector<64x32xbf16>, vector<32x16xbf16>, vector<64x16xf32> -> vector<64x16xf32>
    %c0_15 = arith.constant 0 : index
    %c0_16 = arith.constant 0 : index
    %20 = vector.load %arg9[%c0_15, %c0_16] : memref<1x16xf32, #tpu.memory_space<vmem>>, vector<1x16xf32>
    %21 = vector.broadcast %20 : vector<1x16xf32> to vector<64x16xf32>
    %22 = arith.addf %19, %21 : vector<64x16xf32>
    %23 = vector.shape_cast %22 : vector<64x16xf32> to vector<8x8x16xf32>
    %24 = vector.shape_cast %1 : vector<8x1xf32> to vector<8x1x1xf32>
    %25 = vector.shape_cast %3 : vector<8x1xf32> to vector<1x8x1xf32>
    %26 = vector.broadcast %24 : vector<8x1x1xf32> to vector<8x8x1xf32>
    %27 = vector.broadcast %25 : vector<1x8x1xf32> to vector<8x8x1xf32>
    %28 = arith.mulf %26, %27 : vector<8x8x1xf32>
    %c0_17 = arith.constant 0 : index
    %c0_18 = arith.constant 0 : index
    %29 = vector.load %arg15[%c0_17, %c0_18] : memref<8x16xf32, #tpu.memory_space<vmem>>, vector<8x16xf32>
    %30 = vector.shape_cast %29 : vector<8x16xf32> to vector<8x1x16xf32>
    %31 = vector.shape_cast %10 : vector<8x16xf32> to vector<1x8x16xf32>
    %32 = vector.broadcast %30 : vector<8x1x16xf32> to vector<8x8x16xf32>
    %33 = vector.broadcast %31 : vector<1x8x16xf32> to vector<8x8x16xf32>
    %34 = arith.addf %32, %33 : vector<8x8x16xf32>
    %35 = arith.addf %34, %23 : vector<8x8x16xf32>
    %36 = vector.broadcast %28 : vector<8x8x1xf32> to vector<8x8x16xf32>
    %37 = arith.mulf %35, %36 : vector<8x8x16xf32>
    %c0_19 = arith.constant 0 : index
    %c0_20 = arith.constant 0 : index
    %38 = vector.load %arg12[%c0_19, %c0_20] : memref<8x16xf32, #tpu.memory_space<vmem>>, vector<8x16xf32>
    %39 = vector.shape_cast %38 : vector<8x16xf32> to vector<8x1x16xf32>
    %40 = vector.broadcast %39 : vector<8x1x16xf32> to vector<8x8x16xf32>
    %41 = arith.mulf %40, %37 : vector<8x8x16xf32>
    %42 = vector.shape_cast %12 : vector<8x16xf32> to vector<1x8x16xf32>
    %43 = vector.broadcast %42 : vector<1x8x16xf32> to vector<8x8x16xf32>
    %44 = arith.mulf %41, %43 : vector<8x8x16xf32>
    %cst_21 = arith.constant dense<0.000000e+00> : vector<8x8xf32>
    %45 = vector.multi_reduction <add>, %44, %cst_21 [2] : vector<8x8x16xf32> to vector<8x8xf32>
    %46 = tpu.transpose %3, [1, 0] : vector<8x1xf32> -> vector<1x8xf32>
    %47 = vector.broadcast %1 : vector<8x1xf32> to vector<8x8xf32>
    %48 = vector.broadcast %46 : vector<1x8xf32> to vector<8x8xf32>
    %49 = arith.mulf %47, %48 : vector<8x8xf32>
    %cst_22 = arith.constant 0.000000e+00 : f32
    %50 = vector.broadcast %cst_22 : f32 to vector<8x8xf32>
    %51 = arith.cmpf one, %49, %50 : vector<8x8xf32>
    %cst_23 = arith.constant -1.000000e+09 : f32
    %52 = vector.broadcast %cst_23 : f32 to vector<8x8xf32>
    %53 = arith.select %51, %45, %52 : vector<8x8xi1>, vector<8x8xf32>
    %cst_24 = arith.constant dense<0xFF800000> : vector<8xf32>
    %54 = vector.multi_reduction <maximumf>, %53, %cst_24 [0] : vector<8x8xf32> to vector<8xf32>
    %55 = vector.shape_cast %54 : vector<8xf32> to vector<1x8xf32>
    %56 = vector.broadcast %55 : vector<1x8xf32> to vector<8x8xf32>
    %57 = arith.subf %53, %56 : vector<8x8xf32>
    %58 = math.exp %57 : vector<8x8xf32>
    %cst_25 = arith.constant dense<0.000000e+00> : vector<8xf32>
    %59 = vector.multi_reduction <add>, %58, %cst_25 [0] : vector<8x8xf32> to vector<8xf32>
    %60 = vector.shape_cast %59 : vector<8xf32> to vector<1x8xf32>
    %61 = tpu.reciprocal %60 : vector<1x8xf32> -> vector<1x8xf32>
    %62 = vector.broadcast %61 : vector<1x8xf32> to vector<8x8xf32>
    %63 = arith.mulf %58, %62 : vector<8x8xf32>
    %c0_26 = arith.constant 0 : index
    %c0_27 = arith.constant 0 : index
    %64 = vector.load %arg17[%c0_26, %c0_27] : memref<8x16xf32, #tpu.memory_space<vmem>>, vector<8x16xf32>
    %cst_28 = arith.constant dense<0.000000e+00> : vector<8x16xf32>
    %65 = tpu.matmul %63, %14, %cst_28 {dimension_numbers = #tpu.dot_dimension_numbers<[1], [0], [0], [1], [0, 0, 1, 1], [], []>} : vector<8x8xf32>, vector<8x16xf32>, vector<8x16xf32> -> vector<8x16xf32>
    %66 = arith.addf %64, %65 : vector<8x16xf32>
    %c0_29 = arith.constant 0 : index
    %c0_30 = arith.constant 0 : index
    %67 = vector.load %arg17[%c0_29, %c0_30] : memref<8x16xf32, #tpu.memory_space<vmem>>, vector<8x16xf32>
    tpu.vector_store %arg17[%c0_29, %c0_30], %66 {strides = array<i32>} : memref<8x16xf32, #tpu.memory_space<vmem>>, vector<8x16xf32>,
    %c0_i32_31 = arith.constant 0 : i32
    %68 = arith.cmpi eq, %arg1, %c0_i32_31 : i32
    %69 = arith.extui %68 : i1 to i32
    %c0_i32_32 = arith.constant 0 : i32
    %70 = arith.cmpi ne, %69, %c0_i32_32 : i32
    scf.if %70 {
      %c0_37 = arith.constant 0 : index
      %c0_38 = arith.constant 0 : index
      %75 = vector.load %arg17[%c0_37, %c0_38] : memref<8x16xf32, #tpu.memory_space<vmem>>, vector<8x16xf32>
      %76 = vector.broadcast %1 : vector<8x1xf32> to vector<8x16xf32>
      %77 = arith.mulf %75, %76 : vector<8x16xf32>
      %c0_39 = arith.constant 0 : index
      %c0_40 = arith.constant 0 : index
      %c0_41 = arith.constant 0 : index
      %78 = vector.load %arg10[%c0_39, %c0_40, %c0_41] : memref<1x8x16xf32, #tpu.memory_space<vmem>>, vector<1x8x16xf32>
      %79 = vector.shape_cast %78 : vector<1x8x16xf32> to vector<8x16xf32>
      %80 = vector.shape_cast %77 : vector<8x16xf32> to vector<1x8x16xf32>
      tpu.vector_store %arg10[%c0_39, %c0_40, %c0_41], %80 {strides = array<i32>} : memref<1x8x16xf32, #tpu.memory_space<vmem>>, vector<1x8x16xf32>,
    } else {
    }
    %71 = arith.truncf %37 : vector<8x8x16xf32> to vector<8x8x16xbf16>
    %c0_33 = arith.constant 0 : index
    %c0_34 = arith.constant 0 : index
    %c0_35 = arith.constant 0 : index
    %c0_36 = arith.constant 0 : index
    %72 = vector.load %arg11[%c0_33, %c0_34, %c0_35, %c0_36] : memref<1x8x8x16xbf16, #tpu.memory_space<vmem>>, vector<1x8x8x16xbf16>
    %73 = vector.shape_cast %72 : vector<1x8x8x16xbf16> to vector<8x8x16xbf16>
    %74 = vector.shape_cast %71 : vector<8x8x16xbf16> to vector<1x8x8x16xbf16>
    tpu.vector_store %arg11[%c0_33, %c0_34, %c0_35, %c0_36], %74 {strides = array<i32>} : memref<1x8x8x16xbf16, #tpu.memory_space<vmem>>, vector<1x8x8x16xbf16>,
    return
  }
  func.func @transform_0(%arg0: i32, %arg1: i32) -> (i32, i32, i32) {
    %c0_i32 = arith.constant 0 : i32
    %c0_i32_0 = arith.constant 0 : i32
    %c0_i32_1 = arith.constant 0 : i32
    return %arg0, %c0_i32, %c0_i32_0 : i32, i32, i32
  }
  func.func @transform_1(%arg0: i32, %arg1: i32) -> (i32, i32, i32, i32) {
    %c0_i32 = arith.constant 0 : i32
    %c0_i32_0 = arith.constant 0 : i32
    %c0_i32_1 = arith.constant 0 : i32
    return %arg0, %c0_i32, %arg1, %c0_i32_0 : i32, i32, i32, i32
  }
  func.func @transform_2(%arg0: i32, %arg1: i32) -> (i32, i32, i32) {
    %c0_i32 = arith.constant 0 : i32
    %c0_i32_0 = arith.constant 0 : i32
    %c0_i32_1 = arith.constant 0 : i32
    return %arg0, %c0_i32, %c0_i32_0 : i32, i32, i32
  }
  func.func @transform_3(%arg0: i32, %arg1: i32) -> (i32, i32, i32) {
    %c0_i32 = arith.constant 0 : i32
    %c0_i32_0 = arith.constant 0 : i32
    return %arg0, %arg1, %c0_i32 : i32, i32, i32
  }
  func.func @transform_4(%arg0: i32, %arg1: i32) -> (i32, i32) {
    %c0_i32 = arith.constant 0 : i32
    %c0_i32_0 = arith.constant 0 : i32
    %c0_i32_1 = arith.constant 0 : i32
    return %c0_i32, %c0_i32_0 : i32, i32
  }
  func.func @transform_5(%arg0: i32, %arg1: i32) -> (i32, i32) {
    %c0_i32 = arith.constant 0 : i32
    %c0_i32_0 = arith.constant 0 : i32
    %c0_i32_1 = arith.constant 0 : i32
    return %c0_i32, %c0_i32_0 : i32, i32
  }
  func.func @transform_6(%arg0: i32, %arg1: i32) -> (i32, i32) {
    %c0_i32 = arith.constant 0 : i32
    %c0_i32_0 = arith.constant 0 : i32
    %c0_i32_1 = arith.constant 0 : i32
    return %c0_i32, %c0_i32_0 : i32, i32
  }
  func.func @transform_7(%arg0: i32, %arg1: i32) -> (i32, i32) {
    %c0_i32 = arith.constant 0 : i32
    %c0_i32_0 = arith.constant 0 : i32
    %c0_i32_1 = arith.constant 0 : i32
    return %c0_i32, %c0_i32_0 : i32, i32
  }
  func.func @transform_8(%arg0: i32, %arg1: i32) -> (i32, i32, i32) {
    %c0_i32 = arith.constant 0 : i32
    %c0_i32_0 = arith.constant 0 : i32
    %c0_i32_1 = arith.constant 0 : i32
    return %arg0, %c0_i32, %c0_i32_0 : i32, i32, i32
  }
  func.func @transform_9(%arg0: i32, %arg1: i32) -> (i32, i32, i32, i32) {
    %c0_i32 = arith.constant 0 : i32
    %c0_i32_0 = arith.constant 0 : i32
    %c0_i32_1 = arith.constant 0 : i32
    return %arg0, %c0_i32, %arg1, %c0_i32_0 : i32, i32, i32, i32
  }
}

</mosaic_0001>

<llo_original>
// kernel: tpu_custom_call.1
$region0: #{tpu_custom_call.1}
  #allocation0 [shape = 'u32[]', space=smem, size = 0x4, offset = 0x4, fixed_abs, tag = 'smem constant byte address 0x4 - core index']
  #allocation1 [shape = 'u32[144,128]{1,0:T(1,128)}', space=vmem, size = 0x12000, scoped, tag = 'internal scratch']
  #allocation2 [shape = 'f32[8,16]{1,0:T(8,128)}', space=vmem, size = 0x1000, scoped, tag = 'scratch operand']
  #allocation3 [shape = 'f32[8,16]{1,0:T(8,128)}', space=vmem, size = 0x1000, scoped, tag = 'scratch operand']
  #allocation4 [shape = 'f32[8,16]{1,0:T(8,128)}', space=vmem, size = 0x1000, scoped, tag = 'scratch operand']
  #allocation5 [shape = 'f32[8,16]{1,0:T(8,128)}', space=vmem, size = 0x1000, scoped, tag = 'scratch operand']
  #allocation6 [shape = 'f32[8,16]{1,0:T(8,128)}', space=vmem, size = 0x1000, scoped, tag = 'scratch operand']
  #allocation7 [shape = 'f32[8,16]{1,0:T(8,128)}', space=vmem, size = 0x1000, scoped, tag = 'scratch operand']
  %s0 = inlined_call_operand.vmem [shape: bf16[2,8,32], index: 0, kind: input, shape index: {}]
  %s1 = inlined_call_operand.hbm [shape: bf16[2,8,8,32], index: 1, kind: input, shape index: {}]
  %s2 = inlined_call_operand.vmem [shape: f32[2,8,1], index: 2, kind: input, shape index: {}]
  %s3 = inlined_call_operand.vmem [shape: f32[2,8,1], index: 3, kind: input, shape index: {}]
  %s4 = inlined_call_operand.vmem [shape: bf16[32,80], index: 4, kind: input, shape index: {}]
  %s5 = inlined_call_operand.vmem [shape: f32[1,80], index: 5, kind: input, shape index: {}]
  %s6 = inlined_call_operand.vmem [shape: bf16[32,16], index: 6, kind: input, shape index: {}]
  %s7 = inlined_call_operand.vmem [shape: f32[1,16], index: 7, kind: input, shape index: {}]
  %s8 = inlined_call_operand.hbm [shape: f32[2,8,16], index: 8, kind: output, shape index: {0}]
  %s9 = inlined_call_operand.hbm [shape: bf16[2,8,128], index: 9, kind: output, shape index: {1}]
  %10 = xla_tuple %s8, %s9
  %s11 = sld [smem:[#allocation0]]
  $region85: #{tpu_custom_call.1} parent=0
    _
  %s13 = ssub.s32 1, %s11
  %s14 = scalar_select 0, %s13, %s11
  $region1: #{tpu_custom_call.1} parent=0
    #allocation8 [shape = 'u8[32768]{0}', space=vmem, size = 0x8000, scoped, tag = 'input window, operand 1']
    #allocation9 [shape = 's32[2]{0}', space=sflag, size = 0x8, scoped, tag = 'scoped memory for tpu_custom_call.1']
    #allocation10 [shape = 's32[2]{0}', space=sflag, size = 0x8, scoped, tag = 'scoped memory for tpu_custom_call.1']
    #allocation11 [shape = 'u8[8192]{0}', space=vmem, size = 0x2000, scoped, tag = 'output window, operand 0']
    #allocation12 [shape = 'u8[4096]{0}', space=vmem, size = 0x1000, scoped, tag = 'output window, operand 1']
    #allocation13 [shape = 's32[2]{0}', space=sflag, size = 0x8, scoped, tag = 'scoped memory for tpu_custom_call.1']
    %15 = vsyncpa [#allocation9], 0
    %s16 = scalar_lea.sflag [#allocation9], 1
    %17 = vsyncpa %s16, 0
    %18 = vsyncpa [#allocation10], 0
    %s19 = scalar_lea.sflag [#allocation10], 1
    %20 = vsyncpa %s19, 0
    %21 = vsyncpa [#allocation13], 0
    %s22 = scalar_lea.sflag [#allocation13], 1
    %23 = vsyncpa %s22, 0
    loop: start=0, step=1, limit=4
    $region2: #{tpu_custom_call.1} parent=1 // loop_pre_header
      _
    $region3: #{tpu_custom_call.1} parent=1 // loop_header
      %s25 = sphi 0, %s29
      %p26 = scmp.ge.s32.totalorder %s25, 4
      %s32 = sphi 0, %s44
      %s33 = sphi 0, %s40
      %s34 = sphi 0, %s32
      %s35 = sphi 0, %s33
      %s36 = sphi 0, %s34
      %s37 = sphi 0, %s35
      %s47 = sphi 0, %s49
      %s50 = sphi 0, %s47
      %s51 = sphi 0, %s50
      %s67 = sphi 0, %s51
      %s75 = sphi 0, %s77
      %s78 = sphi 0, %s75
      %s79 = sphi 0, %s78
      %s95 = sphi 0, %s79
      %s101 = sphi 0, %s103
      %s104 = sphi 0, %s101
      %s105 = sphi 0, %s104
      %s121 = sphi 0, %s105
      %s129 = sphi 0, %s131
      %s132 = sphi 0, %s129
      %s133 = sphi 0, %s132
      %s149 = sphi 0, %s133
      %s153 = sphi 0, %s153
      %s155 = sphi 0, %s153
      %s156 = sphi 0, %s155
      %s170 = sphi 0, %s156
      %s174 = sphi 0, %s174
      %s176 = sphi 0, %s174
      %s177 = sphi 0, %s176
      %s191 = sphi 0, %s177
      %s195 = sphi 0, %s195
      %s197 = sphi 0, %s195
      %s198 = sphi 0, %s197
      %s212 = sphi 0, %s198
      %s216 = sphi 0, %s216
      %s218 = sphi 0, %s216
      %s219 = sphi 0, %s218
      %s233 = sphi 0, %s219
      %s239 = sphi 0, %s241
      %s242 = sphi 0, %s239
      %s243 = sphi 0, %s242
      %s259 = sphi 0, %s243
      %s267 = sphi 0, %s269
      %s270 = sphi 0, %s267
      %s271 = sphi 0, %s270
      %s287 = sphi 0, %s271
    $region4: #{tpu_custom_call.1} parent=1 // loop_header_branch
      %28 = sbr.rel (%p26) target = $region8
    $region5: #{tpu_custom_call.1} parent=1 // loop_body
      %s30 = ssub.s32 %s25, 1
      %s31 = ssub.s32 %s25, 2
      %s38 = sadd.s32 1, %s33
      %p39 = scmp.ge.s32.totalorder %s38, 1
      %s40 = scalar_select %p39, 0, %s38
      %s41 = sadd.s32 1, %s32
      %s42 = scalar_select %p39, %s41, %s32
      %p43 = scmp.ge.s32.totalorder %s42, 2
      %s44 = scalar_select %p43, 0, %s42
      %s45 = ssub.s32 %s32, %s44
      %p46 = scmp.eq.s32.totalorder %s45, 0
      %s48 = sadd.s32 %s47, 1
      %s49 = scalar_select %p46, %s47, %s48
      %p52 = pneg %p46
      %p53 = scmp.eq.s32.totalorder %s25, 1
      %p54 = por %p52, %p53
      %p55 = scmp.ne.s32.totalorder %s47, %s50
      %p56 = scmp.eq.s32.totalorder %s25, 0
      %p57 = por %p55, %p56
      %p58 = scmp.ne.s32.totalorder %s47, %s50
      %p59 = scmp.eq.s32.totalorder %s30, 1
      %p60 = por %p58, %p59
      %p61 = scmp.ne.s32.totalorder %s50, %s51
      %p62 = scmp.eq.s32.totalorder %s30, 0
      %p63 = por %p61, %p62
      %p64 = scmp.ne.s32.totalorder %s50, %s51
      %p65 = scmp.eq.s32.totalorder %s31, 1
      %p66 = por %p64, %p65
      %p68 = scmp.ne.s32.totalorder %s51, %s67
      %p69 = scmp.eq.s32.totalorder %s31, 0
      %p70 = por %p68, %p69
      %s71 = ssub.s32 %s32, %s44
      %s72 = ssub.s32 %s33, %s40
      %s73 = sor.u32 %s71, %s72
      %p74 = scmp.eq.s32.totalorder %s73, 0
      %s76 = sadd.s32 %s75, 1
      %s77 = scalar_select %p74, %s75, %s76
      %p80 = pneg %p74
      %p81 = scmp.eq.s32.totalorder %s25, 1
      %p82 = por %p80, %p81
      %p83 = scmp.ne.s32.totalorder %s75, %s78
      %p84 = scmp.eq.s32.totalorder %s25, 0
      %p85 = por %p83, %p84
      %p86 = scmp.ne.s32.totalorder %s75, %s78
      %p87 = scmp.eq.s32.totalorder %s30, 1
      %p88 = por %p86, %p87
      %p89 = scmp.ne.s32.totalorder %s78, %s79
      %p90 = scmp.eq.s32.totalorder %s30, 0
      %p91 = por %p89, %p90
      %p92 = scmp.ne.s32.totalorder %s78, %s79
      %p93 = scmp.eq.s32.totalorder %s31, 1
      %p94 = por %p92, %p93
      %p96 = scmp.ne.s32.totalorder %s79, %s95
      %p97 = scmp.eq.s32.totalorder %s31, 0
      %p98 = por %p96, %p97
      %s99 = ssub.s32 %s32, %s44
      %p100 = scmp.eq.s32.totalorder %s99, 0
      %s102 = sadd.s32 %s101, 1
      %s103 = scalar_select %p100, %s101, %s102
      %p106 = pneg %p100
      %p107 = scmp.eq.s32.totalorder %s25, 1
      %p108 = por %p106, %p107
      %p109 = scmp.ne.s32.totalorder %s101, %s104
      %p110 = scmp.eq.s32.totalorder %s25, 0
      %p111 = por %p109, %p110
      %p112 = scmp.ne.s32.totalorder %s101, %s104
      %p113 = scmp.eq.s32.totalorder %s30, 1
      %p114 = por %p112, %p113
      %p115 = scmp.ne.s32.totalorder %s104, %s105
      %p116 = scmp.eq.s32.totalorder %s30, 0
      %p117 = por %p115, %p116
      %p118 = scmp.ne.s32.totalorder %s104, %s105
      %p119 = scmp.eq.s32.totalorder %s31, 1
      %p120 = por %p118, %p119
      %p122 = scmp.ne.s32.totalorder %s105, %s121
      %p123 = scmp.eq.s32.totalorder %s31, 0
      %p124 = por %p122, %p123
      %s125 = ssub.s32 %s32, %s44
      %s126 = ssub.s32 %s33, %s40
      %s127 = sor.u32 %s125, %s126
      %p128 = scmp.eq.s32.totalorder %s127, 0
      %s130 = sadd.s32 %s129, 1
      %s131 = scalar_select %p128, %s129, %s130
      %p134 = pneg %p128
      %p135 = scmp.eq.s32.totalorder %s25, 1
      %p136 = por %p134, %p135
      %p137 = scmp.ne.s32.totalorder %s129, %s132
      %p138 = scmp.eq.s32.totalorder %s25, 0
      %p139 = por %p137, %p138
      %p140 = scmp.ne.s32.totalorder %s129, %s132
      %p141 = scmp.eq.s32.totalorder %s30, 1
      %p142 = por %p140, %p141
      %p143 = scmp.ne.s32.totalorder %s132, %s133
      %p144 = scmp.eq.s32.totalorder %s30, 0
      %p145 = por %p143, %p144
      %p146 = scmp.ne.s32.totalorder %s132, %s133
      %p147 = scmp.eq.s32.totalorder %s31, 1
      %p148 = por %p146, %p147
      %p150 = scmp.ne.s32.totalorder %s133, %s149
      %p151 = scmp.eq.s32.totalorder %s31, 0
      %p152 = por %p150, %p151
      %s154 = sadd.s32 %s153, 1
      %p157 = scmp.eq.s32.totalorder %s25, 1
      %p158 = scmp.ne.s32.totalorder %s153, %s155
      %p159 = scmp.eq.s32.totalorder %s25, 0
      %p160 = por %p158, %p159
      %p161 = scmp.ne.s32.totalorder %s153, %s155
      %p162 = scmp.eq.s32.totalorder %s30, 1
      %p163 = por %p161, %p162
      %p164 = scmp.ne.s32.totalorder %s155, %s156
      %p165 = scmp.eq.s32.totalorder %s30, 0
      %p166 = por %p164, %p165
      %p167 = scmp.ne.s32.totalorder %s155, %s156
      %p168 = scmp.eq.s32.totalorder %s31, 1
      %p169 = por %p167, %p168
      %p171 = scmp.ne.s32.totalorder %s156, %s170
      %p172 = scmp.eq.s32.totalorder %s31, 0
      %p173 = por %p171, %p172
      %s175 = sadd.s32 %s174, 1
      %p178 = scmp.eq.s32.totalorder %s25, 1
      %p179 = scmp.ne.s32.totalorder %s174, %s176
      %p180 = scmp.eq.s32.totalorder %s25, 0
      %p181 = por %p179, %p180
      %p182 = scmp.ne.s32.totalorder %s174, %s176
      %p183 = scmp.eq.s32.totalorder %s30, 1
      %p184 = por %p182, %p183
      %p185 = scmp.ne.s32.totalorder %s176, %s177
      %p186 = scmp.eq.s32.totalorder %s30, 0
      %p187 = por %p185, %p186
      %p188 = scmp.ne.s32.totalorder %s176, %s177
      %p189 = scmp.eq.s32.totalorder %s31, 1
      %p190 = por %p188, %p189
      %p192 = scmp.ne.s32.totalorder %s177, %s191
      %p193 = scmp.eq.s32.totalorder %s31, 0
      %p194 = por %p192, %p193
      %s196 = sadd.s32 %s195, 1
      %p199 = scmp.eq.s32.totalorder %s25, 1
      %p200 = scmp.ne.s32.totalorder %s195, %s197
      %p201 = scmp.eq.s32.totalorder %s25, 0
      %p202 = por %p200, %p201
      %p203 = scmp.ne.s32.totalorder %s195, %s197
      %p204 = scmp.eq.s32.totalorder %s30, 1
      %p205 = por %p203, %p204
      %p206 = scmp.ne.s32.totalorder %s197, %s198
      %p207 = scmp.eq.s32.totalorder %s30, 0
      %p208 = por %p206, %p207
      %p209 = scmp.ne.s32.totalorder %s197, %s198
      %p210 = scmp.eq.s32.totalorder %s31, 1
      %p211 = por %p209, %p210
      %p213 = scmp.ne.s32.totalorder %s198, %s212
      %p214 = scmp.eq.s32.totalorder %s31, 0
      %p215 = por %p213, %p214
      %s217 = sadd.s32 %s216, 1
      %p220 = scmp.eq.s32.totalorder %s25, 1
      %p221 = scmp.ne.s32.totalorder %s216, %s218
      %p222 = scmp.eq.s32.totalorder %s25, 0
      %p223 = por %p221, %p222
      %p224 = scmp.ne.s32.totalorder %s216, %s218
      %p225 = scmp.eq.s32.totalorder %s30, 1
      %p226 = por %p224, %p225
      %p227 = scmp.ne.s32.totalorder %s218, %s219
      %p228 = scmp.eq.s32.totalorder %s30, 0
      %p229 = por %p227, %p228
      %p230 = scmp.ne.s32.totalorder %s218, %s219
      %p231 = scmp.eq.s32.totalorder %s31, 1
      %p232 = por %p230, %p231
      %p234 = scmp.ne.s32.totalorder %s219, %s233
      %p235 = scmp.eq.s32.totalorder %s31, 0
      %p236 = por %p234, %p235
      %s237 = ssub.s32 %s32, %s44
      %p238 = scmp.eq.s32.totalorder %s237, 0
      %s240 = sadd.s32 %s239, 1
      %s241 = scalar_select %p238, %s239, %s240
      %p244 = pneg %p238
      %p245 = scmp.eq.s32.totalorder %s25, 1
      %p246 = por %p244, %p245
      %p247 = scmp.ne.s32.totalorder %s239, %s242
      %p248 = scmp.eq.s32.totalorder %s25, 0
      %p249 = por %p247, %p248
      %p250 = scmp.ne.s32.totalorder %s239, %s242
      %p251 = scmp.eq.s32.totalorder %s30, 1
      %p252 = por %p250, %p251
      %p253 = scmp.ne.s32.totalorder %s242, %s243
      %p254 = scmp.eq.s32.totalorder %s30, 0
      %p255 = por %p253, %p254
      %p256 = scmp.ne.s32.totalorder %s242, %s243
      %p257 = scmp.eq.s32.totalorder %s31, 1
      %p258 = por %p256, %p257
      %p260 = scmp.ne.s32.totalorder %s243, %s259
      %p261 = scmp.eq.s32.totalorder %s31, 0
      %p262 = por %p260, %p261
      %s263 = ssub.s32 %s32, %s44
      %s264 = ssub.s32 %s33, %s40
      %s265 = sor.u32 %s263, %s264
      %p266 = scmp.eq.s32.totalorder %s265, 0
      %s268 = sadd.s32 %s267, 1
      %s269 = scalar_select %p266, %s267, %s268
      %p272 = pneg %p266
      %p273 = scmp.eq.s32.totalorder %s25, 1
      %p274 = por %p272, %p273
      %p275 = scmp.ne.s32.totalorder %s267, %s270
      %p276 = scmp.eq.s32.totalorder %s25, 0
      %p277 = por %p275, %p276
      %p278 = scmp.ne.s32.totalorder %s267, %s270
      %p279 = scmp.eq.s32.totalorder %s30, 1
      %p280 = por %p278, %p279
      %p281 = scmp.ne.s32.totalorder %s270, %s271
      %p282 = scmp.eq.s32.totalorder %s30, 0
      %p283 = por %p281, %p282
      %p284 = scmp.ne.s32.totalorder %s270, %s271
      %p285 = scmp.eq.s32.totalorder %s31, 1
      %p286 = por %p284, %p285
      %p288 = scmp.ne.s32.totalorder %s271, %s287
      %p289 = scmp.eq.s32.totalorder %s31, 0
      %p290 = por %p288, %p289
      %p291 = scmp.le.s32.totalorder 1, %s25
      %p292 = scmp.lt.s32.totalorder %s25, 3
      %p293 = pnand %p291, %p292
      %p294 = pneg %p293
      // Predicated region
      $region9: #{tpu_custom_call.1} parent=5 // pred_check
        _
      $region10: #{tpu_custom_call.1} parent=5 // pred_check_branch
        %296 = sbr.rel (%p293) target = $region12
      $region11: #{tpu_custom_call.1} parent=5 // pred_region
        %s297 = ssub.s32 %s25, 1
        // Predicated region
        $region13: #{tpu_custom_call.1} parent=11 // pred_check
          %p298 = pneg %p166
        $region14: #{tpu_custom_call.1} parent=11 // pred_check_branch
          %300 = sbr.rel (%p298) target = $region16
        $region15: #{tpu_custom_call.1} parent=11 // pred_region
          _
        $region16: #{tpu_custom_call.1} parent=11 // pred_fallthru
          _
        // Predicated region
        $region17: #{tpu_custom_call.1} parent=11 // pred_check
          %p301 = pneg %p187
        $region18: #{tpu_custom_call.1} parent=11 // pred_check_branch
          %303 = sbr.rel (%p301) target = $region20
        $region19: #{tpu_custom_call.1} parent=11 // pred_region
          _
        $region20: #{tpu_custom_call.1} parent=11 // pred_fallthru
          _
        // Predicated region
        $region21: #{tpu_custom_call.1} parent=11 // pred_check
          %p304 = pneg %p208
        $region22: #{tpu_custom_call.1} parent=11 // pred_check_branch
          %306 = sbr.rel (%p304) target = $region24
        $region23: #{tpu_custom_call.1} parent=11 // pred_region
          _
        $region24: #{tpu_custom_call.1} parent=11 // pred_fallthru
          _
        // Predicated region
        $region25: #{tpu_custom_call.1} parent=11 // pred_check
          %p307 = pneg %p229
        $region26: #{tpu_custom_call.1} parent=11 // pred_check_branch
          %309 = sbr.rel (%p307) target = $region28
        $region27: #{tpu_custom_call.1} parent=11 // pred_region
          _
        $region28: #{tpu_custom_call.1} parent=11 // pred_fallthru
          _
      $region12: #{tpu_custom_call.1} parent=5 // pred_fallthru
        _
      %p310 = scmp.lt.s32.totalorder %s25, 2
      // Predicated region
      $region29: #{tpu_custom_call.1} parent=5 // pred_check
        %p311 = pneg %p310
      $region30: #{tpu_custom_call.1} parent=5 // pred_check_branch
        %313 = sbr.rel (%p311) target = $region32
      $region31: #{tpu_custom_call.1} parent=5 // pred_region
        // Predicated region
        $region33: #{tpu_custom_call.1} parent=31 // pred_check
          %p314 = pneg %p57
        $region34: #{tpu_custom_call.1} parent=31 // pred_check_branch
          %316 = sbr.rel (%p314) target = $region36
        $region35: #{tpu_custom_call.1} parent=31 // pred_region
          %p317 = scmp.lt.s32.totalorder %s32, 1
          %s318 = scalar_select %p317, %s32, 1
          %s319 = smul.addr %s318, 4
          %s320 = scalar_lea.vmem %s0, %s319
        $region36: #{tpu_custom_call.1} parent=31 // pred_fallthru
          _
        // Predicated region
        $region37: #{tpu_custom_call.1} parent=31 // pred_check
          %p321 = pneg %p85
        $region38: #{tpu_custom_call.1} parent=31 // pred_check_branch
          %323 = sbr.rel (%p321) target = $region40
        $region39: #{tpu_custom_call.1} parent=31 // pred_region
          %s324 = sand.u32 %s75, 1
          %s325 = scalar_lea.sflag [#allocation9], %s324
          %s326 = sand.u32 %s75, 1
          %s327 = smul.addr %s326, 32
          %s328 = scalar_lea.vmem [#allocation8], %s327
          %s330 = ssub.s32 512, 512
          %331 = vsyncadd %s325, %s330
          %s332 = smul.addr %s32, 8
          %s333 = sadd.s32 %s33, %s332
          %s334 = smul.addr %s333, 64
          %s335 = scalar_lea.hbm %s1, %s334
          %s336 = sshll.u32 %s328, 4
          %s337 = int_to_ptr.vmem [resolvable:$true] %s336
          %342 = dma.hbm_to_vmem [thread:$0]  %s335, 512, %s337, %s325, 64, 64, 4
        $region40: #{tpu_custom_call.1} parent=31 // pred_fallthru
          _
        // Predicated region
        $region41: #{tpu_custom_call.1} parent=31 // pred_check
          %p343 = pneg %p111
        $region42: #{tpu_custom_call.1} parent=31 // pred_check_branch
          %345 = sbr.rel (%p343) target = $region44
        $region43: #{tpu_custom_call.1} parent=31 // pred_region
          %p346 = scmp.lt.s32.totalorder %s32, 1
          %s347 = scalar_select %p346, %s32, 1
          %s348 = smul.addr %s347, 8
          %s349 = scalar_lea.vmem %s2, %s348
        $region44: #{tpu_custom_call.1} parent=31 // pred_fallthru
          _
        // Predicated region
        $region45: #{tpu_custom_call.1} parent=31 // pred_check
          %p350 = pneg %p139
        $region46: #{tpu_custom_call.1} parent=31 // pred_check_branch
          %352 = sbr.rel (%p350) target = $region48
        $region47: #{tpu_custom_call.1} parent=31 // pred_region
          %p353 = scmp.lt.s32.totalorder %s32, 1
          %s354 = scalar_select %p353, %s32, 1
          %p355 = scmp.lt.s32.totalorder %s33, 0
          %s356 = scalar_select %p355, %s33, 0
          %s357 = sadd.s32 %s356, %s354
          %s358 = smul.addr %s357, 8
          %s359 = scalar_lea.vmem %s3, %s358
        $region48: #{tpu_custom_call.1} parent=31 // pred_fallthru
          _
      $region32: #{tpu_custom_call.1} parent=5 // pred_fallthru
        _
      %p360 = scmp.le.s32.totalorder 1, %s25
      %p361 = scmp.lt.s32.totalorder %s25, 3
      %p362 = pnand %p360, %p361
      %p363 = pneg %p362
      // Predicated region
      $region49: #{tpu_custom_call.1} parent=5 // pred_check
        _
      $region50: #{tpu_custom_call.1} parent=5 // pred_check_branch
        %365 = sbr.rel (%p362) target = $region52
      $region51: #{tpu_custom_call.1} parent=5 // pred_region
        %s366 = ssub.s32 %s25, 1
        %s367 = sand.u32 %s78, 1
        %s368 = scalar_lea.sflag [#allocation9], %s367
        %s369 = sand.u32 %s78, 1
        %s370 = smul.addr %s369, 32
        %s371 = scalar_lea.vmem [#allocation8], %s370
        // Predicated region
        $region53: #{tpu_custom_call.1} parent=51 // pred_check
          %p372 = pneg %p91
        $region54: #{tpu_custom_call.1} parent=51 // pred_check_branch
          %374 = sbr.rel (%p372) target = $region56
        $region55: #{tpu_custom_call.1} parent=51 // pred_region
          %375 = dma.done %s368, 512
        $region56: #{tpu_custom_call.1} parent=51 // pred_fallthru
          _
        %p376 = scmp.lt.s32.totalorder %s34, 1
        %s377 = scalar_select %p376, %s34, 1
        %s378 = smul.addr %s377, 4
        %s379 = scalar_lea.vmem %s0, %s378
        %p380 = pneg %p63
        %p381 = pneg %p60
        %s382 = sand.u32 %s78, 1
        %s383 = scalar_lea.sflag [#allocation9], %s382
        %s384 = sand.u32 %s78, 1
        %s385 = smul.addr %s384, 32
        %s386 = scalar_lea.vmem [#allocation8], %s385
        %p387 = pneg %p91
        %p388 = pneg %p88
        %p389 = scmp.lt.s32.totalorder %s34, 1
        %s390 = scalar_select %p389, %s34, 1
        %s391 = smul.addr %s390, 8
        %s392 = scalar_lea.vmem %s2, %s391
        %p393 = pneg %p117
        %p394 = pneg %p114
        %p395 = scmp.lt.s32.totalorder %s34, 1
        %s396 = scalar_select %p395, %s34, 1
        %p397 = scmp.lt.s32.totalorder %s35, 0
        %s398 = scalar_select %p397, %s35, 0
        %s399 = sadd.s32 %s398, %s396
        %s400 = smul.addr %s399, 8
        %s401 = scalar_lea.vmem %s3, %s400
        %p402 = pneg %p145
        %p403 = pneg %p142
        %p404 = pneg %p166
        %p405 = pneg %p163
        %p406 = pneg %p187
        %p407 = pneg %p184
        %p408 = pneg %p208
        %p409 = pneg %p205
        %p410 = pneg %p229
        %p411 = pneg %p226
        %p412 = pneg %p255
        %p413 = pneg %p252
        %s414 = sand.u32 %s242, 1
        %s415 = scalar_lea.sflag [#allocation10], %s414
        %s416 = sand.u32 %s242, 1
        %s417 = smul.addr %s416, 8
        %s418 = scalar_lea.vmem [#allocation11], %s417
        %p419 = pneg %p283
        %p420 = pneg %p280
        %s421 = sand.u32 %s270, 1
        %s422 = scalar_lea.sflag [#allocation13], %s421
        %s423 = sand.u32 %s270, 1
        %s424 = smul.addr %s423, 4
        %s425 = scalar_lea.vmem [#allocation12], %s424
        %p426 = scmp.lt.s32.totalorder %s34, 1
        %s427 = scalar_select %p426, %s34, 1
        %s428 = smul.addr %s427, 4
        %s429 = scalar_lea.vmem %s0, %s428
        %p430 = scmp.lt.s32.totalorder %s34, 1
        %s431 = scalar_select %p430, %s34, 1
        %s432 = smul.addr %s431, 8
        %s433 = scalar_lea.vmem %s2, %s432
        %p434 = scmp.lt.s32.totalorder %s34, 1
        %s435 = scalar_select %p434, %s34, 1
        %p436 = scmp.lt.s32.totalorder %s35, 0
        %s437 = scalar_select %p436, %s35, 0
        %s438 = sadd.s32 %s437, %s435
        %s439 = smul.addr %s438, 8
        %s440 = scalar_lea.vmem %s3, %s439
        %v442 = vld [vmem:[%s433] sm:$0xff]
        %v443 = vld [vmem:[%s440] sm:$0xff]
        %p444 = scmp.eq.s32.totalorder %s35, 0
        // Predicated region
        $region57: #{tpu_custom_call.1} parent=51 // pred_check
          %p445 = pneg %p444
        $region58: #{tpu_custom_call.1} parent=51 // pred_check_branch
          %447 = sbr.rel (%p445) target = $region60
        $region59: #{tpu_custom_call.1} parent=51 // pred_region
          %v448 = vld [vmem:[%s429] sm:$0xf]
          %v449 = vld [vmem:[%s4] sm:$0xf]
          %v450 = vld [vmem:[%s4 + $0x4] sm:$0xf]
          %v451 = vld [vmem:[%s4 + $0x8] sm:$0xf]
          %v452 = vld [vmem:[%s4 + $0xc] sm:$0xf]
          %v453 = vld [vmem:[%s5] sm:$0x1]
          %v455 = vlaneseq
          %v456 = vshrl.u32 %v455, 7
          %v457 = vsub.s32 0, %v456
          %v458 = vrot.slane %v453, %v457
          %v464 = vunpack.c.l.b16 %v449
          %v465 = vunpack.c.l.b16 %v450
          %v466 = vunpack.c.l.b16 %v451
          %v467 = vunpack.c.l.b16 %v452
          %v468 = vpack.c.b16 %v465, %v464
          %v469 = vpack.c.b16 %v467, %v466
          %vm472 = vcmask 261120
          %v474 = vsel %vm472, %v448, 0
          %476 = vmatprep.subr.bf16.mxu0 0
          %477 = vmatpush1.bf16.msra.mxu0 0
          %478 = vmatprep.subr.bf16.mxu0 0
          %479 = vmatpush1.bf16.msra.mxu0 0
          %480 = vmatprep.subr.bf16.mxu0 0
          %481 = vmatpush1.bf16.msra.mxu0 0
          %482 = vmatprep.subr.bf16.mxu0 0
          %483 = vmatpush1.bf16.msra.mxu0 0
          %484 = vmatprep.subr.bf16.mxu0 0
          %485 = vmatpush1.bf16.msra.mxu0 0
          %486 = vmatprep.subr.bf16.mxu0 0
          %487 = vmatpush1.bf16.msra.mxu0 0
          %488 = vmatprep.subr.bf16.mxu0 0
          %489 = vmatpush1.bf16.msra.mxu0 %v469
          %490 = vmatprep.subr.bf16.mxu0 0
          %491 = vmatpush1.bf16.msra.mxu0 %v468
          %492 = vmatprep.subr.bf16.mxu0 0
          %493 = vmatpush2.bf16.msra.mxu0 0
          %494 = vmatprep.subr.bf16.mxu0 0
          %495 = vmatpush2.bf16.msra.mxu0 0
          %496 = vmatprep.subr.bf16.mxu0 0
          %497 = vmatpush2.bf16.msra.mxu0 0
          %498 = vmatprep.subr.bf16.mxu0 0
          %499 = vmatpush2.bf16.msra.mxu0 0
          %500 = vmatprep.subr.bf16.mxu0 0
          %501 = vmatpush2.bf16.msra.mxu0 0
          %502 = vmatprep.subr.bf16.mxu0 0
          %503 = vmatpush2.bf16.msra.mxu0 0
          %504 = vmatprep.subr.bf16.mxu0 0
          %505 = vmatpush2.bf16.msra.mxu0 0
          %506 = vmatprep.subr.bf16.mxu0 0
          %507 = vmatpush2.bf16.msra.mxu0 0
          %508 = vmatprep.mubr.bf16.mxu0 0
          %509 = vmatmul.mubr.bf16.gmra.mxu0 %v474
          %v510 = vpop.f32.mrf.mxu0
          %v511 = vadd.f32 %v458, %v510
          %v512 = vpop.f32.mrf.mxu0
          %v513 = vpop.f32.mrf.mxu0
          %v514 = vpop.f32.mrf.mxu0
          %515 = vdwg.mxu0
          %v516 = vmul.f32 %v442, 0.25
          %518 = vset.pattern.permute.xlu0 0
          %519 = vperm.xlu0 %518, %v516
          %v520 = vpop.permute.xlu0 %519
          %v522 = vmul.f32 %v511, %v520
          %vm523 = vcmask 130048
          %524 = vst.msk [vmem:[#allocation2] sm:$0xff] %vm523, %v522
          %526 = vrot.lane.b32.xlu0 %v511, 112
          %v527 = vpop.permute.xlu0 %526
          %529 = vst.msk [vmem:[#allocation3] sm:$0xff] %vm523, %v527
          %531 = vset.pattern.permute.xlu0 0
          %532 = vperm.xlu0 %531, %v442
          %v533 = vpop.permute.xlu0 %532
          %v535 = vmul.f32 %v511, %v533
          %537 = vrot.lane.b32.xlu0 %v535, 96
          %v538 = vpop.permute.xlu0 %537
          %540 = vst.msk [vmem:[#allocation4] sm:$0xff] %vm523, %v538
          %541 = vrot.lane.b32.xlu0 %v511, 80
          %v542 = vpop.permute.xlu0 %541
          %544 = vst.msk [vmem:[#allocation5] sm:$0xff] %vm523, %v542
          %545 = vrot.lane.b32.xlu0 %v511, 64
          %v546 = vpop.permute.xlu0 %545
          %548 = vst.msk [vmem:[#allocation6] sm:$0xff] %vm523, %v546
          %549 = vst.msk [vmem:[#allocation7] sm:$0xff] %vm523, 0.0
        $region60: #{tpu_custom_call.1} parent=51 // pred_fallthru
          _
        %s550 = smul.u32 %s35, 8
        %s551 = scalar_lea.vmem [#allocation6], %s550
        %v552 = vld [vmem:[%s551] sm:$0xff]
        %s553 = scalar_lea.vmem [#allocation3], %s550
        %v554 = vld [vmem:[%s553] sm:$0xff]
        %s555 = scalar_lea.vmem [#allocation4], %s550
        %v556 = vld [vmem:[%s555] sm:$0xff]
        %v557 = vld [vmem:[%s371] sm:$0xf]
        %v558 = vld [vmem:[%s371 + $0x4] sm:$0xf]
        %v559 = vld [vmem:[%s371 + $0x8] sm:$0xf]
        %v560 = vld [vmem:[%s371 + $0xc] sm:$0xf]
        %v561 = vld [vmem:[%s371 + $0x10] sm:$0xf]
        %v562 = vld [vmem:[%s371 + $0x14] sm:$0xf]
        %v563 = vld [vmem:[%s371 + $0x18] sm:$0xf]
        %v564 = vld [vmem:[%s371 + $0x1c] sm:$0xf]
        %v565 = vld [vmem:[%s6] sm:$0xf]
        %v566 = vld [vmem:[%s6 + $0x4] sm:$0xf]
        %v567 = vld [vmem:[%s6 + $0x8] sm:$0xf]
        %v568 = vld [vmem:[%s6 + $0xc] sm:$0xf]
        %v569 = vld [vmem:[%s7] sm:$0x1]
        %v571 = vlaneseq
        %v572 = vshrl.u32 %v571, 7
        %v573 = vsub.s32 0, %v572
        %v574 = vrot.slane %v569, %v573
        %v584 = vunpack.c.l.b16 %v557
        %v585 = vunpack.c.l.b16 %v558
        %v586 = vunpack.c.l.b16 %v559
        %v587 = vunpack.c.l.b16 %v560
        %v588 = vunpack.c.l.b16 %v561
        %v589 = vunpack.c.l.b16 %v562
        %v590 = vunpack.c.l.b16 %v563
        %v591 = vunpack.c.l.b16 %v564
        %v592 = vpack.c.b16 %v585, %v584
        %v593 = vpack.c.b16 %v587, %v586
        %v594 = vpack.c.b16 %v589, %v588
        %v595 = vpack.c.b16 %v591, %v590
        %v600 = vunpack.c.l.b16 %v565
        %v601 = vunpack.c.l.b16 %v566
        %v602 = vunpack.c.l.b16 %v567
        %v603 = vunpack.c.l.b16 %v568
        %v604 = vpack.c.b16 %v601, %v600
        %v605 = vpack.c.b16 %v603, %v602
        %vm608 = vcmask 261120
        %v610 = vsel %vm608, %v592, 0
        %v613 = vsel %vm608, %v593, 0
        %v616 = vsel %vm608, %v594, 0
        %v619 = vsel %vm608, %v595, 0
        %621 = vmatprep.subr.bf16.mxu0 0
        %622 = vmatpush1.bf16.msra.mxu0 0
        %623 = vmatprep.subr.bf16.mxu0 0
        %624 = vmatpush1.bf16.msra.mxu0 0
        %625 = vmatprep.subr.bf16.mxu0 0
        %626 = vmatpush1.bf16.msra.mxu0 0
        %627 = vmatprep.subr.bf16.mxu0 0
        %628 = vmatpush1.bf16.msra.mxu0 0
        %629 = vmatprep.subr.bf16.mxu0 0
        %630 = vmatpush1.bf16.msra.mxu0 0
        %631 = vmatprep.subr.bf16.mxu0 0
        %632 = vmatpush1.bf16.msra.mxu0 0
        %633 = vmatprep.subr.bf16.mxu0 0
        %634 = vmatpush1.bf16.msra.mxu0 %v605
        %635 = vmatprep.subr.bf16.mxu0 0
        %636 = vmatpush1.bf16.msra.mxu0 %v604
        %637 = vmatprep.subr.bf16.mxu0 0
        %638 = vmatpush2.bf16.msra.mxu0 0
        %639 = vmatprep.subr.bf16.mxu0 0
        %640 = vmatpush2.bf16.msra.mxu0 0
        %641 = vmatprep.subr.bf16.mxu0 0
        %642 = vmatpush2.bf16.msra.mxu0 0
        %643 = vmatprep.subr.bf16.mxu0 0
        %644 = vmatpush2.bf16.msra.mxu0 0
        %645 = vmatprep.subr.bf16.mxu0 0
        %646 = vmatpush2.bf16.msra.mxu0 0
        %647 = vmatprep.subr.bf16.mxu0 0
        %648 = vmatpush2.bf16.msra.mxu0 0
        %649 = vmatprep.subr.bf16.mxu0 0
        %650 = vmatpush2.bf16.msra.mxu0 0
        %651 = vmatprep.subr.bf16.mxu0 0
        %652 = vmatpush2.bf16.msra.mxu0 0
        %653 = vmatprep.mubr.bf16.mxu0 0
        %654 = vmatmul.mubr.bf16.gmra.mxu0 %v610
        %v655 = vpop.f32.mrf.mxu0
        %v656 = vadd.f32 %v574, %v655
        %v657 = vpop.f32.mrf.mxu0
        %v658 = vpop.f32.mrf.mxu0
        %v659 = vadd.f32 %v574, %v658
        %v660 = vpop.f32.mrf.mxu0
        %661 = vmatprep.mubr.bf16.mxu0 0
        %662 = vmatmul.mubr.bf16.gmra.mxu0 %v613
        %v663 = vpop.f32.mrf.mxu0
        %v664 = vadd.f32 %v574, %v663
        %v665 = vpop.f32.mrf.mxu0
        %v666 = vpop.f32.mrf.mxu0
        %v667 = vadd.f32 %v574, %v666
        %v668 = vpop.f32.mrf.mxu0
        %669 = vmatprep.mubr.bf16.mxu0 0
        %670 = vmatmul.mubr.bf16.gmra.mxu0 %v616
        %v671 = vpop.f32.mrf.mxu0
        %v672 = vadd.f32 %v574, %v671
        %v673 = vpop.f32.mrf.mxu0
        %v674 = vpop.f32.mrf.mxu0
        %v675 = vadd.f32 %v574, %v674
        %v676 = vpop.f32.mrf.mxu0
        %677 = vmatprep.mubr.bf16.mxu0 0
        %678 = vmatmul.mubr.bf16.gmra.mxu0 %v619
        %v679 = vpop.f32.mrf.mxu0
        %v680 = vadd.f32 %v574, %v679
        %v681 = vpop.f32.mrf.mxu0
        %v682 = vpop.f32.mrf.mxu0
        %v683 = vadd.f32 %v574, %v682
        %v684 = vpop.f32.mrf.mxu0
        %685 = vdwg.mxu0
        %v687 = vcombine.high %v442, %v442
        %v689 = vunpack.c.l.s4 1966171168
        %v690 = vunpack.c.0.s8 %v689
        %v691 = vlaneseq
        %v692 = vshrl.u32 %v691, 7
        %v693 = vsub.s32 %v690, %v692
        %v694 = vrot.slane %v442, %v693
        %v696 = vunpack.c.l.s4 1966171168
        %v697 = vunpack.c.0.s8 %v696
        %v698 = vlaneseq
        %v699 = vshrl.u32 %v698, 7
        %v700 = vsub.s32 %v697, %v699
        %v701 = vrot.slane %v687, %v700
        %v702 = vcombine.high %v694, %v694
        %v703 = vcombine.high %v701, %v701
        %v705 = vunpack.c.l.s4 1966171168
        %v706 = vunpack.c.0.s8 %v705
        %v707 = vlaneseq
        %v708 = vshrl.u32 %v707, 7
        %v709 = vsub.s32 %v706, %v708
        %v710 = vrot.slane %v694, %v709
        %v712 = vunpack.c.l.s4 1966171168
        %v713 = vunpack.c.0.s8 %v712
        %v714 = vlaneseq
        %v715 = vshrl.u32 %v714, 7
        %v716 = vsub.s32 %v713, %v715
        %v717 = vrot.slane %v701, %v716
        %v719 = vunpack.c.l.s4 1966171168
        %v720 = vunpack.c.0.s8 %v719
        %v721 = vlaneseq
        %v722 = vshrl.u32 %v721, 7
        %v723 = vsub.s32 %v720, %v722
        %v724 = vrot.slane %v702, %v723
        %v726 = vunpack.c.l.s4 1966171168
        %v727 = vunpack.c.0.s8 %v726
        %v728 = vlaneseq
        %v729 = vshrl.u32 %v728, 7
        %v730 = vsub.s32 %v727, %v729
        %v731 = vrot.slane %v703, %v730
        %v732 = vcombine.high %v710, %v710
        %v733 = vcombine.high %v717, %v717
        %v734 = vcombine.high %v724, %v724
        %v735 = vcombine.high %v731, %v731
        %v736 = vlaneseq
        %v737 = vshrl.u32 %v736, 7
        %v738 = vsub.s32 0, %v737
        %v739 = vrot.slane %v710, %v738
        %v740 = vlaneseq
        %v741 = vshrl.u32 %v740, 7
        %v742 = vsub.s32 0, %v741
        %v743 = vrot.slane %v724, %v742
        %v744 = vlaneseq
        %v745 = vshrl.u32 %v744, 7
        %v746 = vsub.s32 0, %v745
        %v747 = vrot.slane %v732, %v746
        %v748 = vlaneseq
        %v749 = vshrl.u32 %v748, 7
        %v750 = vsub.s32 0, %v749
        %v751 = vrot.slane %v734, %v750
        %v752 = vlaneseq
        %v753 = vshrl.u32 %v752, 7
        %v754 = vsub.s32 0, %v753
        %v755 = vrot.slane %v717, %v754
        %v756 = vlaneseq
        %v757 = vshrl.u32 %v756, 7
        %v758 = vsub.s32 0, %v757
        %v759 = vrot.slane %v731, %v758
        %v760 = vlaneseq
        %v761 = vshrl.u32 %v760, 7
        %v762 = vsub.s32 0, %v761
        %v763 = vrot.slane %v733, %v762
        %v764 = vlaneseq
        %v765 = vshrl.u32 %v764, 7
        %v766 = vsub.s32 0, %v765
        %v767 = vrot.slane %v735, %v766
        %v776 = vmul.f32 %v739, %v443
        %v777 = vmul.f32 %v743, %v443
        %v778 = vmul.f32 %v747, %v443
        %v779 = vmul.f32 %v751, %v443
        %v780 = vmul.f32 %v755, %v443
        %v781 = vmul.f32 %v759, %v443
        %v782 = vmul.f32 %v763, %v443
        %v783 = vmul.f32 %v767, %v443
        %v784 = vld [vmem:[#allocation5] sm:$0xff]
        %v786 = vcombine.high %v784, %v784
        %v788 = vunpack.c.l.s4 1966171168
        %v789 = vunpack.c.0.s8 %v788
        %v790 = vlaneseq
        %v791 = vshrl.u32 %v790, 7
        %v792 = vsub.s32 %v789, %v791
        %v793 = vrot.slane %v784, %v792
        %v795 = vunpack.c.l.s4 1966171168
        %v796 = vunpack.c.0.s8 %v795
        %v797 = vlaneseq
        %v798 = vshrl.u32 %v797, 7
        %v799 = vsub.s32 %v796, %v798
        %v800 = vrot.slane %v786, %v799
        %v801 = vcombine.high %v793, %v793
        %v802 = vcombine.high %v800, %v800
        %v804 = vunpack.c.l.s4 1966171168
        %v805 = vunpack.c.0.s8 %v804
        %v806 = vlaneseq
        %v807 = vshrl.u32 %v806, 7
        %v808 = vsub.s32 %v805, %v807
        %v809 = vrot.slane %v793, %v808
        %v811 = vunpack.c.l.s4 1966171168
        %v812 = vunpack.c.0.s8 %v811
        %v813 = vlaneseq
        %v814 = vshrl.u32 %v813, 7
        %v815 = vsub.s32 %v812, %v814
        %v816 = vrot.slane %v800, %v815
        %v818 = vunpack.c.l.s4 1966171168
        %v819 = vunpack.c.0.s8 %v818
        %v820 = vlaneseq
        %v821 = vshrl.u32 %v820, 7
        %v822 = vsub.s32 %v819, %v821
        %v823 = vrot.slane %v801, %v822
        %v825 = vunpack.c.l.s4 1966171168
        %v826 = vunpack.c.0.s8 %v825
        %v827 = vlaneseq
        %v828 = vshrl.u32 %v827, 7
        %v829 = vsub.s32 %v826, %v828
        %v830 = vrot.slane %v802, %v829
        %v831 = vcombine.high %v809, %v809
        %v832 = vcombine.high %v816, %v816
        %v833 = vcombine.high %v823, %v823
        %v834 = vcombine.high %v830, %v830
        %v835 = vlaneseq
        %v836 = vshrl.u32 %v835, 7
        %v837 = vsub.s32 0, %v836
        %v838 = vrot.slane %v809, %v837
        %v839 = vlaneseq
        %v840 = vshrl.u32 %v839, 7
        %v841 = vsub.s32 0, %v840
        %v842 = vrot.slane %v823, %v841
        %v843 = vlaneseq
        %v844 = vshrl.u32 %v843, 7
        %v845 = vsub.s32 0, %v844
        %v846 = vrot.slane %v831, %v845
        %v847 = vlaneseq
        %v848 = vshrl.u32 %v847, 7
        %v849 = vsub.s32 0, %v848
        %v850 = vrot.slane %v833, %v849
        %v851 = vlaneseq
        %v852 = vshrl.u32 %v851, 7
        %v853 = vsub.s32 0, %v852
        %v854 = vrot.slane %v816, %v853
        %v855 = vlaneseq
        %v856 = vshrl.u32 %v855, 7
        %v857 = vsub.s32 0, %v856
        %v858 = vrot.slane %v830, %v857
        %v859 = vlaneseq
        %v860 = vshrl.u32 %v859, 7
        %v861 = vsub.s32 0, %v860
        %v862 = vrot.slane %v832, %v861
        %v863 = vlaneseq
        %v864 = vshrl.u32 %v863, 7
        %v865 = vsub.s32 0, %v864
        %v866 = vrot.slane %v834, %v865
        %v875 = vadd.f32 %v838, %v552
        %v876 = vadd.f32 %v842, %v552
        %v877 = vadd.f32 %v846, %v552
        %v878 = vadd.f32 %v850, %v552
        %v879 = vadd.f32 %v854, %v552
        %v880 = vadd.f32 %v858, %v552
        %v881 = vadd.f32 %v862, %v552
        %v882 = vadd.f32 %v866, %v552
        %v883 = vadd.f32 %v875, %v656
        %v884 = vadd.f32 %v876, %v659
        %v885 = vadd.f32 %v877, %v664
        %v886 = vadd.f32 %v878, %v667
        %v887 = vadd.f32 %v879, %v672
        %v888 = vadd.f32 %v880, %v675
        %v889 = vadd.f32 %v881, %v680
        %v890 = vadd.f32 %v882, %v683
        %892 = vset.pattern.permute.xlu0 0
        %893 = vperm.xlu0 %892, %v776
        %v894 = vpop.permute.xlu0 %893
        %897 = vset.pattern.permute.xlu0 0
        %898 = vperm.xlu0 %897, %v777
        %v899 = vpop.permute.xlu0 %898
        %902 = vset.pattern.permute.xlu0 0
        %903 = vperm.xlu0 %902, %v778
        %v904 = vpop.permute.xlu0 %903
        %907 = vset.pattern.permute.xlu0 0
        %908 = vperm.xlu0 %907, %v779
        %v909 = vpop.permute.xlu0 %908
        %912 = vset.pattern.permute.xlu0 0
        %913 = vperm.xlu0 %912, %v780
        %v914 = vpop.permute.xlu0 %913
        %917 = vset.pattern.permute.xlu0 0
        %918 = vperm.xlu0 %917, %v781
        %v919 = vpop.permute.xlu0 %918
        %922 = vset.pattern.permute.xlu0 0
        %923 = vperm.xlu0 %922, %v782
        %v924 = vpop.permute.xlu0 %923
        %927 = vset.pattern.permute.xlu0 0
        %928 = vperm.xlu0 %927, %v783
        %v929 = vpop.permute.xlu0 %928
        %v931 = vmul.f32 %v883, %v894
        %v932 = vmul.f32 %v884, %v899
        %v933 = vmul.f32 %v885, %v904
        %v934 = vmul.f32 %v886, %v909
        %v935 = vmul.f32 %v887, %v914
        %v936 = vmul.f32 %v888, %v919
        %v937 = vmul.f32 %v889, %v924
        %v938 = vmul.f32 %v890, %v929
        %v939 = vld [vmem:[#allocation2] sm:$0xff]
        %v941 = vcombine.high %v939, %v939
        %v943 = vunpack.c.l.s4 1966171168
        %v944 = vunpack.c.0.s8 %v943
        %v945 = vlaneseq
        %v946 = vshrl.u32 %v945, 7
        %v947 = vsub.s32 %v944, %v946
        %v948 = vrot.slane %v939, %v947
        %v950 = vunpack.c.l.s4 1966171168
        %v951 = vunpack.c.0.s8 %v950
        %v952 = vlaneseq
        %v953 = vshrl.u32 %v952, 7
        %v954 = vsub.s32 %v951, %v953
        %v955 = vrot.slane %v941, %v954
        %v956 = vcombine.high %v948, %v948
        %v957 = vcombine.high %v955, %v955
        %v959 = vunpack.c.l.s4 1966171168
        %v960 = vunpack.c.0.s8 %v959
        %v961 = vlaneseq
        %v962 = vshrl.u32 %v961, 7
        %v963 = vsub.s32 %v960, %v962
        %v964 = vrot.slane %v948, %v963
        %v966 = vunpack.c.l.s4 1966171168
        %v967 = vunpack.c.0.s8 %v966
        %v968 = vlaneseq
        %v969 = vshrl.u32 %v968, 7
        %v970 = vsub.s32 %v967, %v969
        %v971 = vrot.slane %v955, %v970
        %v973 = vunpack.c.l.s4 1966171168
        %v974 = vunpack.c.0.s8 %v973
        %v975 = vlaneseq
        %v976 = vshrl.u32 %v975, 7
        %v977 = vsub.s32 %v974, %v976
        %v978 = vrot.slane %v956, %v977
        %v980 = vunpack.c.l.s4 1966171168
        %v981 = vunpack.c.0.s8 %v980
        %v982 = vlaneseq
        %v983 = vshrl.u32 %v982, 7
        %v984 = vsub.s32 %v981, %v983
        %v985 = vrot.slane %v957, %v984
        %v986 = vcombine.high %v964, %v964
        %v987 = vcombine.high %v971, %v971
        %v988 = vcombine.high %v978, %v978
        %v989 = vcombine.high %v985, %v985
        %v990 = vlaneseq
        %v991 = vshrl.u32 %v990, 7
        %v992 = vsub.s32 0, %v991
        %v993 = vrot.slane %v964, %v992
        %v994 = vlaneseq
        %v995 = vshrl.u32 %v994, 7
        %v996 = vsub.s32 0, %v995
        %v997 = vrot.slane %v978, %v996
        %v998 = vlaneseq
        %v999 = vshrl.u32 %v998, 7
        %v1000 = vsub.s32 0, %v999
        %v1001 = vrot.slane %v986, %v1000
        %v1002 = vlaneseq
        %v1003 = vshrl.u32 %v1002, 7
        %v1004 = vsub.s32 0, %v1003
        %v1005 = vrot.slane %v988, %v1004
        %v1006 = vlaneseq
        %v1007 = vshrl.u32 %v1006, 7
        %v1008 = vsub.s32 0, %v1007
        %v1009 = vrot.slane %v971, %v1008
        %v1010 = vlaneseq
        %v1011 = vshrl.u32 %v1010, 7
        %v1012 = vsub.s32 0, %v1011
        %v1013 = vrot.slane %v985, %v1012
        %v1014 = vlaneseq
        %v1015 = vshrl.u32 %v1014, 7
        %v1016 = vsub.s32 0, %v1015
        %v1017 = vrot.slane %v987, %v1016
        %v1018 = vlaneseq
        %v1019 = vshrl.u32 %v1018, 7
        %v1020 = vsub.s32 0, %v1019
        %v1021 = vrot.slane %v989, %v1020
        %v1030 = vmul.f32 %v993, %v931
        %v1031 = vmul.f32 %v997, %v932
        %v1032 = vmul.f32 %v1001, %v933
        %v1033 = vmul.f32 %v1005, %v934
        %v1034 = vmul.f32 %v1009, %v935
        %v1035 = vmul.f32 %v1013, %v936
        %v1036 = vmul.f32 %v1017, %v937
        %v1037 = vmul.f32 %v1021, %v938
        %v1038 = vmul.f32 %v1030, %v554
        %v1039 = vmul.f32 %v1031, %v554
        %v1040 = vmul.f32 %v1032, %v554
        %v1041 = vmul.f32 %v1033, %v554
        %v1042 = vmul.f32 %v1034, %v554
        %v1043 = vmul.f32 %v1035, %v554
        %v1044 = vmul.f32 %v1036, %v554
        %v1045 = vmul.f32 %v1037, %v554
        %vm1046 = vcmask 130048
        %v1047 = vsel %vm1046, %v1038, 0.0
        %1048 = vadd.xlane.f32.xlu0 %v1047
        %v1049 = vpop.xlane.xlu0 %1048
        %v1050 = vsel %vm1046, %v1039, 0.0
        %1051 = vadd.xlane.f32.xlu0 %v1050
        %v1052 = vpop.xlane.xlu0 %1051
        %v1053 = vsel %vm1046, %v1040, 0.0
        %1054 = vadd.xlane.f32.xlu0 %v1053
        %v1055 = vpop.xlane.xlu0 %1054
        %v1056 = vsel %vm1046, %v1041, 0.0
        %1057 = vadd.xlane.f32.xlu0 %v1056
        %v1058 = vpop.xlane.xlu0 %1057
        %v1059 = vsel %vm1046, %v1042, 0.0
        %1060 = vadd.xlane.f32.xlu0 %v1059
        %v1061 = vpop.xlane.xlu0 %1060
        %v1062 = vsel %vm1046, %v1043, 0.0
        %1063 = vadd.xlane.f32.xlu0 %v1062
        %v1064 = vpop.xlane.xlu0 %1063
        %v1065 = vsel %vm1046, %v1044, 0.0
        %1066 = vadd.xlane.f32.xlu0 %v1065
        %v1067 = vpop.xlane.xlu0 %1066
        %v1068 = vsel %vm1046, %v1045, 0.0
        %1069 = vadd.xlane.f32.xlu0 %v1068
        %v1070 = vpop.xlane.xlu0 %1069
        %1071 = vxpose.xlu0.b32.start [1/16] %v443, 128
        %1072 = vxpose.xlu0.b32.cont [2/16] 0.0, 128
        %1073 = vxpose.xlu0.b32.cont [3/16] 0.0, 128
        %1074 = vxpose.xlu0.b32.cont [4/16] 0.0, 128
        %1075 = vxpose.xlu0.b32.cont [5/16] 0.0, 128
        %1076 = vxpose.xlu0.b32.cont [6/16] 0.0, 128
        %1077 = vxpose.xlu0.b32.cont [7/16] 0.0, 128
        %1078 = vxpose.xlu0.b32.cont [8/16] 0.0, 128
        %1079 = vxpose.xlu0.b32.cont [9/16] 0.0, 128
        %1080 = vxpose.xlu0.b32.cont [10/16] 0.0, 128
        %1081 = vxpose.xlu0.b32.cont [11/16] 0.0, 128
        %1082 = vxpose.xlu0.b32.cont [12/16] 0.0, 128
        %1083 = vxpose.xlu0.b32.cont [13/16] 0.0, 128
        %1084 = vxpose.xlu0.b32.cont [14/16] 0.0, 128
        %1085 = vxpose.xlu0.b32.cont [15/16] 0.0, 128
        %1086 = vxpose.xlu0.b32.end [16/16] 0.0, 128
        %v1087 = vpop.trf.xlu0
        %v1088 = vpop.trf.xlu0
        %v1089 = vpop.trf.xlu0
        %v1090 = vpop.trf.xlu0
        %v1091 = vpop.trf.xlu0
        %v1092 = vpop.trf.xlu0
        %v1093 = vpop.trf.xlu0
        %v1094 = vpop.trf.xlu0
        %v1095 = vpop.trf.xlu0
        %v1096 = vpop.trf.xlu0
        %v1097 = vpop.trf.xlu0
        %v1098 = vpop.trf.xlu0
        %v1099 = vpop.trf.xlu0
        %v1100 = vpop.trf.xlu0
        %v1101 = vpop.trf.xlu0
        %v1102 = vpop.trf.xlu0
        %1103 = vset.pattern.permute.xlu0 0
        %1104 = vperm.xlu0 %1103, %v442
        %v1105 = vpop.permute.xlu0 %1104
        %v1107 = vlaneseq
        %v1108 = vshrl.u32 %v1107, 7
        %v1109 = vsub.s32 0, %v1108
        %v1110 = vrot.slane %v1087, %v1109
        %v1111 = vmul.f32 %v1105, %v1110
        %vm1112 = vcmp.ne.f32.partialorder %v1111, 0.0
        %v1121 = vlaneseq
        %v1122 = vand.u32 %v1121, 127
        %v1123 = vlaneseq
        %v1124 = vshrl.u32 %v1123, 7
        %v1125 = vsub.s32 %v1122, %v1124
        %v1126 = vrot.slane %v1049, %v1125
        %v1127 = vlaneseq
        %v1128 = vshrl.u32 %v1127, 7
        %v1129 = vsub.s32 %v1122, %v1128
        %v1130 = vrot.slane %v1052, %v1129
        %v1131 = vlaneseq
        %v1132 = vshrl.u32 %v1131, 7
        %v1133 = vsub.s32 %v1122, %v1132
        %v1134 = vrot.slane %v1055, %v1133
        %v1135 = vlaneseq
        %v1136 = vshrl.u32 %v1135, 7
        %v1137 = vsub.s32 %v1122, %v1136
        %v1138 = vrot.slane %v1058, %v1137
        %v1139 = vlaneseq
        %v1140 = vshrl.u32 %v1139, 7
        %v1141 = vsub.s32 %v1122, %v1140
        %v1142 = vrot.slane %v1061, %v1141
        %v1143 = vlaneseq
        %v1144 = vshrl.u32 %v1143, 7
        %v1145 = vsub.s32 %v1122, %v1144
        %v1146 = vrot.slane %v1064, %v1145
        %v1147 = vlaneseq
        %v1148 = vshrl.u32 %v1147, 7
        %v1149 = vsub.s32 %v1122, %v1148
        %v1150 = vrot.slane %v1067, %v1149
        %v1151 = vlaneseq
        %v1152 = vshrl.u32 %v1151, 7
        %v1153 = vsub.s32 %v1122, %v1152
        %v1154 = vrot.slane %v1070, %v1153
        %vm1155 = vcmask 1041409
        %v1156 = vsel %vm1155, %v1130, %v1126
        %vm1157 = vcmask 1042434
        %v1158 = vsel %vm1157, %v1134, %v1156
        %vm1159 = vcmask 1043459
        %v1160 = vsel %vm1159, %v1138, %v1158
        %vm1161 = vcmask 1044484
        %v1162 = vsel %vm1161, %v1142, %v1160
        %vm1163 = vcmask 1045509
        %v1164 = vsel %vm1163, %v1146, %v1162
        %vm1165 = vcmask 1046534
        %v1166 = vsel %vm1165, %v1150, %v1164
        %vm1167 = vcmask 1047559
        %v1168 = vsel %vm1167, %v1154, %v1166
        %v1170 = vsel %vm1112, %v1168, -1e+09
        %vm1171 = vcmask 64512
        %v1172 = vsel %vm1171, %v1170, -inf
        %v1173 = vrot.slane %v1172, 4
        %v1174 = vmax.f32 %v1172, %v1173
        %v1175 = vrot.slane %v1174, 2
        %v1176 = vmax.f32 %v1174, %v1175
        %v1177 = vrot.slane %v1176, 1
        %v1178 = vmax.f32 %v1176, %v1177
        %v1179 = vsub.f32 %v1170, %v1178
        %v1180 = vmul.f32 %v1179, 1.442695
        %v1181 = vpow.pop %v1180
        %v1182 = vsel %vm1171, %v1181, 0.0
        %v1183 = vrot.slane %v1182, 4
        %v1184 = vadd.f32 %v1182, %v1183
        %v1185 = vrot.slane %v1184, 2
        %v1186 = vadd.f32 %v1184, %v1185
        %v1187 = vrot.slane %v1186, 1
        %v1188 = vadd.f32 %v1186, %v1187
        %v1189 = vrcp.pop %v1188
        %v1190 = vmul.f32 %v1181, %v1189
        %v1191 = vld [vmem:[#allocation7] sm:$0xff]
        %v1193 = vsel %vm1171, %v1190, 0
        %1195 = vmatprep.subr.mxu0 0.0
        %1196 = vmatpush1.msra.mxu0 0.0
        %1197 = vmatprep.subr.mxu0 0.0
        %1198 = vmatpush1.msra.mxu0 0.0
        %1199 = vmatprep.subr.mxu0 0.0
        %1200 = vmatpush1.msra.mxu0 0.0
        %1201 = vmatprep.subr.mxu0 0.0
        %1202 = vmatpush1.msra.mxu0 0.0
        %1203 = vmatprep.subr.mxu0 0.0
        %1204 = vmatpush1.msra.mxu0 0.0
        %1205 = vmatprep.subr.mxu0 0.0
        %1206 = vmatpush1.msra.mxu0 0.0
        %1207 = vmatprep.subr.mxu0 0.0
        %1208 = vmatpush1.msra.mxu0 0.0
        %1209 = vmatprep.subr.mxu0 0.0
        %1210 = vmatpush1.msra.mxu0 0.0
        %1211 = vmatprep.subr.mxu0 0.0
        %1212 = vmatpush1.msra.mxu0 0.0
        %1213 = vmatprep.subr.mxu0 0.0
        %1214 = vmatpush1.msra.mxu0 0.0
        %1215 = vmatprep.subr.mxu0 0.0
        %1216 = vmatpush1.msra.mxu0 0.0
        %1217 = vmatprep.subr.mxu0 0.0
        %1218 = vmatpush1.msra.mxu0 0.0
        %1219 = vmatprep.subr.mxu0 0.0
        %1220 = vmatpush1.msra.mxu0 0.0
        %1221 = vmatprep.subr.mxu0 0.0
        %1222 = vmatpush1.msra.mxu0 0.0
        %1223 = vmatprep.subr.mxu0 0.0
        %1224 = vmatpush1.msra.mxu0 0.0
        %1225 = vmatprep.subr.mxu0 0.0
        %1226 = vmatpush1.msra.mxu0 %v556
        %1227 = vmatprep.subr.mxu0 0.0
        %1228 = vmatpush2.msra.mxu0 0.0
        %1229 = vmatprep.subr.mxu0 0.0
        %1230 = vmatpush2.msra.mxu0 0.0
        %1231 = vmatprep.subr.mxu0 0.0
        %1232 = vmatpush2.msra.mxu0 0.0
        %1233 = vmatprep.subr.mxu0 0.0
        %1234 = vmatpush2.msra.mxu0 0.0
        %1235 = vmatprep.subr.mxu0 0.0
        %1236 = vmatpush2.msra.mxu0 0.0
        %1237 = vmatprep.subr.mxu0 0.0
        %1238 = vmatpush2.msra.mxu0 0.0
        %1239 = vmatprep.subr.mxu0 0.0
        %1240 = vmatpush2.msra.mxu0 0.0
        %1241 = vmatprep.subr.mxu0 0.0
        %1242 = vmatpush2.msra.mxu0 0.0
        %1243 = vmatprep.subr.mxu0 0.0
        %1244 = vmatpush2.msra.mxu0 0.0
        %1245 = vmatprep.subr.mxu0 0.0
        %1246 = vmatpush2.msra.mxu0 0.0
        %1247 = vmatprep.subr.mxu0 0.0
        %1248 = vmatpush2.msra.mxu0 0.0
        %1249 = vmatprep.subr.mxu0 0.0
        %1250 = vmatpush2.msra.mxu0 0.0
        %1251 = vmatprep.subr.mxu0 0.0
        %1252 = vmatpush2.msra.mxu0 0.0
        %1253 = vmatprep.subr.mxu0 0.0
        %1254 = vmatpush2.msra.mxu0 0.0
        %1255 = vmatprep.subr.mxu0 0.0
        %1256 = vmatpush2.msra.mxu0 0.0
        %1257 = vmatprep.subr.mxu0 0.0
        %1258 = vmatpush2.msra.mxu0 0.0
        %1259 = vmatprep.mubr.f32.mxu0 0.0
        %1260 = vmatmul.mubr.f32.gmra.mxu0 %v1193
        %v1261 = vpop.f32.mrf.mxu0
        %v1262 = vadd.f32 0.0, %v1261
        %v1263 = vpop.f32.mrf.mxu0
        %1264 = vdwg.mxu0
        %v1265 = vadd.f32 %v1191, %v1262
        %1266 = vst.msk [vmem:[#allocation7] sm:$0xff] %vm1046, %v1265
        // Predicated region
        $region61: #{tpu_custom_call.1} parent=51 // pred_check
          %p1267 = pneg %p444
        $region62: #{tpu_custom_call.1} parent=51 // pred_check_branch
          %1269 = sbr.rel (%p1267) target = $region64
        $region63: #{tpu_custom_call.1} parent=51 // pred_region
          %v1270 = vld [vmem:[#allocation7] sm:$0xff]
          %v1271 = vmul.f32 %v1270, %v1105
          %1272 = vst.msk [vmem:[%s418] sm:$0xff] %vm1046, %v1271
        $region64: #{tpu_custom_call.1} parent=51 // pred_fallthru
          _
        %v1273 = vpack.c.bf16 %v931, %v931
        %v1274 = vpack.c.bf16 %v932, %v932
        %v1275 = vpack.c.bf16 %v933, %v933
        %v1276 = vpack.c.bf16 %v934, %v934
        %v1277 = vpack.c.bf16 %v935, %v935
        %v1278 = vpack.c.bf16 %v936, %v936
        %v1279 = vpack.c.bf16 %v937, %v937
        %v1280 = vpack.c.bf16 %v938, %v938
        %v1281 = vcombine.low %v1273, %v1277
        %v1283 = vunpack.c.l.s4 1983009808
        %v1284 = vunpack.c.0.s8 %v1283
        %v1285 = vlaneseq
        %v1286 = vshrl.u32 %v1285, 7
        %v1287 = vsub.s32 %v1284, %v1286
        %v1288 = vrot.slane %v1281, %v1287
        %v1289 = vcombine.low %v1275, %v1279
        %v1291 = vunpack.c.l.s4 1983009808
        %v1292 = vunpack.c.0.s8 %v1291
        %v1293 = vlaneseq
        %v1294 = vshrl.u32 %v1293, 7
        %v1295 = vsub.s32 %v1292, %v1294
        %v1296 = vrot.slane %v1289, %v1295
        %v1297 = vcombine.low %v1288, %v1296
        %v1298 = vcombine.high %v1288, %v1296
        %v1300 = vunpack.c.l.s4 1934713408
        %v1301 = vunpack.c.0.s8 %v1300
        %v1302 = vlaneseq
        %v1303 = vshrl.u32 %v1302, 7
        %v1304 = vsub.s32 %v1301, %v1303
        %v1305 = vrot.slane %v1297, %v1304
        %v1307 = vunpack.c.l.s4 1934713408
        %v1308 = vunpack.c.0.s8 %v1307
        %v1309 = vlaneseq
        %v1310 = vshrl.u32 %v1309, 7
        %v1311 = vsub.s32 %v1308, %v1310
        %v1312 = vrot.slane %v1298, %v1311
        %v1313 = vcombine.high %v1305, 0
        %v1314 = vcombine.high %v1312, 0
        %v1315 = vcombine.low %v1274, %v1278
        %v1317 = vunpack.c.l.s4 1983009808
        %v1318 = vunpack.c.0.s8 %v1317
        %v1319 = vlaneseq
        %v1320 = vshrl.u32 %v1319, 7
        %v1321 = vsub.s32 %v1318, %v1320
        %v1322 = vrot.slane %v1315, %v1321
        %v1323 = vcombine.low %v1276, %v1280
        %v1325 = vunpack.c.l.s4 1983009808
        %v1326 = vunpack.c.0.s8 %v1325
        %v1327 = vlaneseq
        %v1328 = vshrl.u32 %v1327, 7
        %v1329 = vsub.s32 %v1326, %v1328
        %v1330 = vrot.slane %v1323, %v1329
        %v1331 = vcombine.low %v1322, %v1330
        %v1332 = vcombine.high %v1322, %v1330
        %v1334 = vunpack.c.l.s4 1934713408
        %v1335 = vunpack.c.0.s8 %v1334
        %v1336 = vlaneseq
        %v1337 = vshrl.u32 %v1336, 7
        %v1338 = vsub.s32 %v1335, %v1337
        %v1339 = vrot.slane %v1331, %v1338
        %v1341 = vunpack.c.l.s4 1934713408
        %v1342 = vunpack.c.0.s8 %v1341
        %v1343 = vlaneseq
        %v1344 = vshrl.u32 %v1343, 7
        %v1345 = vsub.s32 %v1342, %v1344
        %v1346 = vrot.slane %v1332, %v1345
        %v1347 = vcombine.high %v1339, 0
        %v1348 = vcombine.high %v1346, 0
        %v1351 = vpack.i.b16 %v1339, %v1305
        %v1352 = vshrl.u32 %v1305, 16
        %v1353 = vshrl.u32 %v1339, 16
        %v1354 = vpack.i.b16 %v1353, %v1352
        %v1357 = vpack.i.b16 %v1347, %v1313
        %v1358 = vshrl.u32 %v1313, 16
        %v1359 = vshrl.u32 %v1347, 16
        %v1360 = vpack.i.b16 %v1359, %v1358
        %v1363 = vpack.i.b16 %v1346, %v1312
        %v1364 = vshrl.u32 %v1312, 16
        %v1365 = vshrl.u32 %v1346, 16
        %v1366 = vpack.i.b16 %v1365, %v1364
        %v1369 = vpack.i.b16 %v1348, %v1314
        %v1370 = vshrl.u32 %v1314, 16
        %v1371 = vshrl.u32 %v1348, 16
        %v1372 = vpack.i.b16 %v1371, %v1370
        %1373 = vrot.lane.b32.xlu0 %v1354, 16
        %v1374 = vpop.permute.xlu0 %1373
        %1375 = vrot.lane.b32.xlu0 %v1357, 32
        %v1376 = vpop.permute.xlu0 %1375
        %1377 = vrot.lane.b32.xlu0 %v1360, 48
        %v1378 = vpop.permute.xlu0 %1377
        %1379 = vrot.lane.b32.xlu0 %v1363, 64
        %v1380 = vpop.permute.xlu0 %1379
        %1381 = vrot.lane.b32.xlu0 %v1366, 80
        %v1382 = vpop.permute.xlu0 %1381
        %1383 = vrot.lane.b32.xlu0 %v1369, 96
        %v1384 = vpop.permute.xlu0 %1383
        %1385 = vrot.lane.b32.xlu0 %v1372, 112
        %v1386 = vpop.permute.xlu0 %1385
        %v1389 = vsel %vm1046, %v1351, %v1374
        %v1391 = vsel %vm608, %v1389, %v1376
        %vm1392 = vcmask 392192
        %v1394 = vsel %vm1392, %v1391, %v1378
        %vm1395 = vcmask 523264
        %v1397 = vsel %vm1395, %v1394, %v1380
        %vm1398 = vcmask 654336
        %v1400 = vsel %vm1398, %v1397, %v1382
        %vm1401 = vcmask 785408
        %v1403 = vsel %vm1401, %v1400, %v1384
        %vm1404 = vcmask 916480
        %v1406 = vsel %vm1404, %v1403, %v1386
        %1408 = vst [vmem:[%s425] sm:$0xf] %v1406
        %s1409 = sand.u32 %s242, 1
        %s1410 = scalar_lea.sflag [#allocation10], %s1409
        %s1411 = sand.u32 %s242, 1
        %s1412 = smul.addr %s1411, 8
        %s1413 = scalar_lea.vmem [#allocation11], %s1412
        %s1414 = sand.u32 %s270, 1
        %s1415 = scalar_lea.sflag [#allocation13], %s1414
        %s1416 = sand.u32 %s270, 1
        %s1417 = smul.addr %s1416, 4
        %s1418 = scalar_lea.vmem [#allocation12], %s1417
        // Predicated region
        $region65: #{tpu_custom_call.1} parent=51 // pred_check
          %p1419 = pneg %p252
        $region66: #{tpu_custom_call.1} parent=51 // pred_check_branch
          %1421 = sbr.rel (%p1419) target = $region68
        $region67: #{tpu_custom_call.1} parent=51 // pred_region
          %s1423 = ssub.s32 128, 128
          %1424 = vsyncadd %s1410, %s1423
          %s1425 = smul.addr %s34, 128
          %s1426 = scalar_lea.hbm %s8, %s1425
          %s1428 = sshll.u32 %s1413, 4
          %s1429 = int_to_ptr.vmem [resolvable:$true] %s1428
          %1431 = dma.vmem_to_hbm [thread:$0]  %s1429, 128, %s1426, %s1410
        $region68: #{tpu_custom_call.1} parent=51 // pred_fallthru
          _
        // Predicated region
        $region69: #{tpu_custom_call.1} parent=51 // pred_check
          %p1432 = pneg %p280
        $region70: #{tpu_custom_call.1} parent=51 // pred_check_branch
          %1434 = sbr.rel (%p1432) target = $region72
        $region71: #{tpu_custom_call.1} parent=51 // pred_region
          %s1436 = ssub.s32 64, 64
          %1437 = vsyncadd %s1415, %s1436
          %s1438 = sadd.s32 %s35, %s34
          %s1439 = smul.addr %s1438, 64
          %s1440 = scalar_lea.hbm %s9, %s1439
          %s1442 = sshll.u32 %s1418, 4
          %s1443 = int_to_ptr.vmem [resolvable:$true] %s1442
          %1445 = dma.vmem_to_hbm [thread:$0]  %s1443, 64, %s1440, %s1415
        $region72: #{tpu_custom_call.1} parent=51 // pred_fallthru
          _
      $region52: #{tpu_custom_call.1} parent=5 // pred_fallthru
        _
      %p1446 = scmp.le.s32.totalorder 2, %s25
      // Predicated region
      $region73: #{tpu_custom_call.1} parent=5 // pred_check
        %p1447 = pneg %p1446
      $region74: #{tpu_custom_call.1} parent=5 // pred_check_branch
        %1449 = sbr.rel (%p1447) target = $region76
      $region75: #{tpu_custom_call.1} parent=5 // pred_region
        %s1450 = ssub.s32 %s25, 2
        // Predicated region
        $region77: #{tpu_custom_call.1} parent=75 // pred_check
          %p1451 = pneg %p258
        $region78: #{tpu_custom_call.1} parent=75 // pred_check_branch
          %1453 = sbr.rel (%p1451) target = $region80
        $region79: #{tpu_custom_call.1} parent=75 // pred_region
          %s1454 = sand.u32 %s243, 1
          %s1455 = scalar_lea.sflag [#allocation10], %s1454
          %s1456 = sand.u32 %s243, 1
          %s1457 = smul.addr %s1456, 8
          %s1458 = scalar_lea.vmem [#allocation11], %s1457
          %1459 = dma.done %s1455, 128
        $region80: #{tpu_custom_call.1} parent=75 // pred_fallthru
          _
        // Predicated region
        $region81: #{tpu_custom_call.1} parent=75 // pred_check
          %p1460 = pneg %p286
        $region82: #{tpu_custom_call.1} parent=75 // pred_check_branch
          %1462 = sbr.rel (%p1460) target = $region84
        $region83: #{tpu_custom_call.1} parent=75 // pred_region
          %s1463 = sand.u32 %s271, 1
          %s1464 = scalar_lea.sflag [#allocation13], %s1463
          %s1465 = sand.u32 %s271, 1
          %s1466 = smul.addr %s1465, 4
          %s1467 = scalar_lea.vmem [#allocation12], %s1466
          %1468 = dma.done %s1464, 64
        $region84: #{tpu_custom_call.1} parent=75 // pred_fallthru
          _
      $region76: #{tpu_custom_call.1} parent=5 // pred_fallthru
        _
    $region6: #{tpu_custom_call.1} parent=1 // loop_footer
      %s29 = sadd.s32 1, %s25
    $region7: #{tpu_custom_call.1} parent=1 // loop_footer_branch
      %24 = sbr.rel target = $region3
    $region8: #{tpu_custom_call.1} parent=1 // loop_exit
      _
    %1469 = vsyncpa [#allocation9], 1
    %s1470 = scalar_lea.sflag [#allocation9], 1
    %1471 = vsyncpa %s1470, 1
    %1472 = vsyncpa [#allocation10], 1
    %s1473 = scalar_lea.sflag [#allocation10], 1
    %1474 = vsyncpa %s1473, 1
    %1475 = vsyncpa [#allocation13], 1
    %s1476 = scalar_lea.sflag [#allocation13], 1
    %1477 = vsyncpa %s1476, 1

// kernel: tpu_custom_call.1
$region0: #{tpu_custom_call.1}
  #allocation0 [shape = 'u32[]', space=smem, size = 0x4, offset = 0x4, fixed_abs, tag = 'smem constant byte address 0x4 - core index']
  #allocation1 [shape = 'u32[144,128]{1,0:T(1,128)}', space=vmem, size = 0x12000, scoped, tag = 'internal scratch']
  #allocation2 [shape = 'f32[8,16]{1,0:T(8,128)}', space=vmem, size = 0x1000, scoped, tag = 'scratch operand']
  #allocation3 [shape = 'f32[8,16]{1,0:T(8,128)}', space=vmem, size = 0x1000, scoped, tag = 'scratch operand']
  #allocation4 [shape = 'f32[8,16]{1,0:T(8,128)}', space=vmem, size = 0x1000, scoped, tag = 'scratch operand']
  #allocation5 [shape = 'f32[8,16]{1,0:T(8,128)}', space=vmem, size = 0x1000, scoped, tag = 'scratch operand']
  #allocation6 [shape = 'f32[8,16]{1,0:T(8,128)}', space=vmem, size = 0x1000, scoped, tag = 'scratch operand']
  #allocation7 [shape = 'f32[8,16]{1,0:T(8,128)}', space=vmem, size = 0x1000, scoped, tag = 'scratch operand']
  %s0 = inlined_call_operand.vmem [shape: bf16[2,8,32], index: 0, kind: input, shape index: {}]
  %s1 = inlined_call_operand.hbm [shape: bf16[2,8,8,32], index: 1, kind: input, shape index: {}]
  %s2 = inlined_call_operand.vmem [shape: f32[2,8,1], index: 2, kind: input, shape index: {}]
  %s3 = inlined_call_operand.vmem [shape: f32[2,8,1], index: 3, kind: input, shape index: {}]
  %s4 = inlined_call_operand.vmem [shape: bf16[32,80], index: 4, kind: input, shape index: {}]
  %s5 = inlined_call_operand.vmem [shape: f32[1,80], index: 5, kind: input, shape index: {}]
  %s6 = inlined_call_operand.vmem [shape: bf16[32,16], index: 6, kind: input, shape index: {}]
  %s7 = inlined_call_operand.vmem [shape: f32[1,16], index: 7, kind: input, shape index: {}]
  %s8 = inlined_call_operand.hbm [shape: f32[2,8,16], index: 8, kind: output, shape index: {0}]
  %s9 = inlined_call_operand.hbm [shape: bf16[2,8,8,16], index: 9, kind: output, shape index: {1}]
  %10 = xla_tuple %s8, %s9
  %s11 = sld [smem:[#allocation0]]
  $region85: #{tpu_custom_call.1} parent=0
    _
  %s13 = ssub.s32 1, %s11
  %s14 = scalar_select 0, %s13, %s11
  $region1: #{tpu_custom_call.1} parent=0
    #allocation8 [shape = 'u8[32768]{0}', space=vmem, size = 0x8000, scoped, tag = 'input window, operand 1']
    #allocation9 [shape = 's32[2]{0}', space=sflag, size = 0x8, scoped, tag = 'scoped memory for tpu_custom_call.1']
    #allocation10 [shape = 's32[2]{0}', space=sflag, size = 0x8, scoped, tag = 'scoped memory for tpu_custom_call.1']
    #allocation11 [shape = 'u8[8192]{0}', space=vmem, size = 0x2000, scoped, tag = 'output window, operand 0']
    #allocation12 [shape = 'u8[32768]{0}', space=vmem, size = 0x8000, scoped, tag = 'output window, operand 1']
    #allocation13 [shape = 's32[2]{0}', space=sflag, size = 0x8, scoped, tag = 'scoped memory for tpu_custom_call.1']
    %15 = vsyncpa [#allocation9], 0
    %s16 = scalar_lea.sflag [#allocation9], 1
    %17 = vsyncpa %s16, 0
    %18 = vsyncpa [#allocation10], 0
    %s19 = scalar_lea.sflag [#allocation10], 1
    %20 = vsyncpa %s19, 0
    %21 = vsyncpa [#allocation13], 0
    %s22 = scalar_lea.sflag [#allocation13], 1
    %23 = vsyncpa %s22, 0
    loop: start=0, step=1, limit=4
    $region2: #{tpu_custom_call.1} parent=1 // loop_pre_header
      _
    $region3: #{tpu_custom_call.1} parent=1 // loop_header
      %s25 = sphi 0, %s29
      %p26 = scmp.ge.s32.totalorder %s25, 4
      %s32 = sphi 0, %s44
      %s33 = sphi 0, %s40
      %s34 = sphi 0, %s32
      %s35 = sphi 0, %s33
      %s36 = sphi 0, %s34
      %s37 = sphi 0, %s35
      %s47 = sphi 0, %s49
      %s50 = sphi 0, %s47
      %s51 = sphi 0, %s50
      %s67 = sphi 0, %s51
      %s75 = sphi 0, %s77
      %s78 = sphi 0, %s75
      %s79 = sphi 0, %s78
      %s95 = sphi 0, %s79
      %s101 = sphi 0, %s103
      %s104 = sphi 0, %s101
      %s105 = sphi 0, %s104
      %s121 = sphi 0, %s105
      %s129 = sphi 0, %s131
      %s132 = sphi 0, %s129
      %s133 = sphi 0, %s132
      %s149 = sphi 0, %s133
      %s153 = sphi 0, %s153
      %s155 = sphi 0, %s153
      %s156 = sphi 0, %s155
      %s170 = sphi 0, %s156
      %s174 = sphi 0, %s174
      %s176 = sphi 0, %s174
      %s177 = sphi 0, %s176
      %s191 = sphi 0, %s177
      %s195 = sphi 0, %s195
      %s197 = sphi 0, %s195
      %s198 = sphi 0, %s197
      %s212 = sphi 0, %s198
      %s216 = sphi 0, %s216
      %s218 = sphi 0, %s216
      %s219 = sphi 0, %s218
      %s233 = sphi 0, %s219
      %s239 = sphi 0, %s241
      %s242 = sphi 0, %s239
      %s243 = sphi 0, %s242
      %s259 = sphi 0, %s243
      %s267 = sphi 0, %s269
      %s270 = sphi 0, %s267
      %s271 = sphi 0, %s270
      %s287 = sphi 0, %s271
    $region4: #{tpu_custom_call.1} parent=1 // loop_header_branch
      %28 = sbr.rel (%p26) target = $region8
    $region5: #{tpu_custom_call.1} parent=1 // loop_body
      %s30 = ssub.s32 %s25, 1
      %s31 = ssub.s32 %s25, 2
      %s38 = sadd.s32 1, %s33
      %p39 = scmp.ge.s32.totalorder %s38, 1
      %s40 = scalar_select %p39, 0, %s38
      %s41 = sadd.s32 1, %s32
      %s42 = scalar_select %p39, %s41, %s32
      %p43 = scmp.ge.s32.totalorder %s42, 2
      %s44 = scalar_select %p43, 0, %s42
      %s45 = ssub.s32 %s32, %s44
      %p46 = scmp.eq.s32.totalorder %s45, 0
      %s48 = sadd.s32 %s47, 1
      %s49 = scalar_select %p46, %s47, %s48
      %p52 = pneg %p46
      %p53 = scmp.eq.s32.totalorder %s25, 1
      %p54 = por %p52, %p53
      %p55 = scmp.ne.s32.totalorder %s47, %s50
      %p56 = scmp.eq.s32.totalorder %s25, 0
      %p57 = por %p55, %p56
      %p58 = scmp.ne.s32.totalorder %s47, %s50
      %p59 = scmp.eq.s32.totalorder %s30, 1
      %p60 = por %p58, %p59
      %p61 = scmp.ne.s32.totalorder %s50, %s51
      %p62 = scmp.eq.s32.totalorder %s30, 0
      %p63 = por %p61, %p62
      %p64 = scmp.ne.s32.totalorder %s50, %s51
      %p65 = scmp.eq.s32.totalorder %s31, 1
      %p66 = por %p64, %p65
      %p68 = scmp.ne.s32.totalorder %s51, %s67
      %p69 = scmp.eq.s32.totalorder %s31, 0
      %p70 = por %p68, %p69
      %s71 = ssub.s32 %s32, %s44
      %s72 = ssub.s32 %s33, %s40
      %s73 = sor.u32 %s71, %s72
      %p74 = scmp.eq.s32.totalorder %s73, 0
      %s76 = sadd.s32 %s75, 1
      %s77 = scalar_select %p74, %s75, %s76
      %p80 = pneg %p74
      %p81 = scmp.eq.s32.totalorder %s25, 1
      %p82 = por %p80, %p81
      %p83 = scmp.ne.s32.totalorder %s75, %s78
      %p84 = scmp.eq.s32.totalorder %s25, 0
      %p85 = por %p83, %p84
      %p86 = scmp.ne.s32.totalorder %s75, %s78
      %p87 = scmp.eq.s32.totalorder %s30, 1
      %p88 = por %p86, %p87
      %p89 = scmp.ne.s32.totalorder %s78, %s79
      %p90 = scmp.eq.s32.totalorder %s30, 0
      %p91 = por %p89, %p90
      %p92 = scmp.ne.s32.totalorder %s78, %s79
      %p93 = scmp.eq.s32.totalorder %s31, 1
      %p94 = por %p92, %p93
      %p96 = scmp.ne.s32.totalorder %s79, %s95
      %p97 = scmp.eq.s32.totalorder %s31, 0
      %p98 = por %p96, %p97
      %s99 = ssub.s32 %s32, %s44
      %p100 = scmp.eq.s32.totalorder %s99, 0
      %s102 = sadd.s32 %s101, 1
      %s103 = scalar_select %p100, %s101, %s102
      %p106 = pneg %p100
      %p107 = scmp.eq.s32.totalorder %s25, 1
      %p108 = por %p106, %p107
      %p109 = scmp.ne.s32.totalorder %s101, %s104
      %p110 = scmp.eq.s32.totalorder %s25, 0
      %p111 = por %p109, %p110
      %p112 = scmp.ne.s32.totalorder %s101, %s104
      %p113 = scmp.eq.s32.totalorder %s30, 1
      %p114 = por %p112, %p113
      %p115 = scmp.ne.s32.totalorder %s104, %s105
      %p116 = scmp.eq.s32.totalorder %s30, 0
      %p117 = por %p115, %p116
      %p118 = scmp.ne.s32.totalorder %s104, %s105
      %p119 = scmp.eq.s32.totalorder %s31, 1
      %p120 = por %p118, %p119
      %p122 = scmp.ne.s32.totalorder %s105, %s121
      %p123 = scmp.eq.s32.totalorder %s31, 0
      %p124 = por %p122, %p123
      %s125 = ssub.s32 %s32, %s44
      %s126 = ssub.s32 %s33, %s40
      %s127 = sor.u32 %s125, %s126
      %p128 = scmp.eq.s32.totalorder %s127, 0
      %s130 = sadd.s32 %s129, 1
      %s131 = scalar_select %p128, %s129, %s130
      %p134 = pneg %p128
      %p135 = scmp.eq.s32.totalorder %s25, 1
      %p136 = por %p134, %p135
      %p137 = scmp.ne.s32.totalorder %s129, %s132
      %p138 = scmp.eq.s32.totalorder %s25, 0
      %p139 = por %p137, %p138
      %p140 = scmp.ne.s32.totalorder %s129, %s132
      %p141 = scmp.eq.s32.totalorder %s30, 1
      %p142 = por %p140, %p141
      %p143 = scmp.ne.s32.totalorder %s132, %s133
      %p144 = scmp.eq.s32.totalorder %s30, 0
      %p145 = por %p143, %p144
      %p146 = scmp.ne.s32.totalorder %s132, %s133
      %p147 = scmp.eq.s32.totalorder %s31, 1
      %p148 = por %p146, %p147
      %p150 = scmp.ne.s32.totalorder %s133, %s149
      %p151 = scmp.eq.s32.totalorder %s31, 0
      %p152 = por %p150, %p151
      %s154 = sadd.s32 %s153, 1
      %p157 = scmp.eq.s32.totalorder %s25, 1
      %p158 = scmp.ne.s32.totalorder %s153, %s155
      %p159 = scmp.eq.s32.totalorder %s25, 0
      %p160 = por %p158, %p159
      %p161 = scmp.ne.s32.totalorder %s153, %s155
      %p162 = scmp.eq.s32.totalorder %s30, 1
      %p163 = por %p161, %p162
      %p164 = scmp.ne.s32.totalorder %s155, %s156
      %p165 = scmp.eq.s32.totalorder %s30, 0
      %p166 = por %p164, %p165
      %p167 = scmp.ne.s32.totalorder %s155, %s156
      %p168 = scmp.eq.s32.totalorder %s31, 1
      %p169 = por %p167, %p168
      %p171 = scmp.ne.s32.totalorder %s156, %s170
      %p172 = scmp.eq.s32.totalorder %s31, 0
      %p173 = por %p171, %p172
      %s175 = sadd.s32 %s174, 1
      %p178 = scmp.eq.s32.totalorder %s25, 1
      %p179 = scmp.ne.s32.totalorder %s174, %s176
      %p180 = scmp.eq.s32.totalorder %s25, 0
      %p181 = por %p179, %p180
      %p182 = scmp.ne.s32.totalorder %s174, %s176
      %p183 = scmp.eq.s32.totalorder %s30, 1
      %p184 = por %p182, %p183
      %p185 = scmp.ne.s32.totalorder %s176, %s177
      %p186 = scmp.eq.s32.totalorder %s30, 0
      %p187 = por %p185, %p186
      %p188 = scmp.ne.s32.totalorder %s176, %s177
      %p189 = scmp.eq.s32.totalorder %s31, 1
      %p190 = por %p188, %p189
      %p192 = scmp.ne.s32.totalorder %s177, %s191
      %p193 = scmp.eq.s32.totalorder %s31, 0
      %p194 = por %p192, %p193
      %s196 = sadd.s32 %s195, 1
      %p199 = scmp.eq.s32.totalorder %s25, 1
      %p200 = scmp.ne.s32.totalorder %s195, %s197
      %p201 = scmp.eq.s32.totalorder %s25, 0
      %p202 = por %p200, %p201
      %p203 = scmp.ne.s32.totalorder %s195, %s197
      %p204 = scmp.eq.s32.totalorder %s30, 1
      %p205 = por %p203, %p204
      %p206 = scmp.ne.s32.totalorder %s197, %s198
      %p207 = scmp.eq.s32.totalorder %s30, 0
      %p208 = por %p206, %p207
      %p209 = scmp.ne.s32.totalorder %s197, %s198
      %p210 = scmp.eq.s32.totalorder %s31, 1
      %p211 = por %p209, %p210
      %p213 = scmp.ne.s32.totalorder %s198, %s212
      %p214 = scmp.eq.s32.totalorder %s31, 0
      %p215 = por %p213, %p214
      %s217 = sadd.s32 %s216, 1
      %p220 = scmp.eq.s32.totalorder %s25, 1
      %p221 = scmp.ne.s32.totalorder %s216, %s218
      %p222 = scmp.eq.s32.totalorder %s25, 0
      %p223 = por %p221, %p222
      %p224 = scmp.ne.s32.totalorder %s216, %s218
      %p225 = scmp.eq.s32.totalorder %s30, 1
      %p226 = por %p224, %p225
      %p227 = scmp.ne.s32.totalorder %s218, %s219
      %p228 = scmp.eq.s32.totalorder %s30, 0
      %p229 = por %p227, %p228
      %p230 = scmp.ne.s32.totalorder %s218, %s219
      %p231 = scmp.eq.s32.totalorder %s31, 1
      %p232 = por %p230, %p231
      %p234 = scmp.ne.s32.totalorder %s219, %s233
      %p235 = scmp.eq.s32.totalorder %s31, 0
      %p236 = por %p234, %p235
      %s237 = ssub.s32 %s32, %s44
      %p238 = scmp.eq.s32.totalorder %s237, 0
      %s240 = sadd.s32 %s239, 1
      %s241 = scalar_select %p238, %s239, %s240
      %p244 = pneg %p238
      %p245 = scmp.eq.s32.totalorder %s25, 1
      %p246 = por %p244, %p245
      %p247 = scmp.ne.s32.totalorder %s239, %s242
      %p248 = scmp.eq.s32.totalorder %s25, 0
      %p249 = por %p247, %p248
      %p250 = scmp.ne.s32.totalorder %s239, %s242
      %p251 = scmp.eq.s32.totalorder %s30, 1
      %p252 = por %p250, %p251
      %p253 = scmp.ne.s32.totalorder %s242, %s243
      %p254 = scmp.eq.s32.totalorder %s30, 0
      %p255 = por %p253, %p254
      %p256 = scmp.ne.s32.totalorder %s242, %s243
      %p257 = scmp.eq.s32.totalorder %s31, 1
      %p258 = por %p256, %p257
      %p260 = scmp.ne.s32.totalorder %s243, %s259
      %p261 = scmp.eq.s32.totalorder %s31, 0
      %p262 = por %p260, %p261
      %s263 = ssub.s32 %s32, %s44
      %s264 = ssub.s32 %s33, %s40
      %s265 = sor.u32 %s263, %s264
      %p266 = scmp.eq.s32.totalorder %s265, 0
      %s268 = sadd.s32 %s267, 1
      %s269 = scalar_select %p266, %s267, %s268
      %p272 = pneg %p266
      %p273 = scmp.eq.s32.totalorder %s25, 1
      %p274 = por %p272, %p273
      %p275 = scmp.ne.s32.totalorder %s267, %s270
      %p276 = scmp.eq.s32.totalorder %s25, 0
      %p277 = por %p275, %p276
      %p278 = scmp.ne.s32.totalorder %s267, %s270
      %p279 = scmp.eq.s32.totalorder %s30, 1
      %p280 = por %p278, %p279
      %p281 = scmp.ne.s32.totalorder %s270, %s271
      %p282 = scmp.eq.s32.totalorder %s30, 0
      %p283 = por %p281, %p282
      %p284 = scmp.ne.s32.totalorder %s270, %s271
      %p285 = scmp.eq.s32.totalorder %s31, 1
      %p286 = por %p284, %p285
      %p288 = scmp.ne.s32.totalorder %s271, %s287
      %p289 = scmp.eq.s32.totalorder %s31, 0
      %p290 = por %p288, %p289
      %p291 = scmp.le.s32.totalorder 1, %s25
      %p292 = scmp.lt.s32.totalorder %s25, 3
      %p293 = pnand %p291, %p292
      %p294 = pneg %p293
      // Predicated region
      $region9: #{tpu_custom_call.1} parent=5 // pred_check
        _
      $region10: #{tpu_custom_call.1} parent=5 // pred_check_branch
        %296 = sbr.rel (%p293) target = $region12
      $region11: #{tpu_custom_call.1} parent=5 // pred_region
        %s297 = ssub.s32 %s25, 1
        // Predicated region
        $region13: #{tpu_custom_call.1} parent=11 // pred_check
          %p298 = pneg %p166
        $region14: #{tpu_custom_call.1} parent=11 // pred_check_branch
          %300 = sbr.rel (%p298) target = $region16
        $region15: #{tpu_custom_call.1} parent=11 // pred_region
          _
        $region16: #{tpu_custom_call.1} parent=11 // pred_fallthru
          _
        // Predicated region
        $region17: #{tpu_custom_call.1} parent=11 // pred_check
          %p301 = pneg %p187
        $region18: #{tpu_custom_call.1} parent=11 // pred_check_branch
          %303 = sbr.rel (%p301) target = $region20
        $region19: #{tpu_custom_call.1} parent=11 // pred_region
          _
        $region20: #{tpu_custom_call.1} parent=11 // pred_fallthru
          _
        // Predicated region
        $region21: #{tpu_custom_call.1} parent=11 // pred_check
          %p304 = pneg %p208
        $region22: #{tpu_custom_call.1} parent=11 // pred_check_branch
          %306 = sbr.rel (%p304) target = $region24
        $region23: #{tpu_custom_call.1} parent=11 // pred_region
          _
        $region24: #{tpu_custom_call.1} parent=11 // pred_fallthru
          _
        // Predicated region
        $region25: #{tpu_custom_call.1} parent=11 // pred_check
          %p307 = pneg %p229
        $region26: #{tpu_custom_call.1} parent=11 // pred_check_branch
          %309 = sbr.rel (%p307) target = $region28
        $region27: #{tpu_custom_call.1} parent=11 // pred_region
          _
        $region28: #{tpu_custom_call.1} parent=11 // pred_fallthru
          _
      $region12: #{tpu_custom_call.1} parent=5 // pred_fallthru
        _
      %p310 = scmp.lt.s32.totalorder %s25, 2
      // Predicated region
      $region29: #{tpu_custom_call.1} parent=5 // pred_check
        %p311 = pneg %p310
      $region30: #{tpu_custom_call.1} parent=5 // pred_check_branch
        %313 = sbr.rel (%p311) target = $region32
      $region31: #{tpu_custom_call.1} parent=5 // pred_region
        // Predicated region
        $region33: #{tpu_custom_call.1} parent=31 // pred_check
          %p314 = pneg %p57
        $region34: #{tpu_custom_call.1} parent=31 // pred_check_branch
          %316 = sbr.rel (%p314) target = $region36
        $region35: #{tpu_custom_call.1} parent=31 // pred_region
          %p317 = scmp.lt.s32.totalorder %s32, 1
          %s318 = scalar_select %p317, %s32, 1
          %s319 = smul.addr %s318, 4
          %s320 = scalar_lea.vmem %s0, %s319
        $region36: #{tpu_custom_call.1} parent=31 // pred_fallthru
          _
        // Predicated region
        $region37: #{tpu_custom_call.1} parent=31 // pred_check
          %p321 = pneg %p85
        $region38: #{tpu_custom_call.1} parent=31 // pred_check_branch
          %323 = sbr.rel (%p321) target = $region40
        $region39: #{tpu_custom_call.1} parent=31 // pred_region
          %s324 = sand.u32 %s75, 1
          %s325 = scalar_lea.sflag [#allocation9], %s324
          %s326 = sand.u32 %s75, 1
          %s327 = smul.addr %s326, 32
          %s328 = scalar_lea.vmem [#allocation8], %s327
          %s330 = ssub.s32 512, 512
          %331 = vsyncadd %s325, %s330
          %s332 = smul.addr %s32, 8
          %s333 = sadd.s32 %s33, %s332
          %s334 = smul.addr %s333, 64
          %s335 = scalar_lea.hbm %s1, %s334
          %s336 = sshll.u32 %s328, 4
          %s337 = int_to_ptr.vmem [resolvable:$true] %s336
          %342 = dma.hbm_to_vmem [thread:$0]  %s335, 512, %s337, %s325, 64, 64, 4
        $region40: #{tpu_custom_call.1} parent=31 // pred_fallthru
          _
        // Predicated region
        $region41: #{tpu_custom_call.1} parent=31 // pred_check
          %p343 = pneg %p111
        $region42: #{tpu_custom_call.1} parent=31 // pred_check_branch
          %345 = sbr.rel (%p343) target = $region44
        $region43: #{tpu_custom_call.1} parent=31 // pred_region
          %p346 = scmp.lt.s32.totalorder %s32, 1
          %s347 = scalar_select %p346, %s32, 1
          %s348 = smul.addr %s347, 8
          %s349 = scalar_lea.vmem %s2, %s348
        $region44: #{tpu_custom_call.1} parent=31 // pred_fallthru
          _
        // Predicated region
        $region45: #{tpu_custom_call.1} parent=31 // pred_check
          %p350 = pneg %p139
        $region46: #{tpu_custom_call.1} parent=31 // pred_check_branch
          %352 = sbr.rel (%p350) target = $region48
        $region47: #{tpu_custom_call.1} parent=31 // pred_region
          %p353 = scmp.lt.s32.totalorder %s32, 1
          %s354 = scalar_select %p353, %s32, 1
          %p355 = scmp.lt.s32.totalorder %s33, 0
          %s356 = scalar_select %p355, %s33, 0
          %s357 = sadd.s32 %s356, %s354
          %s358 = smul.addr %s357, 8
          %s359 = scalar_lea.vmem %s3, %s358
        $region48: #{tpu_custom_call.1} parent=31 // pred_fallthru
          _
      $region32: #{tpu_custom_call.1} parent=5 // pred_fallthru
        _
      %p360 = scmp.le.s32.totalorder 1, %s25
      %p361 = scmp.lt.s32.totalorder %s25, 3
      %p362 = pnand %p360, %p361
      %p363 = pneg %p362
      // Predicated region
      $region49: #{tpu_custom_call.1} parent=5 // pred_check
        _
      $region50: #{tpu_custom_call.1} parent=5 // pred_check_branch
        %365 = sbr.rel (%p362) target = $region52
      $region51: #{tpu_custom_call.1} parent=5 // pred_region
        %s366 = ssub.s32 %s25, 1
        %s367 = sand.u32 %s78, 1
        %s368 = scalar_lea.sflag [#allocation9], %s367
        %s369 = sand.u32 %s78, 1
        %s370 = smul.addr %s369, 32
        %s371 = scalar_lea.vmem [#allocation8], %s370
        // Predicated region
        $region53: #{tpu_custom_call.1} parent=51 // pred_check
          %p372 = pneg %p91
        $region54: #{tpu_custom_call.1} parent=51 // pred_check_branch
          %374 = sbr.rel (%p372) target = $region56
        $region55: #{tpu_custom_call.1} parent=51 // pred_region
          %375 = dma.done %s368, 512
        $region56: #{tpu_custom_call.1} parent=51 // pred_fallthru
          _
        %p376 = scmp.lt.s32.totalorder %s34, 1
        %s377 = scalar_select %p376, %s34, 1
        %s378 = smul.addr %s377, 4
        %s379 = scalar_lea.vmem %s0, %s378
        %p380 = pneg %p63
        %p381 = pneg %p60
        %s382 = sand.u32 %s78, 1
        %s383 = scalar_lea.sflag [#allocation9], %s382
        %s384 = sand.u32 %s78, 1
        %s385 = smul.addr %s384, 32
        %s386 = scalar_lea.vmem [#allocation8], %s385
        %p387 = pneg %p91
        %p388 = pneg %p88
        %p389 = scmp.lt.s32.totalorder %s34, 1
        %s390 = scalar_select %p389, %s34, 1
        %s391 = smul.addr %s390, 8
        %s392 = scalar_lea.vmem %s2, %s391
        %p393 = pneg %p117
        %p394 = pneg %p114
        %p395 = scmp.lt.s32.totalorder %s34, 1
        %s396 = scalar_select %p395, %s34, 1
        %p397 = scmp.lt.s32.totalorder %s35, 0
        %s398 = scalar_select %p397, %s35, 0
        %s399 = sadd.s32 %s398, %s396
        %s400 = smul.addr %s399, 8
        %s401 = scalar_lea.vmem %s3, %s400
        %p402 = pneg %p145
        %p403 = pneg %p142
        %p404 = pneg %p166
        %p405 = pneg %p163
        %p406 = pneg %p187
        %p407 = pneg %p184
        %p408 = pneg %p208
        %p409 = pneg %p205
        %p410 = pneg %p229
        %p411 = pneg %p226
        %p412 = pneg %p255
        %p413 = pneg %p252
        %s414 = sand.u32 %s242, 1
        %s415 = scalar_lea.sflag [#allocation10], %s414
        %s416 = sand.u32 %s242, 1
        %s417 = smul.addr %s416, 8
        %s418 = scalar_lea.vmem [#allocation11], %s417
        %p419 = pneg %p283
        %p420 = pneg %p280
        %s421 = sand.u32 %s270, 1
        %s422 = scalar_lea.sflag [#allocation13], %s421
        %s423 = sand.u32 %s270, 1
        %s424 = smul.addr %s423, 32
        %s425 = scalar_lea.vmem [#allocation12], %s424
        %p426 = scmp.lt.s32.totalorder %s34, 1
        %s427 = scalar_select %p426, %s34, 1
        %s428 = smul.addr %s427, 4
        %s429 = scalar_lea.vmem %s0, %s428
        %p430 = scmp.lt.s32.totalorder %s34, 1
        %s431 = scalar_select %p430, %s34, 1
        %s432 = smul.addr %s431, 8
        %s433 = scalar_lea.vmem %s2, %s432
        %p434 = scmp.lt.s32.totalorder %s34, 1
        %s435 = scalar_select %p434, %s34, 1
        %p436 = scmp.lt.s32.totalorder %s35, 0
        %s437 = scalar_select %p436, %s35, 0
        %s438 = sadd.s32 %s437, %s435
        %s439 = smul.addr %s438, 8
        %s440 = scalar_lea.vmem %s3, %s439
        %v442 = vld [vmem:[%s433] sm:$0xff]
        %v443 = vld [vmem:[%s440] sm:$0xff]
        %p444 = scmp.eq.s32.totalorder %s35, 0
        // Predicated region
        $region57: #{tpu_custom_call.1} parent=51 // pred_check
          %p445 = pneg %p444
        $region58: #{tpu_custom_call.1} parent=51 // pred_check_branch
          %447 = sbr.rel (%p445) target = $region60
        $region59: #{tpu_custom_call.1} parent=51 // pred_region
          %v448 = vld [vmem:[%s429] sm:$0xf]
          %v449 = vld [vmem:[%s4] sm:$0xf]
          %v450 = vld [vmem:[%s4 + $0x4] sm:$0xf]
          %v451 = vld [vmem:[%s4 + $0x8] sm:$0xf]
          %v452 = vld [vmem:[%s4 + $0xc] sm:$0xf]
          %v453 = vld [vmem:[%s5] sm:$0x1]
          %v455 = vlaneseq
          %v456 = vshrl.u32 %v455, 7
          %v457 = vsub.s32 0, %v456
          %v458 = vrot.slane %v453, %v457
          %v464 = vunpack.c.l.b16 %v449
          %v465 = vunpack.c.l.b16 %v450
          %v466 = vunpack.c.l.b16 %v451
          %v467 = vunpack.c.l.b16 %v452
          %v468 = vpack.c.b16 %v465, %v464
          %v469 = vpack.c.b16 %v467, %v466
          %vm472 = vcmask 261120
          %v474 = vsel %vm472, %v448, 0
          %476 = vmatprep.subr.bf16.mxu0 0
          %477 = vmatpush1.bf16.msra.mxu0 0
          %478 = vmatprep.subr.bf16.mxu0 0
          %479 = vmatpush1.bf16.msra.mxu0 0
          %480 = vmatprep.subr.bf16.mxu0 0
          %481 = vmatpush1.bf16.msra.mxu0 0
          %482 = vmatprep.subr.bf16.mxu0 0
          %483 = vmatpush1.bf16.msra.mxu0 0
          %484 = vmatprep.subr.bf16.mxu0 0
          %485 = vmatpush1.bf16.msra.mxu0 0
          %486 = vmatprep.subr.bf16.mxu0 0
          %487 = vmatpush1.bf16.msra.mxu0 0
          %488 = vmatprep.subr.bf16.mxu0 0
          %489 = vmatpush1.bf16.msra.mxu0 %v469
          %490 = vmatprep.subr.bf16.mxu0 0
          %491 = vmatpush1.bf16.msra.mxu0 %v468
          %492 = vmatprep.subr.bf16.mxu0 0
          %493 = vmatpush2.bf16.msra.mxu0 0
          %494 = vmatprep.subr.bf16.mxu0 0
          %495 = vmatpush2.bf16.msra.mxu0 0
          %496 = vmatprep.subr.bf16.mxu0 0
          %497 = vmatpush2.bf16.msra.mxu0 0
          %498 = vmatprep.subr.bf16.mxu0 0
          %499 = vmatpush2.bf16.msra.mxu0 0
          %500 = vmatprep.subr.bf16.mxu0 0
          %501 = vmatpush2.bf16.msra.mxu0 0
          %502 = vmatprep.subr.bf16.mxu0 0
          %503 = vmatpush2.bf16.msra.mxu0 0
          %504 = vmatprep.subr.bf16.mxu0 0
          %505 = vmatpush2.bf16.msra.mxu0 0
          %506 = vmatprep.subr.bf16.mxu0 0
          %507 = vmatpush2.bf16.msra.mxu0 0
          %508 = vmatprep.mubr.bf16.mxu0 0
          %509 = vmatmul.mubr.bf16.gmra.mxu0 %v474
          %v510 = vpop.f32.mrf.mxu0
          %v511 = vadd.f32 %v458, %v510
          %v512 = vpop.f32.mrf.mxu0
          %v513 = vpop.f32.mrf.mxu0
          %v514 = vpop.f32.mrf.mxu0
          %515 = vdwg.mxu0
          %v516 = vmul.f32 %v442, 0.25
          %518 = vset.pattern.permute.xlu0 0
          %519 = vperm.xlu0 %518, %v516
          %v520 = vpop.permute.xlu0 %519
          %v522 = vmul.f32 %v511, %v520
          %vm523 = vcmask 130048
          %524 = vst.msk [vmem:[#allocation2] sm:$0xff] %vm523, %v522
          %526 = vrot.lane.b32.xlu0 %v511, 112
          %v527 = vpop.permute.xlu0 %526
          %529 = vst.msk [vmem:[#allocation3] sm:$0xff] %vm523, %v527
          %531 = vset.pattern.permute.xlu0 0
          %532 = vperm.xlu0 %531, %v442
          %v533 = vpop.permute.xlu0 %532
          %v535 = vmul.f32 %v511, %v533
          %537 = vrot.lane.b32.xlu0 %v535, 96
          %v538 = vpop.permute.xlu0 %537
          %540 = vst.msk [vmem:[#allocation4] sm:$0xff] %vm523, %v538
          %541 = vrot.lane.b32.xlu0 %v511, 80
          %v542 = vpop.permute.xlu0 %541
          %544 = vst.msk [vmem:[#allocation5] sm:$0xff] %vm523, %v542
          %545 = vrot.lane.b32.xlu0 %v511, 64
          %v546 = vpop.permute.xlu0 %545
          %548 = vst.msk [vmem:[#allocation6] sm:$0xff] %vm523, %v546
          %549 = vst.msk [vmem:[#allocation7] sm:$0xff] %vm523, 0.0
        $region60: #{tpu_custom_call.1} parent=51 // pred_fallthru
          _
        %s550 = smul.u32 %s35, 8
        %s551 = scalar_lea.vmem [#allocation6], %s550
        %v552 = vld [vmem:[%s551] sm:$0xff]
        %s553 = scalar_lea.vmem [#allocation3], %s550
        %v554 = vld [vmem:[%s553] sm:$0xff]
        %s555 = scalar_lea.vmem [#allocation4], %s550
        %v556 = vld [vmem:[%s555] sm:$0xff]
        %v557 = vld [vmem:[%s371] sm:$0xf]
        %v558 = vld [vmem:[%s371 + $0x4] sm:$0xf]
        %v559 = vld [vmem:[%s371 + $0x8] sm:$0xf]
        %v560 = vld [vmem:[%s371 + $0xc] sm:$0xf]
        %v561 = vld [vmem:[%s371 + $0x10] sm:$0xf]
        %v562 = vld [vmem:[%s371 + $0x14] sm:$0xf]
        %v563 = vld [vmem:[%s371 + $0x18] sm:$0xf]
        %v564 = vld [vmem:[%s371 + $0x1c] sm:$0xf]
        %v565 = vld [vmem:[%s6] sm:$0xf]
        %v566 = vld [vmem:[%s6 + $0x4] sm:$0xf]
        %v567 = vld [vmem:[%s6 + $0x8] sm:$0xf]
        %v568 = vld [vmem:[%s6 + $0xc] sm:$0xf]
        %v569 = vld [vmem:[%s7] sm:$0x1]
        %v571 = vlaneseq
        %v572 = vshrl.u32 %v571, 7
        %v573 = vsub.s32 0, %v572
        %v574 = vrot.slane %v569, %v573
        %v584 = vunpack.c.l.b16 %v557
        %v585 = vunpack.c.l.b16 %v558
        %v586 = vunpack.c.l.b16 %v559
        %v587 = vunpack.c.l.b16 %v560
        %v588 = vunpack.c.l.b16 %v561
        %v589 = vunpack.c.l.b16 %v562
        %v590 = vunpack.c.l.b16 %v563
        %v591 = vunpack.c.l.b16 %v564
        %v592 = vpack.c.b16 %v585, %v584
        %v593 = vpack.c.b16 %v587, %v586
        %v594 = vpack.c.b16 %v589, %v588
        %v595 = vpack.c.b16 %v591, %v590
        %v600 = vunpack.c.l.b16 %v565
        %v601 = vunpack.c.l.b16 %v566
        %v602 = vunpack.c.l.b16 %v567
        %v603 = vunpack.c.l.b16 %v568
        %v604 = vpack.c.b16 %v601, %v600
        %v605 = vpack.c.b16 %v603, %v602
        %vm608 = vcmask 261120
        %v610 = vsel %vm608, %v592, 0
        %v613 = vsel %vm608, %v593, 0
        %v616 = vsel %vm608, %v594, 0
        %v619 = vsel %vm608, %v595, 0
        %621 = vmatprep.subr.bf16.mxu0 0
        %622 = vmatpush1.bf16.msra.mxu0 0
        %623 = vmatprep.subr.bf16.mxu0 0
        %624 = vmatpush1.bf16.msra.mxu0 0
        %625 = vmatprep.subr.bf16.mxu0 0
        %626 = vmatpush1.bf16.msra.mxu0 0
        %627 = vmatprep.subr.bf16.mxu0 0
        %628 = vmatpush1.bf16.msra.mxu0 0
        %629 = vmatprep.subr.bf16.mxu0 0
        %630 = vmatpush1.bf16.msra.mxu0 0
        %631 = vmatprep.subr.bf16.mxu0 0
        %632 = vmatpush1.bf16.msra.mxu0 0
        %633 = vmatprep.subr.bf16.mxu0 0
        %634 = vmatpush1.bf16.msra.mxu0 %v605
        %635 = vmatprep.subr.bf16.mxu0 0
        %636 = vmatpush1.bf16.msra.mxu0 %v604
        %637 = vmatprep.subr.bf16.mxu0 0
        %638 = vmatpush2.bf16.msra.mxu0 0
        %639 = vmatprep.subr.bf16.mxu0 0
        %640 = vmatpush2.bf16.msra.mxu0 0
        %641 = vmatprep.subr.bf16.mxu0 0
        %642 = vmatpush2.bf16.msra.mxu0 0
        %643 = vmatprep.subr.bf16.mxu0 0
        %644 = vmatpush2.bf16.msra.mxu0 0
        %645 = vmatprep.subr.bf16.mxu0 0
        %646 = vmatpush2.bf16.msra.mxu0 0
        %647 = vmatprep.subr.bf16.mxu0 0
        %648 = vmatpush2.bf16.msra.mxu0 0
        %649 = vmatprep.subr.bf16.mxu0 0
        %650 = vmatpush2.bf16.msra.mxu0 0
        %651 = vmatprep.subr.bf16.mxu0 0
        %652 = vmatpush2.bf16.msra.mxu0 0
        %653 = vmatprep.mubr.bf16.mxu0 0
        %654 = vmatmul.mubr.bf16.gmra.mxu0 %v610
        %v655 = vpop.f32.mrf.mxu0
        %v656 = vadd.f32 %v574, %v655
        %v657 = vpop.f32.mrf.mxu0
        %v658 = vpop.f32.mrf.mxu0
        %v659 = vadd.f32 %v574, %v658
        %v660 = vpop.f32.mrf.mxu0
        %661 = vmatprep.mubr.bf16.mxu0 0
        %662 = vmatmul.mubr.bf16.gmra.mxu0 %v613
        %v663 = vpop.f32.mrf.mxu0
        %v664 = vadd.f32 %v574, %v663
        %v665 = vpop.f32.mrf.mxu0
        %v666 = vpop.f32.mrf.mxu0
        %v667 = vadd.f32 %v574, %v666
        %v668 = vpop.f32.mrf.mxu0
        %669 = vmatprep.mubr.bf16.mxu0 0
        %670 = vmatmul.mubr.bf16.gmra.mxu0 %v616
        %v671 = vpop.f32.mrf.mxu0
        %v672 = vadd.f32 %v574, %v671
        %v673 = vpop.f32.mrf.mxu0
        %v674 = vpop.f32.mrf.mxu0
        %v675 = vadd.f32 %v574, %v674
        %v676 = vpop.f32.mrf.mxu0
        %677 = vmatprep.mubr.bf16.mxu0 0
        %678 = vmatmul.mubr.bf16.gmra.mxu0 %v619
        %v679 = vpop.f32.mrf.mxu0
        %v680 = vadd.f32 %v574, %v679
        %v681 = vpop.f32.mrf.mxu0
        %v682 = vpop.f32.mrf.mxu0
        %v683 = vadd.f32 %v574, %v682
        %v684 = vpop.f32.mrf.mxu0
        %685 = vdwg.mxu0
        %v687 = vcombine.high %v442, %v442
        %v689 = vunpack.c.l.s4 1966171168
        %v690 = vunpack.c.0.s8 %v689
        %v691 = vlaneseq
        %v692 = vshrl.u32 %v691, 7
        %v693 = vsub.s32 %v690, %v692
        %v694 = vrot.slane %v442, %v693
        %v696 = vunpack.c.l.s4 1966171168
        %v697 = vunpack.c.0.s8 %v696
        %v698 = vlaneseq
        %v699 = vshrl.u32 %v698, 7
        %v700 = vsub.s32 %v697, %v699
        %v701 = vrot.slane %v687, %v700
        %v702 = vcombine.high %v694, %v694
        %v703 = vcombine.high %v701, %v701
        %v705 = vunpack.c.l.s4 1966171168
        %v706 = vunpack.c.0.s8 %v705
        %v707 = vlaneseq
        %v708 = vshrl.u32 %v707, 7
        %v709 = vsub.s32 %v706, %v708
        %v710 = vrot.slane %v694, %v709
        %v712 = vunpack.c.l.s4 1966171168
        %v713 = vunpack.c.0.s8 %v712
        %v714 = vlaneseq
        %v715 = vshrl.u32 %v714, 7
        %v716 = vsub.s32 %v713, %v715
        %v717 = vrot.slane %v701, %v716
        %v719 = vunpack.c.l.s4 1966171168
        %v720 = vunpack.c.0.s8 %v719
        %v721 = vlaneseq
        %v722 = vshrl.u32 %v721, 7
        %v723 = vsub.s32 %v720, %v722
        %v724 = vrot.slane %v702, %v723
        %v726 = vunpack.c.l.s4 1966171168
        %v727 = vunpack.c.0.s8 %v726
        %v728 = vlaneseq
        %v729 = vshrl.u32 %v728, 7
        %v730 = vsub.s32 %v727, %v729
        %v731 = vrot.slane %v703, %v730
        %v732 = vcombine.high %v710, %v710
        %v733 = vcombine.high %v717, %v717
        %v734 = vcombine.high %v724, %v724
        %v735 = vcombine.high %v731, %v731
        %v736 = vlaneseq
        %v737 = vshrl.u32 %v736, 7
        %v738 = vsub.s32 0, %v737
        %v739 = vrot.slane %v710, %v738
        %v740 = vlaneseq
        %v741 = vshrl.u32 %v740, 7
        %v742 = vsub.s32 0, %v741
        %v743 = vrot.slane %v724, %v742
        %v744 = vlaneseq
        %v745 = vshrl.u32 %v744, 7
        %v746 = vsub.s32 0, %v745
        %v747 = vrot.slane %v732, %v746
        %v748 = vlaneseq
        %v749 = vshrl.u32 %v748, 7
        %v750 = vsub.s32 0, %v749
        %v751 = vrot.slane %v734, %v750
        %v752 = vlaneseq
        %v753 = vshrl.u32 %v752, 7
        %v754 = vsub.s32 0, %v753
        %v755 = vrot.slane %v717, %v754
        %v756 = vlaneseq
        %v757 = vshrl.u32 %v756, 7
        %v758 = vsub.s32 0, %v757
        %v759 = vrot.slane %v731, %v758
        %v760 = vlaneseq
        %v761 = vshrl.u32 %v760, 7
        %v762 = vsub.s32 0, %v761
        %v763 = vrot.slane %v733, %v762
        %v764 = vlaneseq
        %v765 = vshrl.u32 %v764, 7
        %v766 = vsub.s32 0, %v765
        %v767 = vrot.slane %v735, %v766
        %v776 = vmul.f32 %v739, %v443
        %v777 = vmul.f32 %v743, %v443
        %v778 = vmul.f32 %v747, %v443
        %v779 = vmul.f32 %v751, %v443
        %v780 = vmul.f32 %v755, %v443
        %v781 = vmul.f32 %v759, %v443
        %v782 = vmul.f32 %v763, %v443
        %v783 = vmul.f32 %v767, %v443
        %v784 = vld [vmem:[#allocation5] sm:$0xff]
        %v786 = vcombine.high %v784, %v784
        %v788 = vunpack.c.l.s4 1966171168
        %v789 = vunpack.c.0.s8 %v788
        %v790 = vlaneseq
        %v791 = vshrl.u32 %v790, 7
        %v792 = vsub.s32 %v789, %v791
        %v793 = vrot.slane %v784, %v792
        %v795 = vunpack.c.l.s4 1966171168
        %v796 = vunpack.c.0.s8 %v795
        %v797 = vlaneseq
        %v798 = vshrl.u32 %v797, 7
        %v799 = vsub.s32 %v796, %v798
        %v800 = vrot.slane %v786, %v799
        %v801 = vcombine.high %v793, %v793
        %v802 = vcombine.high %v800, %v800
        %v804 = vunpack.c.l.s4 1966171168
        %v805 = vunpack.c.0.s8 %v804
        %v806 = vlaneseq
        %v807 = vshrl.u32 %v806, 7
        %v808 = vsub.s32 %v805, %v807
        %v809 = vrot.slane %v793, %v808
        %v811 = vunpack.c.l.s4 1966171168
        %v812 = vunpack.c.0.s8 %v811
        %v813 = vlaneseq
        %v814 = vshrl.u32 %v813, 7
        %v815 = vsub.s32 %v812, %v814
        %v816 = vrot.slane %v800, %v815
        %v818 = vunpack.c.l.s4 1966171168
        %v819 = vunpack.c.0.s8 %v818
        %v820 = vlaneseq
        %v821 = vshrl.u32 %v820, 7
        %v822 = vsub.s32 %v819, %v821
        %v823 = vrot.slane %v801, %v822
        %v825 = vunpack.c.l.s4 1966171168
        %v826 = vunpack.c.0.s8 %v825
        %v827 = vlaneseq
        %v828 = vshrl.u32 %v827, 7
        %v829 = vsub.s32 %v826, %v828
        %v830 = vrot.slane %v802, %v829
        %v831 = vcombine.high %v809, %v809
        %v832 = vcombine.high %v816, %v816
        %v833 = vcombine.high %v823, %v823
        %v834 = vcombine.high %v830, %v830
        %v835 = vlaneseq
        %v836 = vshrl.u32 %v835, 7
        %v837 = vsub.s32 0, %v836
        %v838 = vrot.slane %v809, %v837
        %v839 = vlaneseq
        %v840 = vshrl.u32 %v839, 7
        %v841 = vsub.s32 0, %v840
        %v842 = vrot.slane %v823, %v841
        %v843 = vlaneseq
        %v844 = vshrl.u32 %v843, 7
        %v845 = vsub.s32 0, %v844
        %v846 = vrot.slane %v831, %v845
        %v847 = vlaneseq
        %v848 = vshrl.u32 %v847, 7
        %v849 = vsub.s32 0, %v848
        %v850 = vrot.slane %v833, %v849
        %v851 = vlaneseq
        %v852 = vshrl.u32 %v851, 7
        %v853 = vsub.s32 0, %v852
        %v854 = vrot.slane %v816, %v853
        %v855 = vlaneseq
        %v856 = vshrl.u32 %v855, 7
        %v857 = vsub.s32 0, %v856
        %v858 = vrot.slane %v830, %v857
        %v859 = vlaneseq
        %v860 = vshrl.u32 %v859, 7
        %v861 = vsub.s32 0, %v860
        %v862 = vrot.slane %v832, %v861
        %v863 = vlaneseq
        %v864 = vshrl.u32 %v863, 7
        %v865 = vsub.s32 0, %v864
        %v866 = vrot.slane %v834, %v865
        %v875 = vadd.f32 %v838, %v552
        %v876 = vadd.f32 %v842, %v552
        %v877 = vadd.f32 %v846, %v552
        %v878 = vadd.f32 %v850, %v552
        %v879 = vadd.f32 %v854, %v552
        %v880 = vadd.f32 %v858, %v552
        %v881 = vadd.f32 %v862, %v552
        %v882 = vadd.f32 %v866, %v552
        %v883 = vadd.f32 %v875, %v656
        %v884 = vadd.f32 %v876, %v659
        %v885 = vadd.f32 %v877, %v664
        %v886 = vadd.f32 %v878, %v667
        %v887 = vadd.f32 %v879, %v672
        %v888 = vadd.f32 %v880, %v675
        %v889 = vadd.f32 %v881, %v680
        %v890 = vadd.f32 %v882, %v683
        %892 = vset.pattern.permute.xlu0 0
        %893 = vperm.xlu0 %892, %v776
        %v894 = vpop.permute.xlu0 %893
        %897 = vset.pattern.permute.xlu0 0
        %898 = vperm.xlu0 %897, %v777
        %v899 = vpop.permute.xlu0 %898
        %902 = vset.pattern.permute.xlu0 0
        %903 = vperm.xlu0 %902, %v778
        %v904 = vpop.permute.xlu0 %903
        %907 = vset.pattern.permute.xlu0 0
        %908 = vperm.xlu0 %907, %v779
        %v909 = vpop.permute.xlu0 %908
        %912 = vset.pattern.permute.xlu0 0
        %913 = vperm.xlu0 %912, %v780
        %v914 = vpop.permute.xlu0 %913
        %917 = vset.pattern.permute.xlu0 0
        %918 = vperm.xlu0 %917, %v781
        %v919 = vpop.permute.xlu0 %918
        %922 = vset.pattern.permute.xlu0 0
        %923 = vperm.xlu0 %922, %v782
        %v924 = vpop.permute.xlu0 %923
        %927 = vset.pattern.permute.xlu0 0
        %928 = vperm.xlu0 %927, %v783
        %v929 = vpop.permute.xlu0 %928
        %v931 = vmul.f32 %v883, %v894
        %v932 = vmul.f32 %v884, %v899
        %v933 = vmul.f32 %v885, %v904
        %v934 = vmul.f32 %v886, %v909
        %v935 = vmul.f32 %v887, %v914
        %v936 = vmul.f32 %v888, %v919
        %v937 = vmul.f32 %v889, %v924
        %v938 = vmul.f32 %v890, %v929
        %v939 = vld [vmem:[#allocation2] sm:$0xff]
        %v941 = vcombine.high %v939, %v939
        %v943 = vunpack.c.l.s4 1966171168
        %v944 = vunpack.c.0.s8 %v943
        %v945 = vlaneseq
        %v946 = vshrl.u32 %v945, 7
        %v947 = vsub.s32 %v944, %v946
        %v948 = vrot.slane %v939, %v947
        %v950 = vunpack.c.l.s4 1966171168
        %v951 = vunpack.c.0.s8 %v950
        %v952 = vlaneseq
        %v953 = vshrl.u32 %v952, 7
        %v954 = vsub.s32 %v951, %v953
        %v955 = vrot.slane %v941, %v954
        %v956 = vcombine.high %v948, %v948
        %v957 = vcombine.high %v955, %v955
        %v959 = vunpack.c.l.s4 1966171168
        %v960 = vunpack.c.0.s8 %v959
        %v961 = vlaneseq
        %v962 = vshrl.u32 %v961, 7
        %v963 = vsub.s32 %v960, %v962
        %v964 = vrot.slane %v948, %v963
        %v966 = vunpack.c.l.s4 1966171168
        %v967 = vunpack.c.0.s8 %v966
        %v968 = vlaneseq
        %v969 = vshrl.u32 %v968, 7
        %v970 = vsub.s32 %v967, %v969
        %v971 = vrot.slane %v955, %v970
        %v973 = vunpack.c.l.s4 1966171168
        %v974 = vunpack.c.0.s8 %v973
        %v975 = vlaneseq
        %v976 = vshrl.u32 %v975, 7
        %v977 = vsub.s32 %v974, %v976
        %v978 = vrot.slane %v956, %v977
        %v980 = vunpack.c.l.s4 1966171168
        %v981 = vunpack.c.0.s8 %v980
        %v982 = vlaneseq
        %v983 = vshrl.u32 %v982, 7
        %v984 = vsub.s32 %v981, %v983
        %v985 = vrot.slane %v957, %v984
        %v986 = vcombine.high %v964, %v964
        %v987 = vcombine.high %v971, %v971
        %v988 = vcombine.high %v978, %v978
        %v989 = vcombine.high %v985, %v985
        %v990 = vlaneseq
        %v991 = vshrl.u32 %v990, 7
        %v992 = vsub.s32 0, %v991
        %v993 = vrot.slane %v964, %v992
        %v994 = vlaneseq
        %v995 = vshrl.u32 %v994, 7
        %v996 = vsub.s32 0, %v995
        %v997 = vrot.slane %v978, %v996
        %v998 = vlaneseq
        %v999 = vshrl.u32 %v998, 7
        %v1000 = vsub.s32 0, %v999
        %v1001 = vrot.slane %v986, %v1000
        %v1002 = vlaneseq
        %v1003 = vshrl.u32 %v1002, 7
        %v1004 = vsub.s32 0, %v1003
        %v1005 = vrot.slane %v988, %v1004
        %v1006 = vlaneseq
        %v1007 = vshrl.u32 %v1006, 7
        %v1008 = vsub.s32 0, %v1007
        %v1009 = vrot.slane %v971, %v1008
        %v1010 = vlaneseq
        %v1011 = vshrl.u32 %v1010, 7
        %v1012 = vsub.s32 0, %v1011
        %v1013 = vrot.slane %v985, %v1012
        %v1014 = vlaneseq
        %v1015 = vshrl.u32 %v1014, 7
        %v1016 = vsub.s32 0, %v1015
        %v1017 = vrot.slane %v987, %v1016
        %v1018 = vlaneseq
        %v1019 = vshrl.u32 %v1018, 7
        %v1020 = vsub.s32 0, %v1019
        %v1021 = vrot.slane %v989, %v1020
        %v1030 = vmul.f32 %v993, %v931
        %v1031 = vmul.f32 %v997, %v932
        %v1032 = vmul.f32 %v1001, %v933
        %v1033 = vmul.f32 %v1005, %v934
        %v1034 = vmul.f32 %v1009, %v935
        %v1035 = vmul.f32 %v1013, %v936
        %v1036 = vmul.f32 %v1017, %v937
        %v1037 = vmul.f32 %v1021, %v938
        %v1038 = vmul.f32 %v1030, %v554
        %v1039 = vmul.f32 %v1031, %v554
        %v1040 = vmul.f32 %v1032, %v554
        %v1041 = vmul.f32 %v1033, %v554
        %v1042 = vmul.f32 %v1034, %v554
        %v1043 = vmul.f32 %v1035, %v554
        %v1044 = vmul.f32 %v1036, %v554
        %v1045 = vmul.f32 %v1037, %v554
        %vm1046 = vcmask 130048
        %v1047 = vsel %vm1046, %v1038, 0.0
        %1048 = vadd.xlane.f32.xlu0 %v1047
        %v1049 = vpop.xlane.xlu0 %1048
        %v1050 = vsel %vm1046, %v1039, 0.0
        %1051 = vadd.xlane.f32.xlu0 %v1050
        %v1052 = vpop.xlane.xlu0 %1051
        %v1053 = vsel %vm1046, %v1040, 0.0
        %1054 = vadd.xlane.f32.xlu0 %v1053
        %v1055 = vpop.xlane.xlu0 %1054
        %v1056 = vsel %vm1046, %v1041, 0.0
        %1057 = vadd.xlane.f32.xlu0 %v1056
        %v1058 = vpop.xlane.xlu0 %1057
        %v1059 = vsel %vm1046, %v1042, 0.0
        %1060 = vadd.xlane.f32.xlu0 %v1059
        %v1061 = vpop.xlane.xlu0 %1060
        %v1062 = vsel %vm1046, %v1043, 0.0
        %1063 = vadd.xlane.f32.xlu0 %v1062
        %v1064 = vpop.xlane.xlu0 %1063
        %v1065 = vsel %vm1046, %v1044, 0.0
        %1066 = vadd.xlane.f32.xlu0 %v1065
        %v1067 = vpop.xlane.xlu0 %1066
        %v1068 = vsel %vm1046, %v1045, 0.0
        %1069 = vadd.xlane.f32.xlu0 %v1068
        %v1070 = vpop.xlane.xlu0 %1069
        %1071 = vxpose.xlu0.b32.start [1/16] %v443, 128
        %1072 = vxpose.xlu0.b32.cont [2/16] 0.0, 128
        %1073 = vxpose.xlu0.b32.cont [3/16] 0.0, 128
        %1074 = vxpose.xlu0.b32.cont [4/16] 0.0, 128
        %1075 = vxpose.xlu0.b32.cont [5/16] 0.0, 128
        %1076 = vxpose.xlu0.b32.cont [6/16] 0.0, 128
        %1077 = vxpose.xlu0.b32.cont [7/16] 0.0, 128
        %1078 = vxpose.xlu0.b32.cont [8/16] 0.0, 128
        %1079 = vxpose.xlu0.b32.cont [9/16] 0.0, 128
        %1080 = vxpose.xlu0.b32.cont [10/16] 0.0, 128
        %1081 = vxpose.xlu0.b32.cont [11/16] 0.0, 128
        %1082 = vxpose.xlu0.b32.cont [12/16] 0.0, 128
        %1083 = vxpose.xlu0.b32.cont [13/16] 0.0, 128
        %1084 = vxpose.xlu0.b32.cont [14/16] 0.0, 128
        %1085 = vxpose.xlu0.b32.cont [15/16] 0.0, 128
        %1086 = vxpose.xlu0.b32.end [16/16] 0.0, 128
        %v1087 = vpop.trf.xlu0
        %v1088 = vpop.trf.xlu0
        %v1089 = vpop.trf.xlu0
        %v1090 = vpop.trf.xlu0
        %v1091 = vpop.trf.xlu0
        %v1092 = vpop.trf.xlu0
        %v1093 = vpop.trf.xlu0
        %v1094 = vpop.trf.xlu0
        %v1095 = vpop.trf.xlu0
        %v1096 = vpop.trf.xlu0
        %v1097 = vpop.trf.xlu0
        %v1098 = vpop.trf.xlu0
        %v1099 = vpop.trf.xlu0
        %v1100 = vpop.trf.xlu0
        %v1101 = vpop.trf.xlu0
        %v1102 = vpop.trf.xlu0
        %1103 = vset.pattern.permute.xlu0 0
        %1104 = vperm.xlu0 %1103, %v442
        %v1105 = vpop.permute.xlu0 %1104
        %v1107 = vlaneseq
        %v1108 = vshrl.u32 %v1107, 7
        %v1109 = vsub.s32 0, %v1108
        %v1110 = vrot.slane %v1087, %v1109
        %v1111 = vmul.f32 %v1105, %v1110
        %vm1112 = vcmp.ne.f32.partialorder %v1111, 0.0
        %v1121 = vlaneseq
        %v1122 = vand.u32 %v1121, 127
        %v1123 = vlaneseq
        %v1124 = vshrl.u32 %v1123, 7
        %v1125 = vsub.s32 %v1122, %v1124
        %v1126 = vrot.slane %v1049, %v1125
        %v1127 = vlaneseq
        %v1128 = vshrl.u32 %v1127, 7
        %v1129 = vsub.s32 %v1122, %v1128
        %v1130 = vrot.slane %v1052, %v1129
        %v1131 = vlaneseq
        %v1132 = vshrl.u32 %v1131, 7
        %v1133 = vsub.s32 %v1122, %v1132
        %v1134 = vrot.slane %v1055, %v1133
        %v1135 = vlaneseq
        %v1136 = vshrl.u32 %v1135, 7
        %v1137 = vsub.s32 %v1122, %v1136
        %v1138 = vrot.slane %v1058, %v1137
        %v1139 = vlaneseq
        %v1140 = vshrl.u32 %v1139, 7
        %v1141 = vsub.s32 %v1122, %v1140
        %v1142 = vrot.slane %v1061, %v1141
        %v1143 = vlaneseq
        %v1144 = vshrl.u32 %v1143, 7
        %v1145 = vsub.s32 %v1122, %v1144
        %v1146 = vrot.slane %v1064, %v1145
        %v1147 = vlaneseq
        %v1148 = vshrl.u32 %v1147, 7
        %v1149 = vsub.s32 %v1122, %v1148
        %v1150 = vrot.slane %v1067, %v1149
        %v1151 = vlaneseq
        %v1152 = vshrl.u32 %v1151, 7
        %v1153 = vsub.s32 %v1122, %v1152
        %v1154 = vrot.slane %v1070, %v1153
        %vm1155 = vcmask 1041409
        %v1156 = vsel %vm1155, %v1130, %v1126
        %vm1157 = vcmask 1042434
        %v1158 = vsel %vm1157, %v1134, %v1156
        %vm1159 = vcmask 1043459
        %v1160 = vsel %vm1159, %v1138, %v1158
        %vm1161 = vcmask 1044484
        %v1162 = vsel %vm1161, %v1142, %v1160
        %vm1163 = vcmask 1045509
        %v1164 = vsel %vm1163, %v1146, %v1162
        %vm1165 = vcmask 1046534
        %v1166 = vsel %vm1165, %v1150, %v1164
        %vm1167 = vcmask 1047559
        %v1168 = vsel %vm1167, %v1154, %v1166
        %v1170 = vsel %vm1112, %v1168, -1e+09
        %vm1171 = vcmask 64512
        %v1172 = vsel %vm1171, %v1170, -inf
        %v1173 = vrot.slane %v1172, 4
        %v1174 = vmax.f32 %v1172, %v1173
        %v1175 = vrot.slane %v1174, 2
        %v1176 = vmax.f32 %v1174, %v1175
        %v1177 = vrot.slane %v1176, 1
        %v1178 = vmax.f32 %v1176, %v1177
        %v1179 = vsub.f32 %v1170, %v1178
        %v1180 = vmul.f32 %v1179, 1.442695
        %v1181 = vpow.pop %v1180
        %v1182 = vsel %vm1171, %v1181, 0.0
        %v1183 = vrot.slane %v1182, 4
        %v1184 = vadd.f32 %v1182, %v1183
        %v1185 = vrot.slane %v1184, 2
        %v1186 = vadd.f32 %v1184, %v1185
        %v1187 = vrot.slane %v1186, 1
        %v1188 = vadd.f32 %v1186, %v1187
        %v1189 = vrcp.pop %v1188
        %v1190 = vmul.f32 %v1181, %v1189
        %v1191 = vld [vmem:[#allocation7] sm:$0xff]
        %v1193 = vsel %vm1171, %v1190, 0
        %1195 = vmatprep.subr.mxu0 0.0
        %1196 = vmatpush1.msra.mxu0 0.0
        %1197 = vmatprep.subr.mxu0 0.0
        %1198 = vmatpush1.msra.mxu0 0.0
        %1199 = vmatprep.subr.mxu0 0.0
        %1200 = vmatpush1.msra.mxu0 0.0
        %1201 = vmatprep.subr.mxu0 0.0
        %1202 = vmatpush1.msra.mxu0 0.0
        %1203 = vmatprep.subr.mxu0 0.0
        %1204 = vmatpush1.msra.mxu0 0.0
        %1205 = vmatprep.subr.mxu0 0.0
        %1206 = vmatpush1.msra.mxu0 0.0
        %1207 = vmatprep.subr.mxu0 0.0
        %1208 = vmatpush1.msra.mxu0 0.0
        %1209 = vmatprep.subr.mxu0 0.0
        %1210 = vmatpush1.msra.mxu0 0.0
        %1211 = vmatprep.subr.mxu0 0.0
        %1212 = vmatpush1.msra.mxu0 0.0
        %1213 = vmatprep.subr.mxu0 0.0
        %1214 = vmatpush1.msra.mxu0 0.0
        %1215 = vmatprep.subr.mxu0 0.0
        %1216 = vmatpush1.msra.mxu0 0.0
        %1217 = vmatprep.subr.mxu0 0.0
        %1218 = vmatpush1.msra.mxu0 0.0
        %1219 = vmatprep.subr.mxu0 0.0
        %1220 = vmatpush1.msra.mxu0 0.0
        %1221 = vmatprep.subr.mxu0 0.0
        %1222 = vmatpush1.msra.mxu0 0.0
        %1223 = vmatprep.subr.mxu0 0.0
        %1224 = vmatpush1.msra.mxu0 0.0
        %1225 = vmatprep.subr.mxu0 0.0
        %1226 = vmatpush1.msra.mxu0 %v556
        %1227 = vmatprep.subr.mxu0 0.0
        %1228 = vmatpush2.msra.mxu0 0.0
        %1229 = vmatprep.subr.mxu0 0.0
        %1230 = vmatpush2.msra.mxu0 0.0
        %1231 = vmatprep.subr.mxu0 0.0
        %1232 = vmatpush2.msra.mxu0 0.0
        %1233 = vmatprep.subr.mxu0 0.0
        %1234 = vmatpush2.msra.mxu0 0.0
        %1235 = vmatprep.subr.mxu0 0.0
        %1236 = vmatpush2.msra.mxu0 0.0
        %1237 = vmatprep.subr.mxu0 0.0
        %1238 = vmatpush2.msra.mxu0 0.0
        %1239 = vmatprep.subr.mxu0 0.0
        %1240 = vmatpush2.msra.mxu0 0.0
        %1241 = vmatprep.subr.mxu0 0.0
        %1242 = vmatpush2.msra.mxu0 0.0
        %1243 = vmatprep.subr.mxu0 0.0
        %1244 = vmatpush2.msra.mxu0 0.0
        %1245 = vmatprep.subr.mxu0 0.0
        %1246 = vmatpush2.msra.mxu0 0.0
        %1247 = vmatprep.subr.mxu0 0.0
        %1248 = vmatpush2.msra.mxu0 0.0
        %1249 = vmatprep.subr.mxu0 0.0
        %1250 = vmatpush2.msra.mxu0 0.0
        %1251 = vmatprep.subr.mxu0 0.0
        %1252 = vmatpush2.msra.mxu0 0.0
        %1253 = vmatprep.subr.mxu0 0.0
        %1254 = vmatpush2.msra.mxu0 0.0
        %1255 = vmatprep.subr.mxu0 0.0
        %1256 = vmatpush2.msra.mxu0 0.0
        %1257 = vmatprep.subr.mxu0 0.0
        %1258 = vmatpush2.msra.mxu0 0.0
        %1259 = vmatprep.mubr.f32.mxu0 0.0
        %1260 = vmatmul.mubr.f32.gmra.mxu0 %v1193
        %v1261 = vpop.f32.mrf.mxu0
        %v1262 = vadd.f32 0.0, %v1261
        %v1263 = vpop.f32.mrf.mxu0
        %1264 = vdwg.mxu0
        %v1265 = vadd.f32 %v1191, %v1262
        %1266 = vst.msk [vmem:[#allocation7] sm:$0xff] %vm1046, %v1265
        // Predicated region
        $region61: #{tpu_custom_call.1} parent=51 // pred_check
          %p1267 = pneg %p444
        $region62: #{tpu_custom_call.1} parent=51 // pred_check_branch
          %1269 = sbr.rel (%p1267) target = $region64
        $region63: #{tpu_custom_call.1} parent=51 // pred_region
          %v1270 = vld [vmem:[#allocation7] sm:$0xff]
          %v1271 = vmul.f32 %v1270, %v1105
          %1272 = vst.msk [vmem:[%s418] sm:$0xff] %vm1046, %v1271
        $region64: #{tpu_custom_call.1} parent=51 // pred_fallthru
          _
        %v1273 = vpack.c.bf16 %v931, %v931
        %v1274 = vpack.c.bf16 %v932, %v932
        %v1275 = vpack.c.bf16 %v933, %v933
        %v1276 = vpack.c.bf16 %v934, %v934
        %v1277 = vpack.c.bf16 %v935, %v935
        %v1278 = vpack.c.bf16 %v936, %v936
        %v1279 = vpack.c.bf16 %v937, %v937
        %v1280 = vpack.c.bf16 %v938, %v938
        %vm1281 = vcmask 125952
        %1282 = vst.msk [vmem:[%s425] sm:$0xf] %vm1281, %v1273
        %1283 = vst.msk [vmem:[%s425 + $0x4] sm:$0xf] %vm1281, %v1274
        %1284 = vst.msk [vmem:[%s425 + $0x8] sm:$0xf] %vm1281, %v1275
        %1285 = vst.msk [vmem:[%s425 + $0xc] sm:$0xf] %vm1281, %v1276
        %1286 = vst.msk [vmem:[%s425 + $0x10] sm:$0xf] %vm1281, %v1277
        %1287 = vst.msk [vmem:[%s425 + $0x14] sm:$0xf] %vm1281, %v1278
        %1288 = vst.msk [vmem:[%s425 + $0x18] sm:$0xf] %vm1281, %v1279
        %1289 = vst.msk [vmem:[%s425 + $0x1c] sm:$0xf] %vm1281, %v1280
        %s1290 = sand.u32 %s242, 1
        %s1291 = scalar_lea.sflag [#allocation10], %s1290
        %s1292 = sand.u32 %s242, 1
        %s1293 = smul.addr %s1292, 8
        %s1294 = scalar_lea.vmem [#allocation11], %s1293
        %s1295 = sand.u32 %s270, 1
        %s1296 = scalar_lea.sflag [#allocation13], %s1295
        %s1297 = sand.u32 %s270, 1
        %s1298 = smul.addr %s1297, 32
        %s1299 = scalar_lea.vmem [#allocation12], %s1298
        // Predicated region
        $region65: #{tpu_custom_call.1} parent=51 // pred_check
          %p1300 = pneg %p252
        $region66: #{tpu_custom_call.1} parent=51 // pred_check_branch
          %1302 = sbr.rel (%p1300) target = $region68
        $region67: #{tpu_custom_call.1} parent=51 // pred_region
          %s1304 = ssub.s32 128, 128
          %1305 = vsyncadd %s1291, %s1304
          %s1306 = smul.addr %s34, 128
          %s1307 = scalar_lea.hbm %s8, %s1306
          %s1309 = sshll.u32 %s1294, 4
          %s1310 = int_to_ptr.vmem [resolvable:$true] %s1309
          %1312 = dma.vmem_to_hbm [thread:$0]  %s1310, 128, %s1307, %s1291
        $region68: #{tpu_custom_call.1} parent=51 // pred_fallthru
          _
        // Predicated region
        $region69: #{tpu_custom_call.1} parent=51 // pred_check
          %p1313 = pneg %p280
        $region70: #{tpu_custom_call.1} parent=51 // pred_check_branch
          %1315 = sbr.rel (%p1313) target = $region72
        $region71: #{tpu_custom_call.1} parent=51 // pred_region
          %s1317 = ssub.s32 512, 512
          %1318 = vsyncadd %s1296, %s1317
          %s1319 = smul.addr %s34, 8
          %s1320 = sadd.s32 %s35, %s1319
          %s1321 = smul.addr %s1320, 64
          %s1322 = scalar_lea.hbm %s9, %s1321
          %s1323 = sshll.u32 %s1299, 4
          %s1324 = int_to_ptr.vmem [resolvable:$true] %s1323
          %1329 = dma.vmem_to_hbm [thread:$0]  %s1324, 512, %s1322, %s1296, 64, 64, 4
        $region72: #{tpu_custom_call.1} parent=51 // pred_fallthru
          _
      $region52: #{tpu_custom_call.1} parent=5 // pred_fallthru
        _
      %p1330 = scmp.le.s32.totalorder 2, %s25
      // Predicated region
      $region73: #{tpu_custom_call.1} parent=5 // pred_check
        %p1331 = pneg %p1330
      $region74: #{tpu_custom_call.1} parent=5 // pred_check_branch
        %1333 = sbr.rel (%p1331) target = $region76
      $region75: #{tpu_custom_call.1} parent=5 // pred_region
        %s1334 = ssub.s32 %s25, 2
        // Predicated region
        $region77: #{tpu_custom_call.1} parent=75 // pred_check
          %p1335 = pneg %p258
        $region78: #{tpu_custom_call.1} parent=75 // pred_check_branch
          %1337 = sbr.rel (%p1335) target = $region80
        $region79: #{tpu_custom_call.1} parent=75 // pred_region
          %s1338 = sand.u32 %s243, 1
          %s1339 = scalar_lea.sflag [#allocation10], %s1338
          %s1340 = sand.u32 %s243, 1
          %s1341 = smul.addr %s1340, 8
          %s1342 = scalar_lea.vmem [#allocation11], %s1341
          %1343 = dma.done %s1339, 128
        $region80: #{tpu_custom_call.1} parent=75 // pred_fallthru
          _
        // Predicated region
        $region81: #{tpu_custom_call.1} parent=75 // pred_check
          %p1344 = pneg %p286
        $region82: #{tpu_custom_call.1} parent=75 // pred_check_branch
          %1346 = sbr.rel (%p1344) target = $region84
        $region83: #{tpu_custom_call.1} parent=75 // pred_region
          %s1347 = sand.u32 %s271, 1
          %s1348 = scalar_lea.sflag [#allocation13], %s1347
          %s1349 = sand.u32 %s271, 1
          %s1350 = smul.addr %s1349, 32
          %s1351 = scalar_lea.vmem [#allocation12], %s1350
          %1352 = dma.done %s1348, 512
        $region84: #{tpu_custom_call.1} parent=75 // pred_fallthru
          _
      $region76: #{tpu_custom_call.1} parent=5 // pred_fallthru
        _
    $region6: #{tpu_custom_call.1} parent=1 // loop_footer
      %s29 = sadd.s32 1, %s25
    $region7: #{tpu_custom_call.1} parent=1 // loop_footer_branch
      %24 = sbr.rel target = $region3
    $region8: #{tpu_custom_call.1} parent=1 // loop_exit
      _
    %1353 = vsyncpa [#allocation9], 1
    %s1354 = scalar_lea.sflag [#allocation9], 1
    %1355 = vsyncpa %s1354, 1
    %1356 = vsyncpa [#allocation10], 1
    %s1357 = scalar_lea.sflag [#allocation10], 1
    %1358 = vsyncpa %s1357, 1
    %1359 = vsyncpa [#allocation13], 1
    %s1360 = scalar_lea.sflag [#allocation13], 1
    %1361 = vsyncpa %s1360, 1

</llo_original>
